<compile_context>
chip_gen: v7x
topology: tpu7x:2x2x1
jax: 0.10.0
libtpu: 0.0.40
codegen_flags: <defaults>
</compile_context>

<pallas_src>
import jax
import jax.numpy as jnp
import numpy as np
from jax.experimental import pallas as pl
from jax.experimental.pallas import tpu as pltpu

_EPS = 1e-5


def _residual_block_kernel(x_ref, w1_ref, g1_ref, be1_ref,
                           w2_ref, g2_ref, be2_ref, o_ref):
    Nb, H, W, C = x_ref.shape
    HW = H * W
    mm_dtype = w1_ref.dtype

    x32 = x_ref[...].astype(jnp.float32)                    # (Nb, H, W, C)

    def conv3x3(t, w9):
        """t: (Nb, H, W, C) f32 value; w9: (9C, C) matmul-dtype value.

        Returns the 'VALID' 3x3 conv of the reflect-padded tile as an
        (Nb*HW, C) f32 value.  Conv bias intentionally omitted: the following
        InstanceNorm's mean subtraction cancels any per-channel constant.
        """
        # Reflect pad along H (axis 1 is an outer, non-tiled dim -> cheap).
        ty = jnp.concatenate([t[:, 1:2], t, t[:, H - 2:H - 1]], axis=1)   # (Nb, H+2, W, C)
        # x-direction shifted copies with reflect boundaries, built as values
        # (no pad scratch round trip; 2 shifted copies instead of 6
        # misaligned tap slices).
        xm1 = jnp.concatenate([ty[:, :, 1:2], ty[:, :, 0:W - 1]], axis=2)    # value at x-1
        xp1 = jnp.concatenate([ty[:, :, 1:W], ty[:, :, W - 2:W - 1]], axis=2)  # value at x+1
        xs = (xm1, ty, xp1)                                   # dx = -1, 0, +1

        # im2col: lane-pack the 9 taps -> one MXU matmul, contraction depth 9C.
        # Row slices xs[kx][:, ky:ky+H] are outer-axis slices (free).
        taps = [xs[kx][:, ky:ky + H] for ky in range(3) for kx in range(3)]
        patch = jnp.concatenate(taps, axis=-1)                # (Nb, H, W, 9C)
        patch = patch.reshape(Nb * HW, 9 * C).astype(mm_dtype)
        return jnp.dot(patch, w9, preferred_element_type=jnp.float32)   # (Nb*HW, C)

    def inorm_affine(h, gamma, beta):
        """InstanceNorm + affine folded into a per-(sample, channel) scale/shift.

        h: (Nb*HW, C) f32.  Stats are per sample over the HW axis.
        TODO(synk): switch to a two-pass / compensated variance when HW gets
        large (256x256) to avoid E[x^2]-E[x]^2 cancellation.
        """
        hb = h.reshape(Nb, HW, C)
        inv_n = 1.0 / HW
        s1 = jnp.sum(hb, axis=1, keepdims=True)               # (Nb, 1, C)
        s2 = jnp.sum(hb * hb, axis=1, keepdims=True)
        mean = s1 * inv_n
        var = s2 * inv_n - mean * mean                        # biased var (PyTorch IN)
        scale = jax.lax.rsqrt(var + _EPS) * gamma.reshape(1, 1, C)   # rsqrt -> EUP slot
        shift = beta.reshape(1, 1, C) - mean * scale
        return hb * scale + shift                             # (Nb, HW, C)

    w1 = w1_ref[...]
    w2 = w2_ref[...]

    # conv1 -> IN1 (+affine) -> ReLU, one elementwise pass
    h1 = conv3x3(x32, w1)
    a = jnp.maximum(inorm_affine(h1, g1_ref[...], be1_ref[...]), 0.0)

    # conv2 -> IN2 (+affine) -> residual add, one elementwise pass
    h2 = conv3x3(a.reshape(Nb, H, W, C), w2)
    y = inorm_affine(h2, g2_ref[...], be2_ref[...]).reshape(Nb, H, W, C)
    o_ref[...] = (y + x32).astype(o_ref.dtype)


def _vmem_limit_bytes(vmem_need):
    """Generation-aware scoped-VMEM limit (v7x has only 64 MiB physical)."""
    cap = None
    try:
        cap = getattr(pltpu.get_tpu_info(), "vmem_capacity_bytes", None)
    except Exception:
        cap = None
    if not cap or cap <= 0:
        cap = 64 << 20                      # assume the smallest (v7x) if unknown
    headroom = max(cap // 4, 16 << 20)      # leave room for double buffering etc.
    ceiling = cap - headroom                # ~48 MiB on v7x, ~96 MiB on v5e/v6e
    return int(max(min(max(2 * vmem_need, 32 << 20), ceiling), 1 << 20))


def residual_wrapper_forward_nhwc(x_nhwc, params, *, matmul_dtype=jnp.bfloat16,
                                  samples_per_block=None):
    """Pallas forward pass, NHWC in/out.  x_nhwc: (N, H, W, C) -> (N, H, W, C)."""
    N, H, W, C = x_nhwc.shape
    assert H >= 2 and W >= 2, "reflect padding of 1 needs H, W >= 2"
    x = x_nhwc  # native dtype straight through; the kernel casts internally.

    # conv weights stored HWIO (3,3,Cin,Cout) -> im2col weight (9*Cin, Cout)
    w1 = params["w1"].reshape(9 * C, C).astype(matmul_dtype)
    w2 = params["w2"].reshape(9 * C, C).astype(matmul_dtype)
    g1 = params["g1"].reshape(1, C).astype(jnp.float32)
    g2 = params["g2"].reshape(1, C).astype(jnp.float32)
    be1 = params["be1"].reshape(1, C).astype(jnp.float32)
    be2 = params["be2"].reshape(1, C).astype(jnp.float32)
    # b1 / b2 are NOT passed: IN's mean subtraction cancels them exactly.

    # Amortize the ~0.35us per-grid-step overhead on small tiles by packing
    # several samples per step (largest divisor of N under a VMEM budget).
    if samples_per_block is None:
        budget = 8 << 20
        per_sample = H * W * C * 4 * 24     # rough in-kernel f32 working set
        samples_per_block = 1
        for cand in range(1, N + 1):
            if N % cand == 0 and cand * per_sample <= budget:
                samples_per_block = cand
    Nb = int(samples_per_block)
    if N % Nb != 0:
        Nb = 1
    grid = (N // Nb,)

    x_item = jnp.dtype(x.dtype).itemsize
    mm_item = jnp.dtype(matmul_dtype).itemsize
    blk = Nb * H * W * C
    io_bytes = 2 * 2 * blk * x_item                            # in+out, double-buffered
    par_bytes = 2 * 2 * (9 * C * C * mm_item + 2 * C * 4)      # weights + affine
    int_bytes = blk * 4 * 24                                   # im2col & intermediates
    vmem_limit = _vmem_limit_bytes(io_bytes + par_bytes + int_bytes)

    def const2d(shape):
        return pl.BlockSpec(shape, lambda n: (0, 0))

    sample_spec = pl.BlockSpec((Nb, H, W, C), lambda n: (n, 0, 0, 0))

    out = pl.pallas_call(
        _residual_block_kernel,
        out_shape=jax.ShapeDtypeStruct((N, H, W, C), x.dtype),
        grid=grid,
        in_specs=[
            sample_spec,
            const2d((9 * C, C)), const2d((1, C)), const2d((1, C)),
            const2d((9 * C, C)), const2d((1, C)), const2d((1, C)),
        ],
        out_specs=pl.BlockSpec((Nb, H, W, C), lambda n: (n, 0, 0, 0)),
        compiler_params=pltpu.CompilerParams(
            dimension_semantics=("parallel",),   # sample blocks are independent
            vmem_limit_bytes=vmem_limit),
    )(x, w1, g1, be1, w2, g2, be2)
    return out


def residual_wrapper_forward(x_nchw, params, *, matmul_dtype=jnp.bfloat16,
                             samples_per_block=None):
    """PyTorch-layout (NCHW) adapter.  Prefer the NHWC entry point in
    production; these transposes are a full HBM read+write of the activation."""
    x = jnp.transpose(x_nchw, (0, 2, 3, 1))
    out = residual_wrapper_forward_nhwc(x, params, matmul_dtype=matmul_dtype,
                                        samples_per_block=samples_per_block)
    return jnp.transpose(out, (0, 3, 1, 2))


def reference_forward(x_nchw, params):
    """Pure-JAX reference (matches PyTorch semantics, biases included)."""
    x = jnp.transpose(x_nchw, (0, 2, 3, 1)).astype(jnp.float32)

    def conv(t, w, b):
        tp = jnp.pad(t, ((0, 0), (1, 1), (1, 1), (0, 0)), mode="reflect")
        y = jax.lax.conv_general_dilated(
            tp, w, window_strides=(1, 1), padding="VALID",
            dimension_numbers=("NHWC", "HWIO", "NHWC"),
            precision=jax.lax.Precision.HIGHEST)
        return y + b.reshape(1, 1, 1, -1)

    def inorm(t, g, b):
        m = jnp.mean(t, axis=(1, 2), keepdims=True)
        v = jnp.mean((t - m) ** 2, axis=(1, 2), keepdims=True)
        return (t - m) / jnp.sqrt(v + _EPS) * g.reshape(1, 1, 1, -1) + b.reshape(1, 1, 1, -1)

    h = jax.nn.relu(inorm(conv(x, params["w1"], params["b1"]), params["g1"], params["be1"]))
    h = inorm(conv(h, params["w2"], params["b2"]), params["g2"], params["be2"])
    return jnp.transpose(h + x, (0, 3, 1, 2))


if __name__ == "__main__":
    N, C, H, W = 2, 4, 16, 16
    key = jax.random.PRNGKey(0)
    keys = jax.random.split(key, 9)
    bound = 1.0 / (C * 9) ** 0.5

    params = {
        # conv weights in HWIO (3, 3, Cin, Cout) — equivalent to PyTorch OIHW
        "w1": jax.random.uniform(keys[0], (3, 3, C, C), jnp.float32, -bound, bound),
        "b1": jax.random.uniform(keys[1], (C,), jnp.float32, -bound, bound),
        "g1": 1.0 + 0.1 * jax.random.normal(keys[2], (C,), jnp.float32),
        "be1": 0.1 * jax.random.normal(keys[3], (C,), jnp.float32),
        "w2": jax.random.uniform(keys[4], (3, 3, C, C), jnp.float32, -bound, bound),
        "b2": jax.random.uniform(keys[5], (C,), jnp.float32, -bound, bound),
        "g2": 1.0 + 0.1 * jax.random.normal(keys[6], (C,), jnp.float32),
        "be2": 0.1 * jax.random.normal(keys[7], (C,), jnp.float32),
    }
    x = jax.random.normal(keys[8], (N, C, H, W), jnp.float32)

    ref = jax.block_until_ready(reference_forward(x, params))

    # f32 MXU path: strict check against the f32 reference.
    out_f32 = jax.block_until_ready(
        residual_wrapper_forward(x, params, matmul_dtype=jnp.float32))
    assert out_f32.shape == x.shape
    np.testing.assert_allclose(np.asarray(out_f32), np.asarray(ref), rtol=1e-3, atol=1e-3)

    # Production default (bf16 MXU inputs, f32 accumulation / stats / residual):
    # loose check, since the reference is pure f32.
    out_bf16 = jax.block_until_ready(residual_wrapper_forward(x, params))
    np.testing.assert_allclose(np.asarray(out_bf16), np.asarray(ref), rtol=1e-1, atol=1e-1)

    print("KERNEL_OK")
</pallas_src>

<mosaic_0001>
module attributes {stable_mosaic.version = 11 : i64} {
  func.func @_residual_block_kernel(%arg0: i32, %arg1: memref<2x16x16x4xf32, #tpu.memory_space<vmem>>, %arg2: memref<36x4xf32, #tpu.memory_space<vmem>>, %arg3: memref<1x4xf32, #tpu.memory_space<vmem>>, %arg4: memref<1x4xf32, #tpu.memory_space<vmem>>, %arg5: memref<36x4xf32, #tpu.memory_space<vmem>>, %arg6: memref<1x4xf32, #tpu.memory_space<vmem>>, %arg7: memref<1x4xf32, #tpu.memory_space<vmem>>, %arg8: memref<2x16x16x4xf32, #tpu.memory_space<vmem>>) attributes {dimension_semantics = [#tpu.dimension_semantics<parallel>], iteration_bounds = array<i64: 1>, scalar_prefetch = 0 : i64, scratch_operands = 0 : i64, tpu.core_type = #tpu.core_type<tc>, window_params = [{transform_indices = @transform_0, window_bounds = array<i64: 2, 16, 16, 4>}, {pipeline_mode = #tpu.pipeline_mode<synchronous>, transform_indices = @transform_1, window_bounds = array<i64: 36, 4>}, {pipeline_mode = #tpu.pipeline_mode<synchronous>, transform_indices = @transform_2, window_bounds = array<i64: 1, 4>}, {pipeline_mode = #tpu.pipeline_mode<synchronous>, transform_indices = @transform_3, window_bounds = array<i64: 1, 4>}, {pipeline_mode = #tpu.pipeline_mode<synchronous>, transform_indices = @transform_4, window_bounds = array<i64: 36, 4>}, {pipeline_mode = #tpu.pipeline_mode<synchronous>, transform_indices = @transform_5, window_bounds = array<i64: 1, 4>}, {pipeline_mode = #tpu.pipeline_mode<synchronous>, transform_indices = @transform_6, window_bounds = array<i64: 1, 4>}, {transform_indices = @transform_7, window_bounds = array<i64: 2, 16, 16, 4>}]} {
    %c0 = arith.constant 0 : index
    %c0_0 = arith.constant 0 : index
    %c0_1 = arith.constant 0 : index
    %c0_2 = arith.constant 0 : index
    %0 = vector.load %arg1[%c0, %c0_0, %c0_1, %c0_2] : memref<2x16x16x4xf32, #tpu.memory_space<vmem>>, vector<2x16x16x4xf32>
    %c0_3 = arith.constant 0 : index
    %c0_4 = arith.constant 0 : index
    %1 = vector.load %arg2[%c0_3, %c0_4] : memref<36x4xf32, #tpu.memory_space<vmem>>, vector<36x4xf32>
    %c0_5 = arith.constant 0 : index
    %c0_6 = arith.constant 0 : index
    %2 = vector.load %arg5[%c0_5, %c0_6] : memref<36x4xf32, #tpu.memory_space<vmem>>, vector<36x4xf32>
    %3 = vector.extract_strided_slice %0 {offsets = [0, 1, 0, 0], sizes = [2, 1, 16, 4], strides = [1, 1, 1, 1]} : vector<2x16x16x4xf32> to vector<2x1x16x4xf32>
    %4 = vector.extract_strided_slice %0 {offsets = [0, 14, 0, 0], sizes = [2, 1, 16, 4], strides = [1, 1, 1, 1]} : vector<2x16x16x4xf32> to vector<2x1x16x4xf32>
    %5 = tpu.concatenate %3, %0, %4 in 1 : vector<2x1x16x4xf32>, vector<2x16x16x4xf32>, vector<2x1x16x4xf32> -> vector<2x18x16x4xf32>
    %6 = vector.extract_strided_slice %5 {offsets = [0, 0, 1, 0], sizes = [2, 18, 1, 4], strides = [1, 1, 1, 1]} : vector<2x18x16x4xf32> to vector<2x18x1x4xf32>
    %7 = vector.extract_strided_slice %5 {offsets = [0, 0, 0, 0], sizes = [2, 18, 15, 4], strides = [1, 1, 1, 1]} : vector<2x18x16x4xf32> to vector<2x18x15x4xf32>
    %8 = tpu.concatenate %6, %7 in 2 : vector<2x18x1x4xf32>, vector<2x18x15x4xf32> -> vector<2x18x16x4xf32>
    %9 = vector.extract_strided_slice %5 {offsets = [0, 0, 1, 0], sizes = [2, 18, 15, 4], strides = [1, 1, 1, 1]} : vector<2x18x16x4xf32> to vector<2x18x15x4xf32>
    %10 = vector.extract_strided_slice %5 {offsets = [0, 0, 14, 0], sizes = [2, 18, 1, 4], strides = [1, 1, 1, 1]} : vector<2x18x16x4xf32> to vector<2x18x1x4xf32>
    %11 = tpu.concatenate %9, %10 in 2 : vector<2x18x15x4xf32>, vector<2x18x1x4xf32> -> vector<2x18x16x4xf32>
    %12 = vector.extract_strided_slice %8 {offsets = [0, 0, 0, 0], sizes = [2, 16, 16, 4], strides = [1, 1, 1, 1]} : vector<2x18x16x4xf32> to vector<2x16x16x4xf32>
    %13 = vector.extract_strided_slice %5 {offsets = [0, 0, 0, 0], sizes = [2, 16, 16, 4], strides = [1, 1, 1, 1]} : vector<2x18x16x4xf32> to vector<2x16x16x4xf32>
    %14 = vector.extract_strided_slice %11 {offsets = [0, 0, 0, 0], sizes = [2, 16, 16, 4], strides = [1, 1, 1, 1]} : vector<2x18x16x4xf32> to vector<2x16x16x4xf32>
    %15 = vector.extract_strided_slice %8 {offsets = [0, 1, 0, 0], sizes = [2, 16, 16, 4], strides = [1, 1, 1, 1]} : vector<2x18x16x4xf32> to vector<2x16x16x4xf32>
    %16 = vector.extract_strided_slice %5 {offsets = [0, 1, 0, 0], sizes = [2, 16, 16, 4], strides = [1, 1, 1, 1]} : vector<2x18x16x4xf32> to vector<2x16x16x4xf32>
    %17 = vector.extract_strided_slice %11 {offsets = [0, 1, 0, 0], sizes = [2, 16, 16, 4], strides = [1, 1, 1, 1]} : vector<2x18x16x4xf32> to vector<2x16x16x4xf32>
    %18 = vector.extract_strided_slice %8 {offsets = [0, 2, 0, 0], sizes = [2, 16, 16, 4], strides = [1, 1, 1, 1]} : vector<2x18x16x4xf32> to vector<2x16x16x4xf32>
    %19 = vector.extract_strided_slice %5 {offsets = [0, 2, 0, 0], sizes = [2, 16, 16, 4], strides = [1, 1, 1, 1]} : vector<2x18x16x4xf32> to vector<2x16x16x4xf32>
    %20 = vector.extract_strided_slice %11 {offsets = [0, 2, 0, 0], sizes = [2, 16, 16, 4], strides = [1, 1, 1, 1]} : vector<2x18x16x4xf32> to vector<2x16x16x4xf32>
    %21 = tpu.concatenate %12, %13, %14, %15, %16, %17, %18, %19, %20 in 3 : vector<2x16x16x4xf32>, vector<2x16x16x4xf32>, vector<2x16x16x4xf32>, vector<2x16x16x4xf32>, vector<2x16x16x4xf32>, vector<2x16x16x4xf32>, vector<2x16x16x4xf32>, vector<2x16x16x4xf32>, vector<2x16x16x4xf32> -> vector<2x16x16x36xf32>
    %22 = vector.shape_cast %21 : vector<2x16x16x36xf32> to vector<512x36xf32>
    %cst = arith.constant dense<0.000000e+00> : vector<512x4xf32>
    %23 = tpu.matmul %22, %1, %cst {dimension_numbers = #tpu.dot_dimension_numbers<[1], [0], [0], [1], [0, 0, 1, 1], [], []>} : vector<512x36xf32>, vector<36x4xf32>, vector<512x4xf32> -> vector<512x4xf32>
    %c0_7 = arith.constant 0 : index
    %c0_8 = arith.constant 0 : index
    %24 = vector.load %arg3[%c0_7, %c0_8] : memref<1x4xf32, #tpu.memory_space<vmem>>, vector<1x4xf32>
    %c0_9 = arith.constant 0 : index
    %c0_10 = arith.constant 0 : index
    %25 = vector.load %arg4[%c0_9, %c0_10] : memref<1x4xf32, #tpu.memory_space<vmem>>, vector<1x4xf32>
    %26 = vector.shape_cast %23 : vector<512x4xf32> to vector<2x256x4xf32>
    %cst_11 = arith.constant dense<0.000000e+00> : vector<2x4xf32>
    %27 = vector.multi_reduction <add>, %26, %cst_11 [1] : vector<2x256x4xf32> to vector<2x4xf32>
    %28 = vector.shape_cast %27 : vector<2x4xf32> to vector<2x1x4xf32>
    %29 = arith.mulf %26, %26 : vector<2x256x4xf32>
    %cst_12 = arith.constant dense<0.000000e+00> : vector<2x4xf32>
    %30 = vector.multi_reduction <add>, %29, %cst_12 [1] : vector<2x256x4xf32> to vector<2x4xf32>
    %31 = vector.shape_cast %30 : vector<2x4xf32> to vector<2x1x4xf32>
    %cst_13 = arith.constant 3.906250e-03 : f32
    %32 = vector.broadcast %cst_13 : f32 to vector<2x1x4xf32>
    %33 = arith.mulf %28, %32 : vector<2x1x4xf32>
    %cst_14 = arith.constant 3.906250e-03 : f32
    %34 = vector.broadcast %cst_14 : f32 to vector<2x1x4xf32>
    %35 = arith.mulf %31, %34 : vector<2x1x4xf32>
    %36 = arith.mulf %33, %33 : vector<2x1x4xf32>
    %37 = arith.subf %35, %36 : vector<2x1x4xf32>
    %cst_15 = arith.constant 9.99999974E-6 : f32
    %38 = vector.broadcast %cst_15 : f32 to vector<2x1x4xf32>
    %39 = arith.addf %37, %38 : vector<2x1x4xf32>
    %40 = math.rsqrt %39 : vector<2x1x4xf32>
    %41 = vector.shape_cast %24 : vector<1x4xf32> to vector<1x1x4xf32>
    %42 = vector.broadcast %41 : vector<1x1x4xf32> to vector<2x1x4xf32>
    %43 = arith.mulf %40, %42 : vector<2x1x4xf32>
    %44 = vector.shape_cast %25 : vector<1x4xf32> to vector<1x1x4xf32>
    %45 = arith.mulf %33, %43 : vector<2x1x4xf32>
    %46 = vector.broadcast %44 : vector<1x1x4xf32> to vector<2x1x4xf32>
    %47 = arith.subf %46, %45 : vector<2x1x4xf32>
    %48 = vector.broadcast %43 : vector<2x1x4xf32> to vector<2x256x4xf32>
    %49 = arith.mulf %26, %48 : vector<2x256x4xf32>
    %50 = vector.broadcast %47 : vector<2x1x4xf32> to vector<2x256x4xf32>
    %51 = arith.addf %49, %50 : vector<2x256x4xf32>
    %cst_16 = arith.constant 0.000000e+00 : f32
    %52 = vector.broadcast %cst_16 : f32 to vector<2x256x4xf32>
    %53 = arith.maximumf %51, %52 : vector<2x256x4xf32>
    %54 = vector.shape_cast %53 : vector<2x256x4xf32> to vector<2x16x16x4xf32>
    %55 = vector.extract_strided_slice %54 {offsets = [0, 1, 0, 0], sizes = [2, 1, 16, 4], strides = [1, 1, 1, 1]} : vector<2x16x16x4xf32> to vector<2x1x16x4xf32>
    %56 = vector.extract_strided_slice %54 {offsets = [0, 14, 0, 0], sizes = [2, 1, 16, 4], strides = [1, 1, 1, 1]} : vector<2x16x16x4xf32> to vector<2x1x16x4xf32>
    %57 = tpu.concatenate %55, %54, %56 in 1 : vector<2x1x16x4xf32>, vector<2x16x16x4xf32>, vector<2x1x16x4xf32> -> vector<2x18x16x4xf32>
    %58 = vector.extract_strided_slice %57 {offsets = [0, 0, 1, 0], sizes = [2, 18, 1, 4], strides = [1, 1, 1, 1]} : vector<2x18x16x4xf32> to vector<2x18x1x4xf32>
    %59 = vector.extract_strided_slice %57 {offsets = [0, 0, 0, 0], sizes = [2, 18, 15, 4], strides = [1, 1, 1, 1]} : vector<2x18x16x4xf32> to vector<2x18x15x4xf32>
    %60 = tpu.concatenate %58, %59 in 2 : vector<2x18x1x4xf32>, vector<2x18x15x4xf32> -> vector<2x18x16x4xf32>
    %61 = vector.extract_strided_slice %57 {offsets = [0, 0, 1, 0], sizes = [2, 18, 15, 4], strides = [1, 1, 1, 1]} : vector<2x18x16x4xf32> to vector<2x18x15x4xf32>
    %62 = vector.extract_strided_slice %57 {offsets = [0, 0, 14, 0], sizes = [2, 18, 1, 4], strides = [1, 1, 1, 1]} : vector<2x18x16x4xf32> to vector<2x18x1x4xf32>
    %63 = tpu.concatenate %61, %62 in 2 : vector<2x18x15x4xf32>, vector<2x18x1x4xf32> -> vector<2x18x16x4xf32>
    %64 = vector.extract_strided_slice %60 {offsets = [0, 0, 0, 0], sizes = [2, 16, 16, 4], strides = [1, 1, 1, 1]} : vector<2x18x16x4xf32> to vector<2x16x16x4xf32>
    %65 = vector.extract_strided_slice %57 {offsets = [0, 0, 0, 0], sizes = [2, 16, 16, 4], strides = [1, 1, 1, 1]} : vector<2x18x16x4xf32> to vector<2x16x16x4xf32>
    %66 = vector.extract_strided_slice %63 {offsets = [0, 0, 0, 0], sizes = [2, 16, 16, 4], strides = [1, 1, 1, 1]} : vector<2x18x16x4xf32> to vector<2x16x16x4xf32>
    %67 = vector.extract_strided_slice %60 {offsets = [0, 1, 0, 0], sizes = [2, 16, 16, 4], strides = [1, 1, 1, 1]} : vector<2x18x16x4xf32> to vector<2x16x16x4xf32>
    %68 = vector.extract_strided_slice %57 {offsets = [0, 1, 0, 0], sizes = [2, 16, 16, 4], strides = [1, 1, 1, 1]} : vector<2x18x16x4xf32> to vector<2x16x16x4xf32>
    %69 = vector.extract_strided_slice %63 {offsets = [0, 1, 0, 0], sizes = [2, 16, 16, 4], strides = [1, 1, 1, 1]} : vector<2x18x16x4xf32> to vector<2x16x16x4xf32>
    %70 = vector.extract_strided_slice %60 {offsets = [0, 2, 0, 0], sizes = [2, 16, 16, 4], strides = [1, 1, 1, 1]} : vector<2x18x16x4xf32> to vector<2x16x16x4xf32>
    %71 = vector.extract_strided_slice %57 {offsets = [0, 2, 0, 0], sizes = [2, 16, 16, 4], strides = [1, 1, 1, 1]} : vector<2x18x16x4xf32> to vector<2x16x16x4xf32>
    %72 = vector.extract_strided_slice %63 {offsets = [0, 2, 0, 0], sizes = [2, 16, 16, 4], strides = [1, 1, 1, 1]} : vector<2x18x16x4xf32> to vector<2x16x16x4xf32>
    %73 = tpu.concatenate %64, %65, %66, %67, %68, %69, %70, %71, %72 in 3 : vector<2x16x16x4xf32>, vector<2x16x16x4xf32>, vector<2x16x16x4xf32>, vector<2x16x16x4xf32>, vector<2x16x16x4xf32>, vector<2x16x16x4xf32>, vector<2x16x16x4xf32>, vector<2x16x16x4xf32>, vector<2x16x16x4xf32> -> vector<2x16x16x36xf32>
    %74 = vector.shape_cast %73 : vector<2x16x16x36xf32> to vector<512x36xf32>
    %cst_17 = arith.constant dense<0.000000e+00> : vector<512x4xf32>
    %75 = tpu.matmul %74, %2, %cst_17 {dimension_numbers = #tpu.dot_dimension_numbers<[1], [0], [0], [1], [0, 0, 1, 1], [], []>} : vector<512x36xf32>, vector<36x4xf32>, vector<512x4xf32> -> vector<512x4xf32>
    %c0_18 = arith.constant 0 : index
    %c0_19 = arith.constant 0 : index
    %76 = vector.load %arg6[%c0_18, %c0_19] : memref<1x4xf32, #tpu.memory_space<vmem>>, vector<1x4xf32>
    %c0_20 = arith.constant 0 : index
    %c0_21 = arith.constant 0 : index
    %77 = vector.load %arg7[%c0_20, %c0_21] : memref<1x4xf32, #tpu.memory_space<vmem>>, vector<1x4xf32>
    %78 = vector.shape_cast %75 : vector<512x4xf32> to vector<2x256x4xf32>
    %cst_22 = arith.constant dense<0.000000e+00> : vector<2x4xf32>
    %79 = vector.multi_reduction <add>, %78, %cst_22 [1] : vector<2x256x4xf32> to vector<2x4xf32>
    %80 = vector.shape_cast %79 : vector<2x4xf32> to vector<2x1x4xf32>
    %81 = arith.mulf %78, %78 : vector<2x256x4xf32>
    %cst_23 = arith.constant dense<0.000000e+00> : vector<2x4xf32>
    %82 = vector.multi_reduction <add>, %81, %cst_23 [1] : vector<2x256x4xf32> to vector<2x4xf32>
    %83 = vector.shape_cast %82 : vector<2x4xf32> to vector<2x1x4xf32>
    %cst_24 = arith.constant 3.906250e-03 : f32
    %84 = vector.broadcast %cst_24 : f32 to vector<2x1x4xf32>
    %85 = arith.mulf %80, %84 : vector<2x1x4xf32>
    %cst_25 = arith.constant 3.906250e-03 : f32
    %86 = vector.broadcast %cst_25 : f32 to vector<2x1x4xf32>
    %87 = arith.mulf %83, %86 : vector<2x1x4xf32>
    %88 = arith.mulf %85, %85 : vector<2x1x4xf32>
    %89 = arith.subf %87, %88 : vector<2x1x4xf32>
    %cst_26 = arith.constant 9.99999974E-6 : f32
    %90 = vector.broadcast %cst_26 : f32 to vector<2x1x4xf32>
    %91 = arith.addf %89, %90 : vector<2x1x4xf32>
    %92 = math.rsqrt %91 : vector<2x1x4xf32>
    %93 = vector.shape_cast %76 : vector<1x4xf32> to vector<1x1x4xf32>
    %94 = vector.broadcast %93 : vector<1x1x4xf32> to vector<2x1x4xf32>
    %95 = arith.mulf %92, %94 : vector<2x1x4xf32>
    %96 = vector.shape_cast %77 : vector<1x4xf32> to vector<1x1x4xf32>
    %97 = arith.mulf %85, %95 : vector<2x1x4xf32>
    %98 = vector.broadcast %96 : vector<1x1x4xf32> to vector<2x1x4xf32>
    %99 = arith.subf %98, %97 : vector<2x1x4xf32>
    %100 = vector.broadcast %95 : vector<2x1x4xf32> to vector<2x256x4xf32>
    %101 = arith.mulf %78, %100 : vector<2x256x4xf32>
    %102 = vector.broadcast %99 : vector<2x1x4xf32> to vector<2x256x4xf32>
    %103 = arith.addf %101, %102 : vector<2x256x4xf32>
    %104 = vector.shape_cast %103 : vector<2x256x4xf32> to vector<2x16x16x4xf32>
    %105 = arith.addf %104, %0 : vector<2x16x16x4xf32>
    %c0_27 = arith.constant 0 : index
    %c0_28 = arith.constant 0 : index
    %c0_29 = arith.constant 0 : index
    %c0_30 = arith.constant 0 : index
    %106 = vector.load %arg8[%c0_27, %c0_28, %c0_29, %c0_30] : memref<2x16x16x4xf32, #tpu.memory_space<vmem>>, vector<2x16x16x4xf32>
    tpu.vector_store %arg8[%c0_27, %c0_28, %c0_29, %c0_30], %105 {strides = array<i32>} : memref<2x16x16x4xf32, #tpu.memory_space<vmem>>, vector<2x16x16x4xf32>,
    return
  }
  func.func @transform_0(%arg0: i32) -> (i32, i32, i32, i32) {
    %c0_i32 = arith.constant 0 : i32
    %c0_i32_0 = arith.constant 0 : i32
    %c0_i32_1 = arith.constant 0 : i32
    %c0_i32_2 = arith.constant 0 : i32
    return %arg0, %c0_i32, %c0_i32_0, %c0_i32_1 : i32, i32, i32, i32
  }
  func.func @transform_1(%arg0: i32) -> (i32, i32) {
    %c0_i32 = arith.constant 0 : i32
    %c0_i32_0 = arith.constant 0 : i32
    %c0_i32_1 = arith.constant 0 : i32
    return %c0_i32, %c0_i32_0 : i32, i32
  }
  func.func @transform_2(%arg0: i32) -> (i32, i32) {
    %c0_i32 = arith.constant 0 : i32
    %c0_i32_0 = arith.constant 0 : i32
    %c0_i32_1 = arith.constant 0 : i32
    return %c0_i32, %c0_i32_0 : i32, i32
  }
  func.func @transform_3(%arg0: i32) -> (i32, i32) {
    %c0_i32 = arith.constant 0 : i32
    %c0_i32_0 = arith.constant 0 : i32
    %c0_i32_1 = arith.constant 0 : i32
    return %c0_i32, %c0_i32_0 : i32, i32
  }
  func.func @transform_4(%arg0: i32) -> (i32, i32) {
    %c0_i32 = arith.constant 0 : i32
    %c0_i32_0 = arith.constant 0 : i32
    %c0_i32_1 = arith.constant 0 : i32
    return %c0_i32, %c0_i32_0 : i32, i32
  }
  func.func @transform_5(%arg0: i32) -> (i32, i32) {
    %c0_i32 = arith.constant 0 : i32
    %c0_i32_0 = arith.constant 0 : i32
    %c0_i32_1 = arith.constant 0 : i32
    return %c0_i32, %c0_i32_0 : i32, i32
  }
  func.func @transform_6(%arg0: i32) -> (i32, i32) {
    %c0_i32 = arith.constant 0 : i32
    %c0_i32_0 = arith.constant 0 : i32
    %c0_i32_1 = arith.constant 0 : i32
    return %c0_i32, %c0_i32_0 : i32, i32
  }
  func.func @transform_7(%arg0: i32) -> (i32, i32, i32, i32) {
    %c0_i32 = arith.constant 0 : i32
    %c0_i32_0 = arith.constant 0 : i32
    %c0_i32_1 = arith.constant 0 : i32
    %c0_i32_2 = arith.constant 0 : i32
    return %arg0, %c0_i32, %c0_i32_0, %c0_i32_1 : i32, i32, i32, i32
  }
}

</mosaic_0001>

<llo_original>
// kernel: tpu_custom_call.1
$region0: #{tpu_custom_call.1}
  #allocation0 [shape = 'u32[]', space=smem, size = 0x4, offset = 0x4, fixed_abs, tag = 'smem constant byte address 0x4 - core index']
  #allocation1 [shape = 'u32[144,128]{1,0:T(1,128)}', space=vmem, size = 0x12000, scoped, tag = 'internal scratch']
  %s0 = inlined_call_operand.vmem [shape: f32[2,16,16,4], index: 0, kind: input, shape index: {}]
  %s1 = inlined_call_operand.vmem [shape: f32[36,4], index: 1, kind: input, shape index: {}]
  %s2 = inlined_call_operand.vmem [shape: f32[1,4], index: 2, kind: input, shape index: {}]
  %s3 = inlined_call_operand.vmem [shape: f32[1,4], index: 3, kind: input, shape index: {}]
  %s4 = inlined_call_operand.vmem [shape: f32[36,4], index: 4, kind: input, shape index: {}]
  %s5 = inlined_call_operand.vmem [shape: f32[1,4], index: 5, kind: input, shape index: {}]
  %s6 = inlined_call_operand.vmem [shape: f32[1,4], index: 6, kind: input, shape index: {}]
  %s7 = inlined_call_operand.vmem [shape: f32[2,16,16,4], index: 7, kind: output, shape index: {}]
  %s8 = sld [smem:[#allocation0]]
  $region38: #{tpu_custom_call.1} parent=0
    _
  %s10 = ssub.s32 1, %s8
  %s11 = scalar_select 0, %s10, %s8
  // Predicated region
  $region2: #{tpu_custom_call.1} parent=0 // pred_check
    _
  $region3: #{tpu_custom_call.1} parent=0 // pred_check_branch
    %13 = sbr.rel (0) target = $region5
  $region4: #{tpu_custom_call.1} parent=0 // pred_region
    _
  $region5: #{tpu_custom_call.1} parent=0 // pred_fallthru
    _
  // Predicated region
  $region6: #{tpu_custom_call.1} parent=0 // pred_check
    _
  $region7: #{tpu_custom_call.1} parent=0 // pred_check_branch
    %15 = sbr.rel (0) target = $region9
  $region8: #{tpu_custom_call.1} parent=0 // pred_region
    _
  $region9: #{tpu_custom_call.1} parent=0 // pred_fallthru
    _
  // Predicated region
  $region10: #{tpu_custom_call.1} parent=0 // pred_check
    _
  $region11: #{tpu_custom_call.1} parent=0 // pred_check_branch
    %17 = sbr.rel (0) target = $region13
  $region12: #{tpu_custom_call.1} parent=0 // pred_region
    _
  $region13: #{tpu_custom_call.1} parent=0 // pred_fallthru
    _
  // Predicated region
  $region14: #{tpu_custom_call.1} parent=0 // pred_check
    _
  $region15: #{tpu_custom_call.1} parent=0 // pred_check_branch
    %19 = sbr.rel (0) target = $region17
  $region16: #{tpu_custom_call.1} parent=0 // pred_region
    _
  $region17: #{tpu_custom_call.1} parent=0 // pred_fallthru
    _
  // Predicated region
  $region18: #{tpu_custom_call.1} parent=0 // pred_check
    _
  $region19: #{tpu_custom_call.1} parent=0 // pred_check_branch
    %21 = sbr.rel (0) target = $region21
  $region20: #{tpu_custom_call.1} parent=0 // pred_region
    _
  $region21: #{tpu_custom_call.1} parent=0 // pred_fallthru
    _
  // Predicated region
  $region22: #{tpu_custom_call.1} parent=0 // pred_check
    _
  $region23: #{tpu_custom_call.1} parent=0 // pred_check_branch
    %23 = sbr.rel (0) target = $region25
  $region24: #{tpu_custom_call.1} parent=0 // pred_region
    _
  $region25: #{tpu_custom_call.1} parent=0 // pred_fallthru
    _
  // Predicated region
  $region26: #{tpu_custom_call.1} parent=0 // pred_check
    _
  $region27: #{tpu_custom_call.1} parent=0 // pred_check_branch
    %25 = sbr.rel (0) target = $region29
  $region28: #{tpu_custom_call.1} parent=0 // pred_region
    _
  $region29: #{tpu_custom_call.1} parent=0 // pred_fallthru
    _
  %v26 = vld [vmem:[%s0] sm:$0xff]
  %v27 = vld [vmem:[%s0 + $0x8] sm:$0xff]
  %v28 = vld [vmem:[%s0 + $0x10] sm:$0xff]
  %v29 = vld [vmem:[%s0 + $0x18] sm:$0xff]
  %v30 = vld [vmem:[%s0 + $0x20] sm:$0xff]
  %v31 = vld [vmem:[%s0 + $0x28] sm:$0xff]
  %v32 = vld [vmem:[%s0 + $0x30] sm:$0xff]
  %v33 = vld [vmem:[%s0 + $0x38] sm:$0xff]
  %v34 = vld [vmem:[%s0 + $0x40] sm:$0xff]
  %v35 = vld [vmem:[%s0 + $0x48] sm:$0xff]
  %v36 = vld [vmem:[%s0 + $0x50] sm:$0xff]
  %v37 = vld [vmem:[%s0 + $0x58] sm:$0xff]
  %v38 = vld [vmem:[%s0 + $0x60] sm:$0xff]
  %v39 = vld [vmem:[%s0 + $0x68] sm:$0xff]
  %v40 = vld [vmem:[%s0 + $0x70] sm:$0xff]
  %v41 = vld [vmem:[%s0 + $0x78] sm:$0xff]
  %v42 = vld [vmem:[%s0 + $0x80] sm:$0xff]
  %v43 = vld [vmem:[%s0 + $0x88] sm:$0xff]
  %v44 = vld [vmem:[%s0 + $0x90] sm:$0xff]
  %v45 = vld [vmem:[%s0 + $0x98] sm:$0xff]
  %v46 = vld [vmem:[%s0 + $0xa0] sm:$0xff]
  %v47 = vld [vmem:[%s0 + $0xa8] sm:$0xff]
  %v48 = vld [vmem:[%s0 + $0xb0] sm:$0xff]
  %v49 = vld [vmem:[%s0 + $0xb8] sm:$0xff]
  %v50 = vld [vmem:[%s0 + $0xc0] sm:$0xff]
  %v51 = vld [vmem:[%s0 + $0xc8] sm:$0xff]
  %v52 = vld [vmem:[%s0 + $0xd0] sm:$0xff]
  %v53 = vld [vmem:[%s0 + $0xd8] sm:$0xff]
  %v54 = vld [vmem:[%s0 + $0xe0] sm:$0xff]
  %v55 = vld [vmem:[%s0 + $0xe8] sm:$0xff]
  %v56 = vld [vmem:[%s0 + $0xf0] sm:$0xff]
  %v57 = vld [vmem:[%s0 + $0xf8] sm:$0xff]
  %v58 = vld [vmem:[%s0 + $0x100] sm:$0xff]
  %v59 = vld [vmem:[%s0 + $0x108] sm:$0xff]
  %v60 = vld [vmem:[%s0 + $0x110] sm:$0xff]
  %v61 = vld [vmem:[%s0 + $0x118] sm:$0xff]
  %v62 = vld [vmem:[%s0 + $0x120] sm:$0xff]
  %v63 = vld [vmem:[%s0 + $0x128] sm:$0xff]
  %v64 = vld [vmem:[%s0 + $0x130] sm:$0xff]
  %v65 = vld [vmem:[%s0 + $0x138] sm:$0xff]
  %v66 = vld [vmem:[%s0 + $0x140] sm:$0xff]
  %v67 = vld [vmem:[%s0 + $0x148] sm:$0xff]
  %v68 = vld [vmem:[%s0 + $0x150] sm:$0xff]
  %v69 = vld [vmem:[%s0 + $0x158] sm:$0xff]
  %v70 = vld [vmem:[%s0 + $0x160] sm:$0xff]
  %v71 = vld [vmem:[%s0 + $0x168] sm:$0xff]
  %v72 = vld [vmem:[%s0 + $0x170] sm:$0xff]
  %v73 = vld [vmem:[%s0 + $0x178] sm:$0xff]
  %v74 = vld [vmem:[%s0 + $0x180] sm:$0xff]
  %v75 = vld [vmem:[%s0 + $0x188] sm:$0xff]
  %v76 = vld [vmem:[%s0 + $0x190] sm:$0xff]
  %v77 = vld [vmem:[%s0 + $0x198] sm:$0xff]
  %v78 = vld [vmem:[%s0 + $0x1a0] sm:$0xff]
  %v79 = vld [vmem:[%s0 + $0x1a8] sm:$0xff]
  %v80 = vld [vmem:[%s0 + $0x1b0] sm:$0xff]
  %v81 = vld [vmem:[%s0 + $0x1b8] sm:$0xff]
  %v82 = vld [vmem:[%s0 + $0x1c0] sm:$0xff]
  %v83 = vld [vmem:[%s0 + $0x1c8] sm:$0xff]
  %v84 = vld [vmem:[%s0 + $0x1d0] sm:$0xff]
  %v85 = vld [vmem:[%s0 + $0x1d8] sm:$0xff]
  %v86 = vld [vmem:[%s0 + $0x1e0] sm:$0xff]
  %v87 = vld [vmem:[%s0 + $0x1e8] sm:$0xff]
  %v88 = vld [vmem:[%s0 + $0x1f0] sm:$0xff]
  %v89 = vld [vmem:[%s0 + $0x1f8] sm:$0xff]
  %v90 = vld [vmem:[%s1] sm:$0xff]
  %v91 = vld [vmem:[%s1 + $0x8] sm:$0xff]
  %v92 = vld [vmem:[%s1 + $0x10] sm:$0xff]
  %v93 = vld [vmem:[%s1 + $0x18] sm:$0xff]
  %v94 = vld [vmem:[%s1 + $0x20] sm:$0xf]
  %v95 = vld [vmem:[%s4] sm:$0xff]
  %v96 = vld [vmem:[%s4 + $0x8] sm:$0xff]
  %v97 = vld [vmem:[%s4 + $0x10] sm:$0xff]
  %v98 = vld [vmem:[%s4 + $0x18] sm:$0xff]
  %v99 = vld [vmem:[%s4 + $0x20] sm:$0xf]
  %v132 = vrot.slane %v28, 1
  %v133 = vrot.slane %v26, 1
  %v134 = vrot.slane %v30, 1
  %v135 = vrot.slane %v32, 1
  %v136 = vrot.slane %v34, 1
  %v137 = vrot.slane %v36, 1
  %v138 = vrot.slane %v38, 1
  %v139 = vrot.slane %v40, 1
  %v140 = vrot.slane %v42, 1
  %v141 = vrot.slane %v44, 1
  %v142 = vrot.slane %v46, 1
  %v143 = vrot.slane %v48, 1
  %v144 = vrot.slane %v50, 1
  %v145 = vrot.slane %v52, 1
  %v146 = vrot.slane %v54, 1
  %v147 = vrot.slane %v56, 1
  %v148 = vrot.slane %v60, 1
  %v149 = vrot.slane %v58, 1
  %v150 = vrot.slane %v62, 1
  %v151 = vrot.slane %v64, 1
  %v152 = vrot.slane %v66, 1
  %v153 = vrot.slane %v68, 1
  %v154 = vrot.slane %v70, 1
  %v155 = vrot.slane %v72, 1
  %v156 = vrot.slane %v74, 1
  %v157 = vrot.slane %v76, 1
  %v158 = vrot.slane %v78, 1
  %v159 = vrot.slane %v80, 1
  %v160 = vrot.slane %v82, 1
  %v161 = vrot.slane %v84, 1
  %v162 = vrot.slane %v86, 1
  %v163 = vrot.slane %v88, 1
  %vm228 = vcmask 1040384
  %v229 = vrot.slane %v28, 7
  %v230 = vrot.slane %v29, 7
  %v231 = vsel %vm228, %v229, %v230
  %v232 = vrot.slane %v26, 7
  %v233 = vrot.slane %v27, 7
  %v234 = vsel %vm228, %v232, %v233
  %v235 = vrot.slane %v30, 7
  %v236 = vrot.slane %v31, 7
  %v237 = vsel %vm228, %v235, %v236
  %v238 = vrot.slane %v32, 7
  %v239 = vrot.slane %v33, 7
  %v240 = vsel %vm228, %v238, %v239
  %v241 = vrot.slane %v34, 7
  %v242 = vrot.slane %v35, 7
  %v243 = vsel %vm228, %v241, %v242
  %v244 = vrot.slane %v36, 7
  %v245 = vrot.slane %v37, 7
  %v246 = vsel %vm228, %v244, %v245
  %v247 = vrot.slane %v38, 7
  %v248 = vrot.slane %v39, 7
  %v249 = vsel %vm228, %v247, %v248
  %v250 = vrot.slane %v40, 7
  %v251 = vrot.slane %v41, 7
  %v252 = vsel %vm228, %v250, %v251
  %v253 = vrot.slane %v42, 7
  %v254 = vrot.slane %v43, 7
  %v255 = vsel %vm228, %v253, %v254
  %v256 = vrot.slane %v44, 7
  %v257 = vrot.slane %v45, 7
  %v258 = vsel %vm228, %v256, %v257
  %v259 = vrot.slane %v46, 7
  %v260 = vrot.slane %v47, 7
  %v261 = vsel %vm228, %v259, %v260
  %v262 = vrot.slane %v48, 7
  %v263 = vrot.slane %v49, 7
  %v264 = vsel %vm228, %v262, %v263
  %v265 = vrot.slane %v50, 7
  %v266 = vrot.slane %v51, 7
  %v267 = vsel %vm228, %v265, %v266
  %v268 = vrot.slane %v52, 7
  %v269 = vrot.slane %v53, 7
  %v270 = vsel %vm228, %v268, %v269
  %v271 = vrot.slane %v54, 7
  %v272 = vrot.slane %v55, 7
  %v273 = vsel %vm228, %v271, %v272
  %v274 = vrot.slane %v56, 7
  %v275 = vrot.slane %v57, 7
  %v276 = vsel %vm228, %v274, %v275
  %v277 = vrot.slane %v60, 7
  %v278 = vrot.slane %v61, 7
  %v279 = vsel %vm228, %v277, %v278
  %v280 = vrot.slane %v58, 7
  %v281 = vrot.slane %v59, 7
  %v282 = vsel %vm228, %v280, %v281
  %v283 = vrot.slane %v62, 7
  %v284 = vrot.slane %v63, 7
  %v285 = vsel %vm228, %v283, %v284
  %v286 = vrot.slane %v64, 7
  %v287 = vrot.slane %v65, 7
  %v288 = vsel %vm228, %v286, %v287
  %v289 = vrot.slane %v66, 7
  %v290 = vrot.slane %v67, 7
  %v291 = vsel %vm228, %v289, %v290
  %v292 = vrot.slane %v68, 7
  %v293 = vrot.slane %v69, 7
  %v294 = vsel %vm228, %v292, %v293
  %v295 = vrot.slane %v70, 7
  %v296 = vrot.slane %v71, 7
  %v297 = vsel %vm228, %v295, %v296
  %v298 = vrot.slane %v72, 7
  %v299 = vrot.slane %v73, 7
  %v300 = vsel %vm228, %v298, %v299
  %v301 = vrot.slane %v74, 7
  %v302 = vrot.slane %v75, 7
  %v303 = vsel %vm228, %v301, %v302
  %v304 = vrot.slane %v76, 7
  %v305 = vrot.slane %v77, 7
  %v306 = vsel %vm228, %v304, %v305
  %v307 = vrot.slane %v78, 7
  %v308 = vrot.slane %v79, 7
  %v309 = vsel %vm228, %v307, %v308
  %v310 = vrot.slane %v80, 7
  %v311 = vrot.slane %v81, 7
  %v312 = vsel %vm228, %v310, %v311
  %v313 = vrot.slane %v82, 7
  %v314 = vrot.slane %v83, 7
  %v315 = vsel %vm228, %v313, %v314
  %v316 = vrot.slane %v84, 7
  %v317 = vrot.slane %v85, 7
  %v318 = vsel %vm228, %v316, %v317
  %v319 = vrot.slane %v86, 7
  %v320 = vrot.slane %v87, 7
  %v321 = vsel %vm228, %v319, %v320
  %v322 = vrot.slane %v88, 7
  %v323 = vrot.slane %v89, 7
  %v324 = vsel %vm228, %v322, %v323
  %v387 = vsel %vm228, %v132, %v229
  %v388 = vsel %vm228, %v133, %v232
  %v389 = vsel %vm228, %v134, %v235
  %v390 = vsel %vm228, %v135, %v238
  %v391 = vsel %vm228, %v136, %v241
  %v392 = vsel %vm228, %v137, %v244
  %v393 = vsel %vm228, %v138, %v247
  %v394 = vsel %vm228, %v139, %v250
  %v395 = vsel %vm228, %v140, %v253
  %v396 = vsel %vm228, %v141, %v256
  %v397 = vsel %vm228, %v142, %v259
  %v398 = vsel %vm228, %v143, %v262
  %v399 = vsel %vm228, %v144, %v265
  %v400 = vsel %vm228, %v145, %v268
  %v401 = vsel %vm228, %v146, %v271
  %v402 = vsel %vm228, %v147, %v274
  %v403 = vsel %vm228, %v148, %v277
  %v404 = vsel %vm228, %v149, %v280
  %v405 = vsel %vm228, %v150, %v283
  %v406 = vsel %vm228, %v151, %v286
  %v407 = vsel %vm228, %v152, %v289
  %v408 = vsel %vm228, %v153, %v292
  %v409 = vsel %vm228, %v154, %v295
  %v410 = vsel %vm228, %v155, %v298
  %v411 = vsel %vm228, %v156, %v301
  %v412 = vsel %vm228, %v157, %v304
  %v413 = vsel %vm228, %v158, %v307
  %v414 = vsel %vm228, %v159, %v310
  %v415 = vsel %vm228, %v160, %v313
  %v416 = vsel %vm228, %v161, %v316
  %v417 = vsel %vm228, %v162, %v319
  %v418 = vsel %vm228, %v163, %v322
  %vm419 = vcmask 1046528
  %v420 = vrot.slane %v29, 1
  %v421 = vsel %vm419, %v132, %v420
  %v422 = vrot.slane %v27, 1
  %v423 = vsel %vm419, %v133, %v422
  %v424 = vrot.slane %v31, 1
  %v425 = vsel %vm419, %v134, %v424
  %v426 = vrot.slane %v33, 1
  %v427 = vsel %vm419, %v135, %v426
  %v428 = vrot.slane %v35, 1
  %v429 = vsel %vm419, %v136, %v428
  %v430 = vrot.slane %v37, 1
  %v431 = vsel %vm419, %v137, %v430
  %v432 = vrot.slane %v39, 1
  %v433 = vsel %vm419, %v138, %v432
  %v434 = vrot.slane %v41, 1
  %v435 = vsel %vm419, %v139, %v434
  %v436 = vrot.slane %v43, 1
  %v437 = vsel %vm419, %v140, %v436
  %v438 = vrot.slane %v45, 1
  %v439 = vsel %vm419, %v141, %v438
  %v440 = vrot.slane %v47, 1
  %v441 = vsel %vm419, %v142, %v440
  %v442 = vrot.slane %v49, 1
  %v443 = vsel %vm419, %v143, %v442
  %v444 = vrot.slane %v51, 1
  %v445 = vsel %vm419, %v144, %v444
  %v446 = vrot.slane %v53, 1
  %v447 = vsel %vm419, %v145, %v446
  %v448 = vrot.slane %v55, 1
  %v449 = vsel %vm419, %v146, %v448
  %v450 = vrot.slane %v57, 1
  %v451 = vsel %vm419, %v147, %v450
  %v452 = vrot.slane %v61, 1
  %v453 = vsel %vm419, %v148, %v452
  %v454 = vrot.slane %v59, 1
  %v455 = vsel %vm419, %v149, %v454
  %v456 = vrot.slane %v63, 1
  %v457 = vsel %vm419, %v150, %v456
  %v458 = vrot.slane %v65, 1
  %v459 = vsel %vm419, %v151, %v458
  %v460 = vrot.slane %v67, 1
  %v461 = vsel %vm419, %v152, %v460
  %v462 = vrot.slane %v69, 1
  %v463 = vsel %vm419, %v153, %v462
  %v464 = vrot.slane %v71, 1
  %v465 = vsel %vm419, %v154, %v464
  %v466 = vrot.slane %v73, 1
  %v467 = vsel %vm419, %v155, %v466
  %v468 = vrot.slane %v75, 1
  %v469 = vsel %vm419, %v156, %v468
  %v470 = vrot.slane %v77, 1
  %v471 = vsel %vm419, %v157, %v470
  %v472 = vrot.slane %v79, 1
  %v473 = vsel %vm419, %v158, %v472
  %v474 = vrot.slane %v81, 1
  %v475 = vsel %vm419, %v159, %v474
  %v476 = vrot.slane %v83, 1
  %v477 = vsel %vm419, %v160, %v476
  %v478 = vrot.slane %v85, 1
  %v479 = vsel %vm419, %v161, %v478
  %v480 = vrot.slane %v87, 1
  %v481 = vsel %vm419, %v162, %v480
  %v482 = vrot.slane %v89, 1
  %v483 = vsel %vm419, %v163, %v482
  %v548 = vsel %vm419, %v420, %v230
  %v549 = vsel %vm419, %v422, %v233
  %v550 = vsel %vm419, %v424, %v236
  %v551 = vsel %vm419, %v426, %v239
  %v552 = vsel %vm419, %v428, %v242
  %v553 = vsel %vm419, %v430, %v245
  %v554 = vsel %vm419, %v432, %v248
  %v555 = vsel %vm419, %v434, %v251
  %v556 = vsel %vm419, %v436, %v254
  %v557 = vsel %vm419, %v438, %v257
  %v558 = vsel %vm419, %v440, %v260
  %v559 = vsel %vm419, %v442, %v263
  %v560 = vsel %vm419, %v444, %v266
  %v561 = vsel %vm419, %v446, %v269
  %v562 = vsel %vm419, %v448, %v272
  %v563 = vsel %vm419, %v450, %v275
  %v564 = vsel %vm419, %v452, %v278
  %v565 = vsel %vm419, %v454, %v281
  %v566 = vsel %vm419, %v456, %v284
  %v567 = vsel %vm419, %v458, %v287
  %v568 = vsel %vm419, %v460, %v290
  %v569 = vsel %vm419, %v462, %v293
  %v570 = vsel %vm419, %v464, %v296
  %v571 = vsel %vm419, %v466, %v299
  %v572 = vsel %vm419, %v468, %v302
  %v573 = vsel %vm419, %v470, %v305
  %v574 = vsel %vm419, %v472, %v308
  %v575 = vsel %vm419, %v474, %v311
  %v576 = vsel %vm419, %v476, %v314
  %v577 = vsel %vm419, %v478, %v317
  %v578 = vsel %vm419, %v480, %v320
  %v579 = vsel %vm419, %v482, %v323
  %580 = vrot.lane.b32.xlu0 %v28, 4
  %v581 = vpop.permute.xlu0 %580
  %582 = vrot.lane.b32.xlu0 %v29, 4
  %v583 = vpop.permute.xlu0 %582
  %584 = vrot.lane.b32.xlu0 %v26, 4
  %v585 = vpop.permute.xlu0 %584
  %586 = vrot.lane.b32.xlu0 %v27, 4
  %v587 = vpop.permute.xlu0 %586
  %588 = vrot.lane.b32.xlu0 %v30, 4
  %v589 = vpop.permute.xlu0 %588
  %590 = vrot.lane.b32.xlu0 %v31, 4
  %v591 = vpop.permute.xlu0 %590
  %592 = vrot.lane.b32.xlu0 %v32, 4
  %v593 = vpop.permute.xlu0 %592
  %594 = vrot.lane.b32.xlu0 %v33, 4
  %v595 = vpop.permute.xlu0 %594
  %596 = vrot.lane.b32.xlu0 %v34, 4
  %v597 = vpop.permute.xlu0 %596
  %598 = vrot.lane.b32.xlu0 %v35, 4
  %v599 = vpop.permute.xlu0 %598
  %600 = vrot.lane.b32.xlu0 %v36, 4
  %v601 = vpop.permute.xlu0 %600
  %602 = vrot.lane.b32.xlu0 %v37, 4
  %v603 = vpop.permute.xlu0 %602
  %604 = vrot.lane.b32.xlu0 %v38, 4
  %v605 = vpop.permute.xlu0 %604
  %606 = vrot.lane.b32.xlu0 %v39, 4
  %v607 = vpop.permute.xlu0 %606
  %608 = vrot.lane.b32.xlu0 %v40, 4
  %v609 = vpop.permute.xlu0 %608
  %610 = vrot.lane.b32.xlu0 %v41, 4
  %v611 = vpop.permute.xlu0 %610
  %612 = vrot.lane.b32.xlu0 %v42, 4
  %v613 = vpop.permute.xlu0 %612
  %614 = vrot.lane.b32.xlu0 %v43, 4
  %v615 = vpop.permute.xlu0 %614
  %616 = vrot.lane.b32.xlu0 %v44, 4
  %v617 = vpop.permute.xlu0 %616
  %618 = vrot.lane.b32.xlu0 %v45, 4
  %v619 = vpop.permute.xlu0 %618
  %620 = vrot.lane.b32.xlu0 %v46, 4
  %v621 = vpop.permute.xlu0 %620
  %622 = vrot.lane.b32.xlu0 %v47, 4
  %v623 = vpop.permute.xlu0 %622
  %624 = vrot.lane.b32.xlu0 %v48, 4
  %v625 = vpop.permute.xlu0 %624
  %626 = vrot.lane.b32.xlu0 %v49, 4
  %v627 = vpop.permute.xlu0 %626
  %628 = vrot.lane.b32.xlu0 %v50, 4
  %v629 = vpop.permute.xlu0 %628
  %630 = vrot.lane.b32.xlu0 %v51, 4
  %v631 = vpop.permute.xlu0 %630
  %632 = vrot.lane.b32.xlu0 %v52, 4
  %v633 = vpop.permute.xlu0 %632
  %634 = vrot.lane.b32.xlu0 %v53, 4
  %v635 = vpop.permute.xlu0 %634
  %636 = vrot.lane.b32.xlu0 %v54, 4
  %v637 = vpop.permute.xlu0 %636
  %638 = vrot.lane.b32.xlu0 %v55, 4
  %v639 = vpop.permute.xlu0 %638
  %640 = vrot.lane.b32.xlu0 %v60, 4
  %v641 = vpop.permute.xlu0 %640
  %642 = vrot.lane.b32.xlu0 %v61, 4
  %v643 = vpop.permute.xlu0 %642
  %644 = vrot.lane.b32.xlu0 %v58, 4
  %v645 = vpop.permute.xlu0 %644
  %646 = vrot.lane.b32.xlu0 %v59, 4
  %v647 = vpop.permute.xlu0 %646
  %648 = vrot.lane.b32.xlu0 %v62, 4
  %v649 = vpop.permute.xlu0 %648
  %650 = vrot.lane.b32.xlu0 %v63, 4
  %v651 = vpop.permute.xlu0 %650
  %652 = vrot.lane.b32.xlu0 %v64, 4
  %v653 = vpop.permute.xlu0 %652
  %654 = vrot.lane.b32.xlu0 %v65, 4
  %v655 = vpop.permute.xlu0 %654
  %656 = vrot.lane.b32.xlu0 %v66, 4
  %v657 = vpop.permute.xlu0 %656
  %658 = vrot.lane.b32.xlu0 %v67, 4
  %v659 = vpop.permute.xlu0 %658
  %660 = vrot.lane.b32.xlu0 %v68, 4
  %v661 = vpop.permute.xlu0 %660
  %662 = vrot.lane.b32.xlu0 %v69, 4
  %v663 = vpop.permute.xlu0 %662
  %664 = vrot.lane.b32.xlu0 %v70, 4
  %v665 = vpop.permute.xlu0 %664
  %666 = vrot.lane.b32.xlu0 %v71, 4
  %v667 = vpop.permute.xlu0 %666
  %668 = vrot.lane.b32.xlu0 %v72, 4
  %v669 = vpop.permute.xlu0 %668
  %670 = vrot.lane.b32.xlu0 %v73, 4
  %v671 = vpop.permute.xlu0 %670
  %672 = vrot.lane.b32.xlu0 %v74, 4
  %v673 = vpop.permute.xlu0 %672
  %674 = vrot.lane.b32.xlu0 %v75, 4
  %v675 = vpop.permute.xlu0 %674
  %676 = vrot.lane.b32.xlu0 %v76, 4
  %v677 = vpop.permute.xlu0 %676
  %678 = vrot.lane.b32.xlu0 %v77, 4
  %v679 = vpop.permute.xlu0 %678
  %680 = vrot.lane.b32.xlu0 %v78, 4
  %v681 = vpop.permute.xlu0 %680
  %682 = vrot.lane.b32.xlu0 %v79, 4
  %v683 = vpop.permute.xlu0 %682
  %684 = vrot.lane.b32.xlu0 %v80, 4
  %v685 = vpop.permute.xlu0 %684
  %686 = vrot.lane.b32.xlu0 %v81, 4
  %v687 = vpop.permute.xlu0 %686
  %688 = vrot.lane.b32.xlu0 %v82, 4
  %v689 = vpop.permute.xlu0 %688
  %690 = vrot.lane.b32.xlu0 %v83, 4
  %v691 = vpop.permute.xlu0 %690
  %692 = vrot.lane.b32.xlu0 %v84, 4
  %v693 = vpop.permute.xlu0 %692
  %694 = vrot.lane.b32.xlu0 %v85, 4
  %v695 = vpop.permute.xlu0 %694
  %696 = vrot.lane.b32.xlu0 %v86, 4
  %v697 = vpop.permute.xlu0 %696
  %698 = vrot.lane.b32.xlu0 %v87, 4
  %v699 = vpop.permute.xlu0 %698
  %790 = vrot.lane.b32.xlu0 %v421, 8
  %v791 = vpop.permute.xlu0 %790
  %792 = vrot.lane.b32.xlu0 %v548, 8
  %v793 = vpop.permute.xlu0 %792
  %794 = vrot.lane.b32.xlu0 %v423, 8
  %v795 = vpop.permute.xlu0 %794
  %796 = vrot.lane.b32.xlu0 %v549, 8
  %v797 = vpop.permute.xlu0 %796
  %798 = vrot.lane.b32.xlu0 %v425, 8
  %v799 = vpop.permute.xlu0 %798
  %800 = vrot.lane.b32.xlu0 %v550, 8
  %v801 = vpop.permute.xlu0 %800
  %802 = vrot.lane.b32.xlu0 %v427, 8
  %v803 = vpop.permute.xlu0 %802
  %804 = vrot.lane.b32.xlu0 %v551, 8
  %v805 = vpop.permute.xlu0 %804
  %806 = vrot.lane.b32.xlu0 %v429, 8
  %v807 = vpop.permute.xlu0 %806
  %808 = vrot.lane.b32.xlu0 %v552, 8
  %v809 = vpop.permute.xlu0 %808
  %810 = vrot.lane.b32.xlu0 %v431, 8
  %v811 = vpop.permute.xlu0 %810
  %812 = vrot.lane.b32.xlu0 %v553, 8
  %v813 = vpop.permute.xlu0 %812
  %814 = vrot.lane.b32.xlu0 %v433, 8
  %v815 = vpop.permute.xlu0 %814
  %816 = vrot.lane.b32.xlu0 %v554, 8
  %v817 = vpop.permute.xlu0 %816
  %818 = vrot.lane.b32.xlu0 %v435, 8
  %v819 = vpop.permute.xlu0 %818
  %820 = vrot.lane.b32.xlu0 %v555, 8
  %v821 = vpop.permute.xlu0 %820
  %822 = vrot.lane.b32.xlu0 %v437, 8
  %v823 = vpop.permute.xlu0 %822
  %824 = vrot.lane.b32.xlu0 %v556, 8
  %v825 = vpop.permute.xlu0 %824
  %826 = vrot.lane.b32.xlu0 %v439, 8
  %v827 = vpop.permute.xlu0 %826
  %828 = vrot.lane.b32.xlu0 %v557, 8
  %v829 = vpop.permute.xlu0 %828
  %830 = vrot.lane.b32.xlu0 %v441, 8
  %v831 = vpop.permute.xlu0 %830
  %832 = vrot.lane.b32.xlu0 %v558, 8
  %v833 = vpop.permute.xlu0 %832
  %834 = vrot.lane.b32.xlu0 %v443, 8
  %v835 = vpop.permute.xlu0 %834
  %836 = vrot.lane.b32.xlu0 %v559, 8
  %v837 = vpop.permute.xlu0 %836
  %838 = vrot.lane.b32.xlu0 %v445, 8
  %v839 = vpop.permute.xlu0 %838
  %840 = vrot.lane.b32.xlu0 %v560, 8
  %v841 = vpop.permute.xlu0 %840
  %842 = vrot.lane.b32.xlu0 %v447, 8
  %v843 = vpop.permute.xlu0 %842
  %844 = vrot.lane.b32.xlu0 %v561, 8
  %v845 = vpop.permute.xlu0 %844
  %846 = vrot.lane.b32.xlu0 %v449, 8
  %v847 = vpop.permute.xlu0 %846
  %848 = vrot.lane.b32.xlu0 %v562, 8
  %v849 = vpop.permute.xlu0 %848
  %850 = vrot.lane.b32.xlu0 %v453, 8
  %v851 = vpop.permute.xlu0 %850
  %852 = vrot.lane.b32.xlu0 %v564, 8
  %v853 = vpop.permute.xlu0 %852
  %854 = vrot.lane.b32.xlu0 %v455, 8
  %v855 = vpop.permute.xlu0 %854
  %856 = vrot.lane.b32.xlu0 %v565, 8
  %v857 = vpop.permute.xlu0 %856
  %858 = vrot.lane.b32.xlu0 %v457, 8
  %v859 = vpop.permute.xlu0 %858
  %860 = vrot.lane.b32.xlu0 %v566, 8
  %v861 = vpop.permute.xlu0 %860
  %862 = vrot.lane.b32.xlu0 %v459, 8
  %v863 = vpop.permute.xlu0 %862
  %864 = vrot.lane.b32.xlu0 %v567, 8
  %v865 = vpop.permute.xlu0 %864
  %866 = vrot.lane.b32.xlu0 %v461, 8
  %v867 = vpop.permute.xlu0 %866
  %868 = vrot.lane.b32.xlu0 %v568, 8
  %v869 = vpop.permute.xlu0 %868
  %870 = vrot.lane.b32.xlu0 %v463, 8
  %v871 = vpop.permute.xlu0 %870
  %872 = vrot.lane.b32.xlu0 %v569, 8
  %v873 = vpop.permute.xlu0 %872
  %874 = vrot.lane.b32.xlu0 %v465, 8
  %v875 = vpop.permute.xlu0 %874
  %876 = vrot.lane.b32.xlu0 %v570, 8
  %v877 = vpop.permute.xlu0 %876
  %878 = vrot.lane.b32.xlu0 %v467, 8
  %v879 = vpop.permute.xlu0 %878
  %880 = vrot.lane.b32.xlu0 %v571, 8
  %v881 = vpop.permute.xlu0 %880
  %882 = vrot.lane.b32.xlu0 %v469, 8
  %v883 = vpop.permute.xlu0 %882
  %884 = vrot.lane.b32.xlu0 %v572, 8
  %v885 = vpop.permute.xlu0 %884
  %886 = vrot.lane.b32.xlu0 %v471, 8
  %v887 = vpop.permute.xlu0 %886
  %888 = vrot.lane.b32.xlu0 %v573, 8
  %v889 = vpop.permute.xlu0 %888
  %890 = vrot.lane.b32.xlu0 %v473, 8
  %v891 = vpop.permute.xlu0 %890
  %892 = vrot.lane.b32.xlu0 %v574, 8
  %v893 = vpop.permute.xlu0 %892
  %894 = vrot.lane.b32.xlu0 %v475, 8
  %v895 = vpop.permute.xlu0 %894
  %896 = vrot.lane.b32.xlu0 %v575, 8
  %v897 = vpop.permute.xlu0 %896
  %898 = vrot.lane.b32.xlu0 %v477, 8
  %v899 = vpop.permute.xlu0 %898
  %900 = vrot.lane.b32.xlu0 %v576, 8
  %v901 = vpop.permute.xlu0 %900
  %902 = vrot.lane.b32.xlu0 %v479, 8
  %v903 = vpop.permute.xlu0 %902
  %904 = vrot.lane.b32.xlu0 %v577, 8
  %v905 = vpop.permute.xlu0 %904
  %906 = vrot.lane.b32.xlu0 %v481, 8
  %v907 = vpop.permute.xlu0 %906
  %908 = vrot.lane.b32.xlu0 %v578, 8
  %v909 = vpop.permute.xlu0 %908
  %1002 = vrot.lane.b32.xlu0 %v388, 12
  %v1003 = vpop.permute.xlu0 %1002
  %1004 = vrot.lane.b32.xlu0 %v234, 12
  %v1005 = vpop.permute.xlu0 %1004
  %1006 = vrot.lane.b32.xlu0 %v387, 12
  %v1007 = vpop.permute.xlu0 %1006
  %1008 = vrot.lane.b32.xlu0 %v231, 12
  %v1009 = vpop.permute.xlu0 %1008
  %1010 = vrot.lane.b32.xlu0 %v389, 12
  %v1011 = vpop.permute.xlu0 %1010
  %1012 = vrot.lane.b32.xlu0 %v237, 12
  %v1013 = vpop.permute.xlu0 %1012
  %1014 = vrot.lane.b32.xlu0 %v390, 12
  %v1015 = vpop.permute.xlu0 %1014
  %1016 = vrot.lane.b32.xlu0 %v240, 12
  %v1017 = vpop.permute.xlu0 %1016
  %1018 = vrot.lane.b32.xlu0 %v391, 12
  %v1019 = vpop.permute.xlu0 %1018
  %1020 = vrot.lane.b32.xlu0 %v243, 12
  %v1021 = vpop.permute.xlu0 %1020
  %1022 = vrot.lane.b32.xlu0 %v392, 12
  %v1023 = vpop.permute.xlu0 %1022
  %1024 = vrot.lane.b32.xlu0 %v246, 12
  %v1025 = vpop.permute.xlu0 %1024
  %1026 = vrot.lane.b32.xlu0 %v393, 12
  %v1027 = vpop.permute.xlu0 %1026
  %1028 = vrot.lane.b32.xlu0 %v249, 12
  %v1029 = vpop.permute.xlu0 %1028
  %1030 = vrot.lane.b32.xlu0 %v394, 12
  %v1031 = vpop.permute.xlu0 %1030
  %1032 = vrot.lane.b32.xlu0 %v252, 12
  %v1033 = vpop.permute.xlu0 %1032
  %1034 = vrot.lane.b32.xlu0 %v395, 12
  %v1035 = vpop.permute.xlu0 %1034
  %1036 = vrot.lane.b32.xlu0 %v255, 12
  %v1037 = vpop.permute.xlu0 %1036
  %1038 = vrot.lane.b32.xlu0 %v396, 12
  %v1039 = vpop.permute.xlu0 %1038
  %1040 = vrot.lane.b32.xlu0 %v258, 12
  %v1041 = vpop.permute.xlu0 %1040
  %1042 = vrot.lane.b32.xlu0 %v397, 12
  %v1043 = vpop.permute.xlu0 %1042
  %1044 = vrot.lane.b32.xlu0 %v261, 12
  %v1045 = vpop.permute.xlu0 %1044
  %1046 = vrot.lane.b32.xlu0 %v398, 12
  %v1047 = vpop.permute.xlu0 %1046
  %1048 = vrot.lane.b32.xlu0 %v264, 12
  %v1049 = vpop.permute.xlu0 %1048
  %1050 = vrot.lane.b32.xlu0 %v399, 12
  %v1051 = vpop.permute.xlu0 %1050
  %1052 = vrot.lane.b32.xlu0 %v267, 12
  %v1053 = vpop.permute.xlu0 %1052
  %1054 = vrot.lane.b32.xlu0 %v400, 12
  %v1055 = vpop.permute.xlu0 %1054
  %1056 = vrot.lane.b32.xlu0 %v270, 12
  %v1057 = vpop.permute.xlu0 %1056
  %1058 = vrot.lane.b32.xlu0 %v401, 12
  %v1059 = vpop.permute.xlu0 %1058
  %1060 = vrot.lane.b32.xlu0 %v273, 12
  %v1061 = vpop.permute.xlu0 %1060
  %1062 = vrot.lane.b32.xlu0 %v402, 12
  %v1063 = vpop.permute.xlu0 %1062
  %1064 = vrot.lane.b32.xlu0 %v276, 12
  %v1065 = vpop.permute.xlu0 %1064
  %1066 = vrot.lane.b32.xlu0 %v404, 12
  %v1067 = vpop.permute.xlu0 %1066
  %1068 = vrot.lane.b32.xlu0 %v282, 12
  %v1069 = vpop.permute.xlu0 %1068
  %1070 = vrot.lane.b32.xlu0 %v403, 12
  %v1071 = vpop.permute.xlu0 %1070
  %1072 = vrot.lane.b32.xlu0 %v279, 12
  %v1073 = vpop.permute.xlu0 %1072
  %1074 = vrot.lane.b32.xlu0 %v405, 12
  %v1075 = vpop.permute.xlu0 %1074
  %1076 = vrot.lane.b32.xlu0 %v285, 12
  %v1077 = vpop.permute.xlu0 %1076
  %1078 = vrot.lane.b32.xlu0 %v406, 12
  %v1079 = vpop.permute.xlu0 %1078
  %1080 = vrot.lane.b32.xlu0 %v288, 12
  %v1081 = vpop.permute.xlu0 %1080
  %1082 = vrot.lane.b32.xlu0 %v407, 12
  %v1083 = vpop.permute.xlu0 %1082
  %1084 = vrot.lane.b32.xlu0 %v291, 12
  %v1085 = vpop.permute.xlu0 %1084
  %1086 = vrot.lane.b32.xlu0 %v408, 12
  %v1087 = vpop.permute.xlu0 %1086
  %1088 = vrot.lane.b32.xlu0 %v294, 12
  %v1089 = vpop.permute.xlu0 %1088
  %1090 = vrot.lane.b32.xlu0 %v409, 12
  %v1091 = vpop.permute.xlu0 %1090
  %1092 = vrot.lane.b32.xlu0 %v297, 12
  %v1093 = vpop.permute.xlu0 %1092
  %1094 = vrot.lane.b32.xlu0 %v410, 12
  %v1095 = vpop.permute.xlu0 %1094
  %1096 = vrot.lane.b32.xlu0 %v300, 12
  %v1097 = vpop.permute.xlu0 %1096
  %1098 = vrot.lane.b32.xlu0 %v411, 12
  %v1099 = vpop.permute.xlu0 %1098
  %1100 = vrot.lane.b32.xlu0 %v303, 12
  %v1101 = vpop.permute.xlu0 %1100
  %1102 = vrot.lane.b32.xlu0 %v412, 12
  %v1103 = vpop.permute.xlu0 %1102
  %1104 = vrot.lane.b32.xlu0 %v306, 12
  %v1105 = vpop.permute.xlu0 %1104
  %1106 = vrot.lane.b32.xlu0 %v413, 12
  %v1107 = vpop.permute.xlu0 %1106
  %1108 = vrot.lane.b32.xlu0 %v309, 12
  %v1109 = vpop.permute.xlu0 %1108
  %1110 = vrot.lane.b32.xlu0 %v414, 12
  %v1111 = vpop.permute.xlu0 %1110
  %1112 = vrot.lane.b32.xlu0 %v312, 12
  %v1113 = vpop.permute.xlu0 %1112
  %1114 = vrot.lane.b32.xlu0 %v415, 12
  %v1115 = vpop.permute.xlu0 %1114
  %1116 = vrot.lane.b32.xlu0 %v315, 12
  %v1117 = vpop.permute.xlu0 %1116
  %1118 = vrot.lane.b32.xlu0 %v416, 12
  %v1119 = vpop.permute.xlu0 %1118
  %1120 = vrot.lane.b32.xlu0 %v318, 12
  %v1121 = vpop.permute.xlu0 %1120
  %1122 = vrot.lane.b32.xlu0 %v417, 12
  %v1123 = vpop.permute.xlu0 %1122
  %1124 = vrot.lane.b32.xlu0 %v321, 12
  %v1125 = vpop.permute.xlu0 %1124
  %1126 = vrot.lane.b32.xlu0 %v418, 12
  %v1127 = vpop.permute.xlu0 %1126
  %1128 = vrot.lane.b32.xlu0 %v324, 12
  %v1129 = vpop.permute.xlu0 %1128
  %1194 = vrot.lane.b32.xlu0 %v26, 16
  %v1195 = vpop.permute.xlu0 %1194
  %1196 = vrot.lane.b32.xlu0 %v27, 16
  %v1197 = vpop.permute.xlu0 %1196
  %1198 = vrot.lane.b32.xlu0 %v28, 16
  %v1199 = vpop.permute.xlu0 %1198
  %1200 = vrot.lane.b32.xlu0 %v29, 16
  %v1201 = vpop.permute.xlu0 %1200
  %1202 = vrot.lane.b32.xlu0 %v30, 16
  %v1203 = vpop.permute.xlu0 %1202
  %1204 = vrot.lane.b32.xlu0 %v31, 16
  %v1205 = vpop.permute.xlu0 %1204
  %1206 = vrot.lane.b32.xlu0 %v32, 16
  %v1207 = vpop.permute.xlu0 %1206
  %1208 = vrot.lane.b32.xlu0 %v33, 16
  %v1209 = vpop.permute.xlu0 %1208
  %1210 = vrot.lane.b32.xlu0 %v34, 16
  %v1211 = vpop.permute.xlu0 %1210
  %1212 = vrot.lane.b32.xlu0 %v35, 16
  %v1213 = vpop.permute.xlu0 %1212
  %1214 = vrot.lane.b32.xlu0 %v36, 16
  %v1215 = vpop.permute.xlu0 %1214
  %1216 = vrot.lane.b32.xlu0 %v37, 16
  %v1217 = vpop.permute.xlu0 %1216
  %1218 = vrot.lane.b32.xlu0 %v38, 16
  %v1219 = vpop.permute.xlu0 %1218
  %1220 = vrot.lane.b32.xlu0 %v39, 16
  %v1221 = vpop.permute.xlu0 %1220
  %1222 = vrot.lane.b32.xlu0 %v40, 16
  %v1223 = vpop.permute.xlu0 %1222
  %1224 = vrot.lane.b32.xlu0 %v41, 16
  %v1225 = vpop.permute.xlu0 %1224
  %1226 = vrot.lane.b32.xlu0 %v42, 16
  %v1227 = vpop.permute.xlu0 %1226
  %1228 = vrot.lane.b32.xlu0 %v43, 16
  %v1229 = vpop.permute.xlu0 %1228
  %1230 = vrot.lane.b32.xlu0 %v44, 16
  %v1231 = vpop.permute.xlu0 %1230
  %1232 = vrot.lane.b32.xlu0 %v45, 16
  %v1233 = vpop.permute.xlu0 %1232
  %1234 = vrot.lane.b32.xlu0 %v46, 16
  %v1235 = vpop.permute.xlu0 %1234
  %1236 = vrot.lane.b32.xlu0 %v47, 16
  %v1237 = vpop.permute.xlu0 %1236
  %1238 = vrot.lane.b32.xlu0 %v48, 16
  %v1239 = vpop.permute.xlu0 %1238
  %1240 = vrot.lane.b32.xlu0 %v49, 16
  %v1241 = vpop.permute.xlu0 %1240
  %1242 = vrot.lane.b32.xlu0 %v50, 16
  %v1243 = vpop.permute.xlu0 %1242
  %1244 = vrot.lane.b32.xlu0 %v51, 16
  %v1245 = vpop.permute.xlu0 %1244
  %1246 = vrot.lane.b32.xlu0 %v52, 16
  %v1247 = vpop.permute.xlu0 %1246
  %1248 = vrot.lane.b32.xlu0 %v53, 16
  %v1249 = vpop.permute.xlu0 %1248
  %1250 = vrot.lane.b32.xlu0 %v54, 16
  %v1251 = vpop.permute.xlu0 %1250
  %1252 = vrot.lane.b32.xlu0 %v55, 16
  %v1253 = vpop.permute.xlu0 %1252
  %1254 = vrot.lane.b32.xlu0 %v56, 16
  %v1255 = vpop.permute.xlu0 %1254
  %1256 = vrot.lane.b32.xlu0 %v57, 16
  %v1257 = vpop.permute.xlu0 %1256
  %1258 = vrot.lane.b32.xlu0 %v58, 16
  %v1259 = vpop.permute.xlu0 %1258
  %1260 = vrot.lane.b32.xlu0 %v59, 16
  %v1261 = vpop.permute.xlu0 %1260
  %1262 = vrot.lane.b32.xlu0 %v60, 16
  %v1263 = vpop.permute.xlu0 %1262
  %1264 = vrot.lane.b32.xlu0 %v61, 16
  %v1265 = vpop.permute.xlu0 %1264
  %1266 = vrot.lane.b32.xlu0 %v62, 16
  %v1267 = vpop.permute.xlu0 %1266
  %1268 = vrot.lane.b32.xlu0 %v63, 16
  %v1269 = vpop.permute.xlu0 %1268
  %1270 = vrot.lane.b32.xlu0 %v64, 16
  %v1271 = vpop.permute.xlu0 %1270
  %1272 = vrot.lane.b32.xlu0 %v65, 16
  %v1273 = vpop.permute.xlu0 %1272
  %1274 = vrot.lane.b32.xlu0 %v66, 16
  %v1275 = vpop.permute.xlu0 %1274
  %1276 = vrot.lane.b32.xlu0 %v67, 16
  %v1277 = vpop.permute.xlu0 %1276
  %1278 = vrot.lane.b32.xlu0 %v68, 16
  %v1279 = vpop.permute.xlu0 %1278
  %1280 = vrot.lane.b32.xlu0 %v69, 16
  %v1281 = vpop.permute.xlu0 %1280
  %1282 = vrot.lane.b32.xlu0 %v70, 16
  %v1283 = vpop.permute.xlu0 %1282
  %1284 = vrot.lane.b32.xlu0 %v71, 16
  %v1285 = vpop.permute.xlu0 %1284
  %1286 = vrot.lane.b32.xlu0 %v72, 16
  %v1287 = vpop.permute.xlu0 %1286
  %1288 = vrot.lane.b32.xlu0 %v73, 16
  %v1289 = vpop.permute.xlu0 %1288
  %1290 = vrot.lane.b32.xlu0 %v74, 16
  %v1291 = vpop.permute.xlu0 %1290
  %1292 = vrot.lane.b32.xlu0 %v75, 16
  %v1293 = vpop.permute.xlu0 %1292
  %1294 = vrot.lane.b32.xlu0 %v76, 16
  %v1295 = vpop.permute.xlu0 %1294
  %1296 = vrot.lane.b32.xlu0 %v77, 16
  %v1297 = vpop.permute.xlu0 %1296
  %1298 = vrot.lane.b32.xlu0 %v78, 16
  %v1299 = vpop.permute.xlu0 %1298
  %1300 = vrot.lane.b32.xlu0 %v79, 16
  %v1301 = vpop.permute.xlu0 %1300
  %1302 = vrot.lane.b32.xlu0 %v80, 16
  %v1303 = vpop.permute.xlu0 %1302
  %1304 = vrot.lane.b32.xlu0 %v81, 16
  %v1305 = vpop.permute.xlu0 %1304
  %1306 = vrot.lane.b32.xlu0 %v82, 16
  %v1307 = vpop.permute.xlu0 %1306
  %1308 = vrot.lane.b32.xlu0 %v83, 16
  %v1309 = vpop.permute.xlu0 %1308
  %1310 = vrot.lane.b32.xlu0 %v84, 16
  %v1311 = vpop.permute.xlu0 %1310
  %1312 = vrot.lane.b32.xlu0 %v85, 16
  %v1313 = vpop.permute.xlu0 %1312
  %1314 = vrot.lane.b32.xlu0 %v86, 16
  %v1315 = vpop.permute.xlu0 %1314
  %1316 = vrot.lane.b32.xlu0 %v87, 16
  %v1317 = vpop.permute.xlu0 %1316
  %1318 = vrot.lane.b32.xlu0 %v88, 16
  %v1319 = vpop.permute.xlu0 %1318
  %1320 = vrot.lane.b32.xlu0 %v89, 16
  %v1321 = vpop.permute.xlu0 %1320
  %1388 = vrot.lane.b32.xlu0 %v423, 20
  %v1389 = vpop.permute.xlu0 %1388
  %1390 = vrot.lane.b32.xlu0 %v549, 20
  %v1391 = vpop.permute.xlu0 %1390
  %1392 = vrot.lane.b32.xlu0 %v421, 20
  %v1393 = vpop.permute.xlu0 %1392
  %1394 = vrot.lane.b32.xlu0 %v548, 20
  %v1395 = vpop.permute.xlu0 %1394
  %1396 = vrot.lane.b32.xlu0 %v425, 20
  %v1397 = vpop.permute.xlu0 %1396
  %1398 = vrot.lane.b32.xlu0 %v550, 20
  %v1399 = vpop.permute.xlu0 %1398
  %1400 = vrot.lane.b32.xlu0 %v427, 20
  %v1401 = vpop.permute.xlu0 %1400
  %1402 = vrot.lane.b32.xlu0 %v551, 20
  %v1403 = vpop.permute.xlu0 %1402
  %1404 = vrot.lane.b32.xlu0 %v429, 20
  %v1405 = vpop.permute.xlu0 %1404
  %1406 = vrot.lane.b32.xlu0 %v552, 20
  %v1407 = vpop.permute.xlu0 %1406
  %1408 = vrot.lane.b32.xlu0 %v431, 20
  %v1409 = vpop.permute.xlu0 %1408
  %1410 = vrot.lane.b32.xlu0 %v553, 20
  %v1411 = vpop.permute.xlu0 %1410
  %1412 = vrot.lane.b32.xlu0 %v433, 20
  %v1413 = vpop.permute.xlu0 %1412
  %1414 = vrot.lane.b32.xlu0 %v554, 20
  %v1415 = vpop.permute.xlu0 %1414
  %1416 = vrot.lane.b32.xlu0 %v435, 20
  %v1417 = vpop.permute.xlu0 %1416
  %1418 = vrot.lane.b32.xlu0 %v555, 20
  %v1419 = vpop.permute.xlu0 %1418
  %1420 = vrot.lane.b32.xlu0 %v437, 20
  %v1421 = vpop.permute.xlu0 %1420
  %1422 = vrot.lane.b32.xlu0 %v556, 20
  %v1423 = vpop.permute.xlu0 %1422
  %1424 = vrot.lane.b32.xlu0 %v439, 20
  %v1425 = vpop.permute.xlu0 %1424
  %1426 = vrot.lane.b32.xlu0 %v557, 20
  %v1427 = vpop.permute.xlu0 %1426
  %1428 = vrot.lane.b32.xlu0 %v441, 20
  %v1429 = vpop.permute.xlu0 %1428
  %1430 = vrot.lane.b32.xlu0 %v558, 20
  %v1431 = vpop.permute.xlu0 %1430
  %1432 = vrot.lane.b32.xlu0 %v443, 20
  %v1433 = vpop.permute.xlu0 %1432
  %1434 = vrot.lane.b32.xlu0 %v559, 20
  %v1435 = vpop.permute.xlu0 %1434
  %1436 = vrot.lane.b32.xlu0 %v445, 20
  %v1437 = vpop.permute.xlu0 %1436
  %1438 = vrot.lane.b32.xlu0 %v560, 20
  %v1439 = vpop.permute.xlu0 %1438
  %1440 = vrot.lane.b32.xlu0 %v447, 20
  %v1441 = vpop.permute.xlu0 %1440
  %1442 = vrot.lane.b32.xlu0 %v561, 20
  %v1443 = vpop.permute.xlu0 %1442
  %1444 = vrot.lane.b32.xlu0 %v449, 20
  %v1445 = vpop.permute.xlu0 %1444
  %1446 = vrot.lane.b32.xlu0 %v562, 20
  %v1447 = vpop.permute.xlu0 %1446
  %1448 = vrot.lane.b32.xlu0 %v451, 20
  %v1449 = vpop.permute.xlu0 %1448
  %1450 = vrot.lane.b32.xlu0 %v563, 20
  %v1451 = vpop.permute.xlu0 %1450
  %1452 = vrot.lane.b32.xlu0 %v455, 20
  %v1453 = vpop.permute.xlu0 %1452
  %1454 = vrot.lane.b32.xlu0 %v565, 20
  %v1455 = vpop.permute.xlu0 %1454
  %1456 = vrot.lane.b32.xlu0 %v453, 20
  %v1457 = vpop.permute.xlu0 %1456
  %1458 = vrot.lane.b32.xlu0 %v564, 20
  %v1459 = vpop.permute.xlu0 %1458
  %1460 = vrot.lane.b32.xlu0 %v457, 20
  %v1461 = vpop.permute.xlu0 %1460
  %1462 = vrot.lane.b32.xlu0 %v566, 20
  %v1463 = vpop.permute.xlu0 %1462
  %1464 = vrot.lane.b32.xlu0 %v459, 20
  %v1465 = vpop.permute.xlu0 %1464
  %1466 = vrot.lane.b32.xlu0 %v567, 20
  %v1467 = vpop.permute.xlu0 %1466
  %1468 = vrot.lane.b32.xlu0 %v461, 20
  %v1469 = vpop.permute.xlu0 %1468
  %1470 = vrot.lane.b32.xlu0 %v568, 20
  %v1471 = vpop.permute.xlu0 %1470
  %1472 = vrot.lane.b32.xlu0 %v463, 20
  %v1473 = vpop.permute.xlu0 %1472
  %1474 = vrot.lane.b32.xlu0 %v569, 20
  %v1475 = vpop.permute.xlu0 %1474
  %1476 = vrot.lane.b32.xlu0 %v465, 20
  %v1477 = vpop.permute.xlu0 %1476
  %1478 = vrot.lane.b32.xlu0 %v570, 20
  %v1479 = vpop.permute.xlu0 %1478
  %1480 = vrot.lane.b32.xlu0 %v467, 20
  %v1481 = vpop.permute.xlu0 %1480
  %1482 = vrot.lane.b32.xlu0 %v571, 20
  %v1483 = vpop.permute.xlu0 %1482
  %1484 = vrot.lane.b32.xlu0 %v469, 20
  %v1485 = vpop.permute.xlu0 %1484
  %1486 = vrot.lane.b32.xlu0 %v572, 20
  %v1487 = vpop.permute.xlu0 %1486
  %1488 = vrot.lane.b32.xlu0 %v471, 20
  %v1489 = vpop.permute.xlu0 %1488
  %1490 = vrot.lane.b32.xlu0 %v573, 20
  %v1491 = vpop.permute.xlu0 %1490
  %1492 = vrot.lane.b32.xlu0 %v473, 20
  %v1493 = vpop.permute.xlu0 %1492
  %1494 = vrot.lane.b32.xlu0 %v574, 20
  %v1495 = vpop.permute.xlu0 %1494
  %1496 = vrot.lane.b32.xlu0 %v475, 20
  %v1497 = vpop.permute.xlu0 %1496
  %1498 = vrot.lane.b32.xlu0 %v575, 20
  %v1499 = vpop.permute.xlu0 %1498
  %1500 = vrot.lane.b32.xlu0 %v477, 20
  %v1501 = vpop.permute.xlu0 %1500
  %1502 = vrot.lane.b32.xlu0 %v576, 20
  %v1503 = vpop.permute.xlu0 %1502
  %1504 = vrot.lane.b32.xlu0 %v479, 20
  %v1505 = vpop.permute.xlu0 %1504
  %1506 = vrot.lane.b32.xlu0 %v577, 20
  %v1507 = vpop.permute.xlu0 %1506
  %1508 = vrot.lane.b32.xlu0 %v481, 20
  %v1509 = vpop.permute.xlu0 %1508
  %1510 = vrot.lane.b32.xlu0 %v578, 20
  %v1511 = vpop.permute.xlu0 %1510
  %1512 = vrot.lane.b32.xlu0 %v483, 20
  %v1513 = vpop.permute.xlu0 %1512
  %1514 = vrot.lane.b32.xlu0 %v579, 20
  %v1515 = vpop.permute.xlu0 %1514
  %1580 = vrot.lane.b32.xlu0 %v387, 24
  %v1581 = vpop.permute.xlu0 %1580
  %1582 = vrot.lane.b32.xlu0 %v231, 24
  %v1583 = vpop.permute.xlu0 %1582
  %1584 = vrot.lane.b32.xlu0 %v389, 24
  %v1585 = vpop.permute.xlu0 %1584
  %1586 = vrot.lane.b32.xlu0 %v237, 24
  %v1587 = vpop.permute.xlu0 %1586
  %1588 = vrot.lane.b32.xlu0 %v390, 24
  %v1589 = vpop.permute.xlu0 %1588
  %1590 = vrot.lane.b32.xlu0 %v240, 24
  %v1591 = vpop.permute.xlu0 %1590
  %1592 = vrot.lane.b32.xlu0 %v391, 24
  %v1593 = vpop.permute.xlu0 %1592
  %1594 = vrot.lane.b32.xlu0 %v243, 24
  %v1595 = vpop.permute.xlu0 %1594
  %1596 = vrot.lane.b32.xlu0 %v392, 24
  %v1597 = vpop.permute.xlu0 %1596
  %1598 = vrot.lane.b32.xlu0 %v246, 24
  %v1599 = vpop.permute.xlu0 %1598
  %1600 = vrot.lane.b32.xlu0 %v393, 24
  %v1601 = vpop.permute.xlu0 %1600
  %1602 = vrot.lane.b32.xlu0 %v249, 24
  %v1603 = vpop.permute.xlu0 %1602
  %1604 = vrot.lane.b32.xlu0 %v394, 24
  %v1605 = vpop.permute.xlu0 %1604
  %1606 = vrot.lane.b32.xlu0 %v252, 24
  %v1607 = vpop.permute.xlu0 %1606
  %1608 = vrot.lane.b32.xlu0 %v395, 24
  %v1609 = vpop.permute.xlu0 %1608
  %1610 = vrot.lane.b32.xlu0 %v255, 24
  %v1611 = vpop.permute.xlu0 %1610
  %1612 = vrot.lane.b32.xlu0 %v396, 24
  %v1613 = vpop.permute.xlu0 %1612
  %1614 = vrot.lane.b32.xlu0 %v258, 24
  %v1615 = vpop.permute.xlu0 %1614
  %1616 = vrot.lane.b32.xlu0 %v397, 24
  %v1617 = vpop.permute.xlu0 %1616
  %1618 = vrot.lane.b32.xlu0 %v261, 24
  %v1619 = vpop.permute.xlu0 %1618
  %1620 = vrot.lane.b32.xlu0 %v398, 24
  %v1621 = vpop.permute.xlu0 %1620
  %1622 = vrot.lane.b32.xlu0 %v264, 24
  %v1623 = vpop.permute.xlu0 %1622
  %1624 = vrot.lane.b32.xlu0 %v399, 24
  %v1625 = vpop.permute.xlu0 %1624
  %1626 = vrot.lane.b32.xlu0 %v267, 24
  %v1627 = vpop.permute.xlu0 %1626
  %1628 = vrot.lane.b32.xlu0 %v400, 24
  %v1629 = vpop.permute.xlu0 %1628
  %1630 = vrot.lane.b32.xlu0 %v270, 24
  %v1631 = vpop.permute.xlu0 %1630
  %1632 = vrot.lane.b32.xlu0 %v401, 24
  %v1633 = vpop.permute.xlu0 %1632
  %1634 = vrot.lane.b32.xlu0 %v273, 24
  %v1635 = vpop.permute.xlu0 %1634
  %1636 = vrot.lane.b32.xlu0 %v402, 24
  %v1637 = vpop.permute.xlu0 %1636
  %1638 = vrot.lane.b32.xlu0 %v276, 24
  %v1639 = vpop.permute.xlu0 %1638
  %1640 = vrot.lane.b32.xlu0 %v403, 24
  %v1641 = vpop.permute.xlu0 %1640
  %1642 = vrot.lane.b32.xlu0 %v279, 24
  %v1643 = vpop.permute.xlu0 %1642
  %1644 = vrot.lane.b32.xlu0 %v405, 24
  %v1645 = vpop.permute.xlu0 %1644
  %1646 = vrot.lane.b32.xlu0 %v285, 24
  %v1647 = vpop.permute.xlu0 %1646
  %1648 = vrot.lane.b32.xlu0 %v406, 24
  %v1649 = vpop.permute.xlu0 %1648
  %1650 = vrot.lane.b32.xlu0 %v288, 24
  %v1651 = vpop.permute.xlu0 %1650
  %1652 = vrot.lane.b32.xlu0 %v407, 24
  %v1653 = vpop.permute.xlu0 %1652
  %1654 = vrot.lane.b32.xlu0 %v291, 24
  %v1655 = vpop.permute.xlu0 %1654
  %1656 = vrot.lane.b32.xlu0 %v408, 24
  %v1657 = vpop.permute.xlu0 %1656
  %1658 = vrot.lane.b32.xlu0 %v294, 24
  %v1659 = vpop.permute.xlu0 %1658
  %1660 = vrot.lane.b32.xlu0 %v409, 24
  %v1661 = vpop.permute.xlu0 %1660
  %1662 = vrot.lane.b32.xlu0 %v297, 24
  %v1663 = vpop.permute.xlu0 %1662
  %1664 = vrot.lane.b32.xlu0 %v410, 24
  %v1665 = vpop.permute.xlu0 %1664
  %1666 = vrot.lane.b32.xlu0 %v300, 24
  %v1667 = vpop.permute.xlu0 %1666
  %1668 = vrot.lane.b32.xlu0 %v411, 24
  %v1669 = vpop.permute.xlu0 %1668
  %1670 = vrot.lane.b32.xlu0 %v303, 24
  %v1671 = vpop.permute.xlu0 %1670
  %1672 = vrot.lane.b32.xlu0 %v412, 24
  %v1673 = vpop.permute.xlu0 %1672
  %1674 = vrot.lane.b32.xlu0 %v306, 24
  %v1675 = vpop.permute.xlu0 %1674
  %1676 = vrot.lane.b32.xlu0 %v413, 24
  %v1677 = vpop.permute.xlu0 %1676
  %1678 = vrot.lane.b32.xlu0 %v309, 24
  %v1679 = vpop.permute.xlu0 %1678
  %1680 = vrot.lane.b32.xlu0 %v414, 24
  %v1681 = vpop.permute.xlu0 %1680
  %1682 = vrot.lane.b32.xlu0 %v312, 24
  %v1683 = vpop.permute.xlu0 %1682
  %1684 = vrot.lane.b32.xlu0 %v415, 24
  %v1685 = vpop.permute.xlu0 %1684
  %1686 = vrot.lane.b32.xlu0 %v315, 24
  %v1687 = vpop.permute.xlu0 %1686
  %1688 = vrot.lane.b32.xlu0 %v416, 24
  %v1689 = vpop.permute.xlu0 %1688
  %1690 = vrot.lane.b32.xlu0 %v318, 24
  %v1691 = vpop.permute.xlu0 %1690
  %1692 = vrot.lane.b32.xlu0 %v417, 24
  %v1693 = vpop.permute.xlu0 %1692
  %1694 = vrot.lane.b32.xlu0 %v321, 24
  %v1695 = vpop.permute.xlu0 %1694
  %1696 = vrot.lane.b32.xlu0 %v418, 24
  %v1697 = vpop.permute.xlu0 %1696
  %1698 = vrot.lane.b32.xlu0 %v324, 24
  %v1699 = vpop.permute.xlu0 %1698
  %1760 = vrot.lane.b32.xlu0 %v28, 28
  %v1761 = vpop.permute.xlu0 %1760
  %1762 = vrot.lane.b32.xlu0 %v29, 28
  %v1763 = vpop.permute.xlu0 %1762
  %1764 = vrot.lane.b32.xlu0 %v30, 28
  %v1765 = vpop.permute.xlu0 %1764
  %1766 = vrot.lane.b32.xlu0 %v31, 28
  %v1767 = vpop.permute.xlu0 %1766
  %1768 = vrot.lane.b32.xlu0 %v32, 28
  %v1769 = vpop.permute.xlu0 %1768
  %1770 = vrot.lane.b32.xlu0 %v33, 28
  %v1771 = vpop.permute.xlu0 %1770
  %1772 = vrot.lane.b32.xlu0 %v34, 28
  %v1773 = vpop.permute.xlu0 %1772
  %1774 = vrot.lane.b32.xlu0 %v35, 28
  %v1775 = vpop.permute.xlu0 %1774
  %1776 = vrot.lane.b32.xlu0 %v36, 28
  %v1777 = vpop.permute.xlu0 %1776
  %1778 = vrot.lane.b32.xlu0 %v37, 28
  %v1779 = vpop.permute.xlu0 %1778
  %1780 = vrot.lane.b32.xlu0 %v38, 28
  %v1781 = vpop.permute.xlu0 %1780
  %1782 = vrot.lane.b32.xlu0 %v39, 28
  %v1783 = vpop.permute.xlu0 %1782
  %1784 = vrot.lane.b32.xlu0 %v40, 28
  %v1785 = vpop.permute.xlu0 %1784
  %1786 = vrot.lane.b32.xlu0 %v41, 28
  %v1787 = vpop.permute.xlu0 %1786
  %1788 = vrot.lane.b32.xlu0 %v42, 28
  %v1789 = vpop.permute.xlu0 %1788
  %1790 = vrot.lane.b32.xlu0 %v43, 28
  %v1791 = vpop.permute.xlu0 %1790
  %1792 = vrot.lane.b32.xlu0 %v44, 28
  %v1793 = vpop.permute.xlu0 %1792
  %1794 = vrot.lane.b32.xlu0 %v45, 28
  %v1795 = vpop.permute.xlu0 %1794
  %1796 = vrot.lane.b32.xlu0 %v46, 28
  %v1797 = vpop.permute.xlu0 %1796
  %1798 = vrot.lane.b32.xlu0 %v47, 28
  %v1799 = vpop.permute.xlu0 %1798
  %1800 = vrot.lane.b32.xlu0 %v48, 28
  %v1801 = vpop.permute.xlu0 %1800
  %1802 = vrot.lane.b32.xlu0 %v49, 28
  %v1803 = vpop.permute.xlu0 %1802
  %1804 = vrot.lane.b32.xlu0 %v50, 28
  %v1805 = vpop.permute.xlu0 %1804
  %1806 = vrot.lane.b32.xlu0 %v51, 28
  %v1807 = vpop.permute.xlu0 %1806
  %1808 = vrot.lane.b32.xlu0 %v52, 28
  %v1809 = vpop.permute.xlu0 %1808
  %1810 = vrot.lane.b32.xlu0 %v53, 28
  %v1811 = vpop.permute.xlu0 %1810
  %1812 = vrot.lane.b32.xlu0 %v54, 28
  %v1813 = vpop.permute.xlu0 %1812
  %1814 = vrot.lane.b32.xlu0 %v55, 28
  %v1815 = vpop.permute.xlu0 %1814
  %1816 = vrot.lane.b32.xlu0 %v56, 28
  %v1817 = vpop.permute.xlu0 %1816
  %1818 = vrot.lane.b32.xlu0 %v57, 28
  %v1819 = vpop.permute.xlu0 %1818
  %1820 = vrot.lane.b32.xlu0 %v60, 28
  %v1821 = vpop.permute.xlu0 %1820
  %1822 = vrot.lane.b32.xlu0 %v61, 28
  %v1823 = vpop.permute.xlu0 %1822
  %1824 = vrot.lane.b32.xlu0 %v62, 28
  %v1825 = vpop.permute.xlu0 %1824
  %1826 = vrot.lane.b32.xlu0 %v63, 28
  %v1827 = vpop.permute.xlu0 %1826
  %1828 = vrot.lane.b32.xlu0 %v64, 28
  %v1829 = vpop.permute.xlu0 %1828
  %1830 = vrot.lane.b32.xlu0 %v65, 28
  %v1831 = vpop.permute.xlu0 %1830
  %1832 = vrot.lane.b32.xlu0 %v66, 28
  %v1833 = vpop.permute.xlu0 %1832
  %1834 = vrot.lane.b32.xlu0 %v67, 28
  %v1835 = vpop.permute.xlu0 %1834
  %1836 = vrot.lane.b32.xlu0 %v68, 28
  %v1837 = vpop.permute.xlu0 %1836
  %1838 = vrot.lane.b32.xlu0 %v69, 28
  %v1839 = vpop.permute.xlu0 %1838
  %1840 = vrot.lane.b32.xlu0 %v70, 28
  %v1841 = vpop.permute.xlu0 %1840
  %1842 = vrot.lane.b32.xlu0 %v71, 28
  %v1843 = vpop.permute.xlu0 %1842
  %1844 = vrot.lane.b32.xlu0 %v72, 28
  %v1845 = vpop.permute.xlu0 %1844
  %1846 = vrot.lane.b32.xlu0 %v73, 28
  %v1847 = vpop.permute.xlu0 %1846
  %1848 = vrot.lane.b32.xlu0 %v74, 28
  %v1849 = vpop.permute.xlu0 %1848
  %1850 = vrot.lane.b32.xlu0 %v75, 28
  %v1851 = vpop.permute.xlu0 %1850
  %1852 = vrot.lane.b32.xlu0 %v76, 28
  %v1853 = vpop.permute.xlu0 %1852
  %1854 = vrot.lane.b32.xlu0 %v77, 28
  %v1855 = vpop.permute.xlu0 %1854
  %1856 = vrot.lane.b32.xlu0 %v78, 28
  %v1857 = vpop.permute.xlu0 %1856
  %1858 = vrot.lane.b32.xlu0 %v79, 28
  %v1859 = vpop.permute.xlu0 %1858
  %1860 = vrot.lane.b32.xlu0 %v80, 28
  %v1861 = vpop.permute.xlu0 %1860
  %1862 = vrot.lane.b32.xlu0 %v81, 28
  %v1863 = vpop.permute.xlu0 %1862
  %1864 = vrot.lane.b32.xlu0 %v82, 28
  %v1865 = vpop.permute.xlu0 %1864
  %1866 = vrot.lane.b32.xlu0 %v83, 28
  %v1867 = vpop.permute.xlu0 %1866
  %1868 = vrot.lane.b32.xlu0 %v84, 28
  %v1869 = vpop.permute.xlu0 %1868
  %1870 = vrot.lane.b32.xlu0 %v85, 28
  %v1871 = vpop.permute.xlu0 %1870
  %1872 = vrot.lane.b32.xlu0 %v86, 28
  %v1873 = vpop.permute.xlu0 %1872
  %1874 = vrot.lane.b32.xlu0 %v87, 28
  %v1875 = vpop.permute.xlu0 %1874
  %1876 = vrot.lane.b32.xlu0 %v88, 28
  %v1877 = vpop.permute.xlu0 %1876
  %1878 = vrot.lane.b32.xlu0 %v89, 28
  %v1879 = vpop.permute.xlu0 %1878
  %1940 = vrot.lane.b32.xlu0 %v421, 32
  %v1941 = vpop.permute.xlu0 %1940
  %1942 = vrot.lane.b32.xlu0 %v548, 32
  %v1943 = vpop.permute.xlu0 %1942
  %1944 = vrot.lane.b32.xlu0 %v425, 32
  %v1945 = vpop.permute.xlu0 %1944
  %1946 = vrot.lane.b32.xlu0 %v550, 32
  %v1947 = vpop.permute.xlu0 %1946
  %1948 = vrot.lane.b32.xlu0 %v427, 32
  %v1949 = vpop.permute.xlu0 %1948
  %1950 = vrot.lane.b32.xlu0 %v551, 32
  %v1951 = vpop.permute.xlu0 %1950
  %1952 = vrot.lane.b32.xlu0 %v429, 32
  %v1953 = vpop.permute.xlu0 %1952
  %1954 = vrot.lane.b32.xlu0 %v552, 32
  %v1955 = vpop.permute.xlu0 %1954
  %1956 = vrot.lane.b32.xlu0 %v431, 32
  %v1957 = vpop.permute.xlu0 %1956
  %1958 = vrot.lane.b32.xlu0 %v553, 32
  %v1959 = vpop.permute.xlu0 %1958
  %1960 = vrot.lane.b32.xlu0 %v433, 32
  %v1961 = vpop.permute.xlu0 %1960
  %1962 = vrot.lane.b32.xlu0 %v554, 32
  %v1963 = vpop.permute.xlu0 %1962
  %1964 = vrot.lane.b32.xlu0 %v435, 32
  %v1965 = vpop.permute.xlu0 %1964
  %1966 = vrot.lane.b32.xlu0 %v555, 32
  %v1967 = vpop.permute.xlu0 %1966
  %1968 = vrot.lane.b32.xlu0 %v437, 32
  %v1969 = vpop.permute.xlu0 %1968
  %1970 = vrot.lane.b32.xlu0 %v556, 32
  %v1971 = vpop.permute.xlu0 %1970
  %1972 = vrot.lane.b32.xlu0 %v439, 32
  %v1973 = vpop.permute.xlu0 %1972
  %1974 = vrot.lane.b32.xlu0 %v557, 32
  %v1975 = vpop.permute.xlu0 %1974
  %1976 = vrot.lane.b32.xlu0 %v441, 32
  %v1977 = vpop.permute.xlu0 %1976
  %1978 = vrot.lane.b32.xlu0 %v558, 32
  %v1979 = vpop.permute.xlu0 %1978
  %1980 = vrot.lane.b32.xlu0 %v443, 32
  %v1981 = vpop.permute.xlu0 %1980
  %1982 = vrot.lane.b32.xlu0 %v559, 32
  %v1983 = vpop.permute.xlu0 %1982
  %1984 = vrot.lane.b32.xlu0 %v445, 32
  %v1985 = vpop.permute.xlu0 %1984
  %1986 = vrot.lane.b32.xlu0 %v560, 32
  %v1987 = vpop.permute.xlu0 %1986
  %1988 = vrot.lane.b32.xlu0 %v447, 32
  %v1989 = vpop.permute.xlu0 %1988
  %1990 = vrot.lane.b32.xlu0 %v561, 32
  %v1991 = vpop.permute.xlu0 %1990
  %1992 = vrot.lane.b32.xlu0 %v449, 32
  %v1993 = vpop.permute.xlu0 %1992
  %1994 = vrot.lane.b32.xlu0 %v562, 32
  %v1995 = vpop.permute.xlu0 %1994
  %1996 = vrot.lane.b32.xlu0 %v451, 32
  %v1997 = vpop.permute.xlu0 %1996
  %1998 = vrot.lane.b32.xlu0 %v563, 32
  %v1999 = vpop.permute.xlu0 %1998
  %2000 = vrot.lane.b32.xlu0 %v453, 32
  %v2001 = vpop.permute.xlu0 %2000
  %2002 = vrot.lane.b32.xlu0 %v564, 32
  %v2003 = vpop.permute.xlu0 %2002
  %2004 = vrot.lane.b32.xlu0 %v457, 32
  %v2005 = vpop.permute.xlu0 %2004
  %2006 = vrot.lane.b32.xlu0 %v566, 32
  %v2007 = vpop.permute.xlu0 %2006
  %2008 = vrot.lane.b32.xlu0 %v459, 32
  %v2009 = vpop.permute.xlu0 %2008
  %2010 = vrot.lane.b32.xlu0 %v567, 32
  %v2011 = vpop.permute.xlu0 %2010
  %2012 = vrot.lane.b32.xlu0 %v461, 32
  %v2013 = vpop.permute.xlu0 %2012
  %2014 = vrot.lane.b32.xlu0 %v568, 32
  %v2015 = vpop.permute.xlu0 %2014
  %2016 = vrot.lane.b32.xlu0 %v463, 32
  %v2017 = vpop.permute.xlu0 %2016
  %2018 = vrot.lane.b32.xlu0 %v569, 32
  %v2019 = vpop.permute.xlu0 %2018
  %2020 = vrot.lane.b32.xlu0 %v465, 32
  %v2021 = vpop.permute.xlu0 %2020
  %2022 = vrot.lane.b32.xlu0 %v570, 32
  %v2023 = vpop.permute.xlu0 %2022
  %2024 = vrot.lane.b32.xlu0 %v467, 32
  %v2025 = vpop.permute.xlu0 %2024
  %2026 = vrot.lane.b32.xlu0 %v571, 32
  %v2027 = vpop.permute.xlu0 %2026
  %2028 = vrot.lane.b32.xlu0 %v469, 32
  %v2029 = vpop.permute.xlu0 %2028
  %2030 = vrot.lane.b32.xlu0 %v572, 32
  %v2031 = vpop.permute.xlu0 %2030
  %2032 = vrot.lane.b32.xlu0 %v471, 32
  %v2033 = vpop.permute.xlu0 %2032
  %2034 = vrot.lane.b32.xlu0 %v573, 32
  %v2035 = vpop.permute.xlu0 %2034
  %2036 = vrot.lane.b32.xlu0 %v473, 32
  %v2037 = vpop.permute.xlu0 %2036
  %2038 = vrot.lane.b32.xlu0 %v574, 32
  %v2039 = vpop.permute.xlu0 %2038
  %2040 = vrot.lane.b32.xlu0 %v475, 32
  %v2041 = vpop.permute.xlu0 %2040
  %2042 = vrot.lane.b32.xlu0 %v575, 32
  %v2043 = vpop.permute.xlu0 %2042
  %2044 = vrot.lane.b32.xlu0 %v477, 32
  %v2045 = vpop.permute.xlu0 %2044
  %2046 = vrot.lane.b32.xlu0 %v576, 32
  %v2047 = vpop.permute.xlu0 %2046
  %2048 = vrot.lane.b32.xlu0 %v479, 32
  %v2049 = vpop.permute.xlu0 %2048
  %2050 = vrot.lane.b32.xlu0 %v577, 32
  %v2051 = vpop.permute.xlu0 %2050
  %2052 = vrot.lane.b32.xlu0 %v481, 32
  %v2053 = vpop.permute.xlu0 %2052
  %2054 = vrot.lane.b32.xlu0 %v578, 32
  %v2055 = vpop.permute.xlu0 %2054
  %2056 = vrot.lane.b32.xlu0 %v483, 32
  %v2057 = vpop.permute.xlu0 %2056
  %2058 = vrot.lane.b32.xlu0 %v579, 32
  %v2059 = vpop.permute.xlu0 %2058
  %vm2120 = vcmask 31744
  %v2121 = vsel %vm2120, %v387, %v581
  %v2122 = vsel %vm2120, %v231, %v583
  %v2123 = vsel %vm2120, %v388, %v585
  %v2124 = vsel %vm2120, %v234, %v587
  %v2125 = vsel %vm2120, %v389, %v589
  %v2126 = vsel %vm2120, %v237, %v591
  %v2127 = vsel %vm2120, %v390, %v593
  %v2128 = vsel %vm2120, %v240, %v595
  %v2129 = vsel %vm2120, %v391, %v597
  %v2130 = vsel %vm2120, %v243, %v599
  %v2131 = vsel %vm2120, %v392, %v601
  %v2132 = vsel %vm2120, %v246, %v603
  %v2133 = vsel %vm2120, %v393, %v605
  %v2134 = vsel %vm2120, %v249, %v607
  %v2135 = vsel %vm2120, %v394, %v609
  %v2136 = vsel %vm2120, %v252, %v611
  %v2137 = vsel %vm2120, %v395, %v613
  %v2138 = vsel %vm2120, %v255, %v615
  %v2139 = vsel %vm2120, %v396, %v617
  %v2140 = vsel %vm2120, %v258, %v619
  %v2141 = vsel %vm2120, %v397, %v621
  %v2142 = vsel %vm2120, %v261, %v623
  %v2143 = vsel %vm2120, %v398, %v625
  %v2144 = vsel %vm2120, %v264, %v627
  %v2145 = vsel %vm2120, %v399, %v629
  %v2146 = vsel %vm2120, %v267, %v631
  %v2147 = vsel %vm2120, %v400, %v633
  %v2148 = vsel %vm2120, %v270, %v635
  %v2149 = vsel %vm2120, %v401, %v637
  %v2150 = vsel %vm2120, %v273, %v639
  %v2151 = vsel %vm2120, %v403, %v641
  %v2152 = vsel %vm2120, %v279, %v643
  %v2153 = vsel %vm2120, %v404, %v645
  %v2154 = vsel %vm2120, %v282, %v647
  %v2155 = vsel %vm2120, %v405, %v649
  %v2156 = vsel %vm2120, %v285, %v651
  %v2157 = vsel %vm2120, %v406, %v653
  %v2158 = vsel %vm2120, %v288, %v655
  %v2159 = vsel %vm2120, %v407, %v657
  %v2160 = vsel %vm2120, %v291, %v659
  %v2161 = vsel %vm2120, %v408, %v661
  %v2162 = vsel %vm2120, %v294, %v663
  %v2163 = vsel %vm2120, %v409, %v665
  %v2164 = vsel %vm2120, %v297, %v667
  %v2165 = vsel %vm2120, %v410, %v669
  %v2166 = vsel %vm2120, %v300, %v671
  %v2167 = vsel %vm2120, %v411, %v673
  %v2168 = vsel %vm2120, %v303, %v675
  %v2169 = vsel %vm2120, %v412, %v677
  %v2170 = vsel %vm2120, %v306, %v679
  %v2171 = vsel %vm2120, %v413, %v681
  %v2172 = vsel %vm2120, %v309, %v683
  %v2173 = vsel %vm2120, %v414, %v685
  %v2174 = vsel %vm2120, %v312, %v687
  %v2175 = vsel %vm2120, %v415, %v689
  %v2176 = vsel %vm2120, %v315, %v691
  %v2177 = vsel %vm2120, %v416, %v693
  %v2178 = vsel %vm2120, %v318, %v695
  %v2179 = vsel %vm2120, %v417, %v697
  %v2180 = vsel %vm2120, %v321, %v699
  %vm2181 = vcmask 64512
  %v2182 = vsel %vm2181, %v2121, %v791
  %v2183 = vsel %vm2181, %v2122, %v793
  %v2184 = vsel %vm2181, %v2123, %v795
  %v2185 = vsel %vm2181, %v2124, %v797
  %v2186 = vsel %vm2181, %v2125, %v799
  %v2187 = vsel %vm2181, %v2126, %v801
  %v2188 = vsel %vm2181, %v2127, %v803
  %v2189 = vsel %vm2181, %v2128, %v805
  %v2190 = vsel %vm2181, %v2129, %v807
  %v2191 = vsel %vm2181, %v2130, %v809
  %v2192 = vsel %vm2181, %v2131, %v811
  %v2193 = vsel %vm2181, %v2132, %v813
  %v2194 = vsel %vm2181, %v2133, %v815
  %v2195 = vsel %vm2181, %v2134, %v817
  %v2196 = vsel %vm2181, %v2135, %v819
  %v2197 = vsel %vm2181, %v2136, %v821
  %v2198 = vsel %vm2181, %v2137, %v823
  %v2199 = vsel %vm2181, %v2138, %v825
  %v2200 = vsel %vm2181, %v2139, %v827
  %v2201 = vsel %vm2181, %v2140, %v829
  %v2202 = vsel %vm2181, %v2141, %v831
  %v2203 = vsel %vm2181, %v2142, %v833
  %v2204 = vsel %vm2181, %v2143, %v835
  %v2205 = vsel %vm2181, %v2144, %v837
  %v2206 = vsel %vm2181, %v2145, %v839
  %v2207 = vsel %vm2181, %v2146, %v841
  %v2208 = vsel %vm2181, %v2147, %v843
  %v2209 = vsel %vm2181, %v2148, %v845
  %v2210 = vsel %vm2181, %v2149, %v847
  %v2211 = vsel %vm2181, %v2150, %v849
  %v2212 = vsel %vm2181, %v2151, %v851
  %v2213 = vsel %vm2181, %v2152, %v853
  %v2214 = vsel %vm2181, %v2153, %v855
  %v2215 = vsel %vm2181, %v2154, %v857
  %v2216 = vsel %vm2181, %v2155, %v859
  %v2217 = vsel %vm2181, %v2156, %v861
  %v2218 = vsel %vm2181, %v2157, %v863
  %v2219 = vsel %vm2181, %v2158, %v865
  %v2220 = vsel %vm2181, %v2159, %v867
  %v2221 = vsel %vm2181, %v2160, %v869
  %v2222 = vsel %vm2181, %v2161, %v871
  %v2223 = vsel %vm2181, %v2162, %v873
  %v2224 = vsel %vm2181, %v2163, %v875
  %v2225 = vsel %vm2181, %v2164, %v877
  %v2226 = vsel %vm2181, %v2165, %v879
  %v2227 = vsel %vm2181, %v2166, %v881
  %v2228 = vsel %vm2181, %v2167, %v883
  %v2229 = vsel %vm2181, %v2168, %v885
  %v2230 = vsel %vm2181, %v2169, %v887
  %v2231 = vsel %vm2181, %v2170, %v889
  %v2232 = vsel %vm2181, %v2171, %v891
  %v2233 = vsel %vm2181, %v2172, %v893
  %v2234 = vsel %vm2181, %v2173, %v895
  %v2235 = vsel %vm2181, %v2174, %v897
  %v2236 = vsel %vm2181, %v2175, %v899
  %v2237 = vsel %vm2181, %v2176, %v901
  %v2238 = vsel %vm2181, %v2177, %v903
  %v2239 = vsel %vm2181, %v2178, %v905
  %v2240 = vsel %vm2181, %v2179, %v907
  %v2241 = vsel %vm2181, %v2180, %v909
  %vm2242 = vcmask 97280
  %v2243 = vsel %vm2242, %v2182, %v1003
  %v2244 = vsel %vm2242, %v2183, %v1005
  %v2245 = vsel %vm2242, %v2184, %v1007
  %v2246 = vsel %vm2242, %v2185, %v1009
  %v2247 = vsel %vm2242, %v2182, %v1011
  %v2248 = vsel %vm2242, %v2183, %v1013
  %v2249 = vsel %vm2242, %v2186, %v1015
  %v2250 = vsel %vm2242, %v2187, %v1017
  %v2251 = vsel %vm2242, %v2188, %v1019
  %v2252 = vsel %vm2242, %v2189, %v1021
  %v2253 = vsel %vm2242, %v2190, %v1023
  %v2254 = vsel %vm2242, %v2191, %v1025
  %v2255 = vsel %vm2242, %v2192, %v1027
  %v2256 = vsel %vm2242, %v2193, %v1029
  %v2257 = vsel %vm2242, %v2194, %v1031
  %v2258 = vsel %vm2242, %v2195, %v1033
  %v2259 = vsel %vm2242, %v2196, %v1035
  %v2260 = vsel %vm2242, %v2197, %v1037
  %v2261 = vsel %vm2242, %v2198, %v1039
  %v2262 = vsel %vm2242, %v2199, %v1041
  %v2263 = vsel %vm2242, %v2200, %v1043
  %v2264 = vsel %vm2242, %v2201, %v1045
  %v2265 = vsel %vm2242, %v2202, %v1047
  %v2266 = vsel %vm2242, %v2203, %v1049
  %v2267 = vsel %vm2242, %v2204, %v1051
  %v2268 = vsel %vm2242, %v2205, %v1053
  %v2269 = vsel %vm2242, %v2206, %v1055
  %v2270 = vsel %vm2242, %v2207, %v1057
  %v2271 = vsel %vm2242, %v2208, %v1059
  %v2272 = vsel %vm2242, %v2209, %v1061
  %v2273 = vsel %vm2242, %v2210, %v1063
  %v2274 = vsel %vm2242, %v2211, %v1065
  %v2275 = vsel %vm2242, %v2212, %v1067
  %v2276 = vsel %vm2242, %v2213, %v1069
  %v2277 = vsel %vm2242, %v2214, %v1071
  %v2278 = vsel %vm2242, %v2215, %v1073
  %v2279 = vsel %vm2242, %v2212, %v1075
  %v2280 = vsel %vm2242, %v2213, %v1077
  %v2281 = vsel %vm2242, %v2216, %v1079
  %v2282 = vsel %vm2242, %v2217, %v1081
  %v2283 = vsel %vm2242, %v2218, %v1083
  %v2284 = vsel %vm2242, %v2219, %v1085
  %v2285 = vsel %vm2242, %v2220, %v1087
  %v2286 = vsel %vm2242, %v2221, %v1089
  %v2287 = vsel %vm2242, %v2222, %v1091
  %v2288 = vsel %vm2242, %v2223, %v1093
  %v2289 = vsel %vm2242, %v2224, %v1095
  %v2290 = vsel %vm2242, %v2225, %v1097
  %v2291 = vsel %vm2242, %v2226, %v1099
  %v2292 = vsel %vm2242, %v2227, %v1101
  %v2293 = vsel %vm2242, %v2228, %v1103
  %v2294 = vsel %vm2242, %v2229, %v1105
  %v2295 = vsel %vm2242, %v2230, %v1107
  %v2296 = vsel %vm2242, %v2231, %v1109
  %v2297 = vsel %vm2242, %v2232, %v1111
  %v2298 = vsel %vm2242, %v2233, %v1113
  %v2299 = vsel %vm2242, %v2234, %v1115
  %v2300 = vsel %vm2242, %v2235, %v1117
  %v2301 = vsel %vm2242, %v2236, %v1119
  %v2302 = vsel %vm2242, %v2237, %v1121
  %v2303 = vsel %vm2242, %v2238, %v1123
  %v2304 = vsel %vm2242, %v2239, %v1125
  %v2305 = vsel %vm2242, %v2240, %v1127
  %v2306 = vsel %vm2242, %v2241, %v1129
  %vm2307 = vcmask 130048
  %v2308 = vsel %vm2307, %v2243, %v1195
  %v2309 = vsel %vm2307, %v2244, %v1197
  %v2310 = vsel %vm2307, %v2245, %v1199
  %v2311 = vsel %vm2307, %v2246, %v1201
  %v2312 = vsel %vm2307, %v2247, %v1203
  %v2313 = vsel %vm2307, %v2248, %v1205
  %v2314 = vsel %vm2307, %v2249, %v1207
  %v2315 = vsel %vm2307, %v2250, %v1209
  %v2316 = vsel %vm2307, %v2251, %v1211
  %v2317 = vsel %vm2307, %v2252, %v1213
  %v2318 = vsel %vm2307, %v2253, %v1215
  %v2319 = vsel %vm2307, %v2254, %v1217
  %v2320 = vsel %vm2307, %v2255, %v1219
  %v2321 = vsel %vm2307, %v2256, %v1221
  %v2322 = vsel %vm2307, %v2257, %v1223
  %v2323 = vsel %vm2307, %v2258, %v1225
  %v2324 = vsel %vm2307, %v2259, %v1227
  %v2325 = vsel %vm2307, %v2260, %v1229
  %v2326 = vsel %vm2307, %v2261, %v1231
  %v2327 = vsel %vm2307, %v2262, %v1233
  %v2328 = vsel %vm2307, %v2263, %v1235
  %v2329 = vsel %vm2307, %v2264, %v1237
  %v2330 = vsel %vm2307, %v2265, %v1239
  %v2331 = vsel %vm2307, %v2266, %v1241
  %v2332 = vsel %vm2307, %v2267, %v1243
  %v2333 = vsel %vm2307, %v2268, %v1245
  %v2334 = vsel %vm2307, %v2269, %v1247
  %v2335 = vsel %vm2307, %v2270, %v1249
  %v2336 = vsel %vm2307, %v2271, %v1251
  %v2337 = vsel %vm2307, %v2272, %v1253
  %v2338 = vsel %vm2307, %v2273, %v1255
  %v2339 = vsel %vm2307, %v2274, %v1257
  %v2340 = vsel %vm2307, %v2275, %v1259
  %v2341 = vsel %vm2307, %v2276, %v1261
  %v2342 = vsel %vm2307, %v2277, %v1263
  %v2343 = vsel %vm2307, %v2278, %v1265
  %v2344 = vsel %vm2307, %v2279, %v1267
  %v2345 = vsel %vm2307, %v2280, %v1269
  %v2346 = vsel %vm2307, %v2281, %v1271
  %v2347 = vsel %vm2307, %v2282, %v1273
  %v2348 = vsel %vm2307, %v2283, %v1275
  %v2349 = vsel %vm2307, %v2284, %v1277
  %v2350 = vsel %vm2307, %v2285, %v1279
  %v2351 = vsel %vm2307, %v2286, %v1281
  %v2352 = vsel %vm2307, %v2287, %v1283
  %v2353 = vsel %vm2307, %v2288, %v1285
  %v2354 = vsel %vm2307, %v2289, %v1287
  %v2355 = vsel %vm2307, %v2290, %v1289
  %v2356 = vsel %vm2307, %v2291, %v1291
  %v2357 = vsel %vm2307, %v2292, %v1293
  %v2358 = vsel %vm2307, %v2293, %v1295
  %v2359 = vsel %vm2307, %v2294, %v1297
  %v2360 = vsel %vm2307, %v2295, %v1299
  %v2361 = vsel %vm2307, %v2296, %v1301
  %v2362 = vsel %vm2307, %v2297, %v1303
  %v2363 = vsel %vm2307, %v2298, %v1305
  %v2364 = vsel %vm2307, %v2299, %v1307
  %v2365 = vsel %vm2307, %v2300, %v1309
  %v2366 = vsel %vm2307, %v2301, %v1311
  %v2367 = vsel %vm2307, %v2302, %v1313
  %v2368 = vsel %vm2307, %v2303, %v1315
  %v2369 = vsel %vm2307, %v2304, %v1317
  %v2370 = vsel %vm2307, %v2305, %v1319
  %v2371 = vsel %vm2307, %v2306, %v1321
  %vm2372 = vcmask 162816
  %v2373 = vsel %vm2372, %v2308, %v1389
  %v2374 = vsel %vm2372, %v2309, %v1391
  %v2375 = vsel %vm2372, %v2310, %v1393
  %v2376 = vsel %vm2372, %v2311, %v1395
  %v2377 = vsel %vm2372, %v2312, %v1397
  %v2378 = vsel %vm2372, %v2313, %v1399
  %v2379 = vsel %vm2372, %v2314, %v1401
  %v2380 = vsel %vm2372, %v2315, %v1403
  %v2381 = vsel %vm2372, %v2316, %v1405
  %v2382 = vsel %vm2372, %v2317, %v1407
  %v2383 = vsel %vm2372, %v2318, %v1409
  %v2384 = vsel %vm2372, %v2319, %v1411
  %v2385 = vsel %vm2372, %v2320, %v1413
  %v2386 = vsel %vm2372, %v2321, %v1415
  %v2387 = vsel %vm2372, %v2322, %v1417
  %v2388 = vsel %vm2372, %v2323, %v1419
  %v2389 = vsel %vm2372, %v2324, %v1421
  %v2390 = vsel %vm2372, %v2325, %v1423
  %v2391 = vsel %vm2372, %v2326, %v1425
  %v2392 = vsel %vm2372, %v2327, %v1427
  %v2393 = vsel %vm2372, %v2328, %v1429
  %v2394 = vsel %vm2372, %v2329, %v1431
  %v2395 = vsel %vm2372, %v2330, %v1433
  %v2396 = vsel %vm2372, %v2331, %v1435
  %v2397 = vsel %vm2372, %v2332, %v1437
  %v2398 = vsel %vm2372, %v2333, %v1439
  %v2399 = vsel %vm2372, %v2334, %v1441
  %v2400 = vsel %vm2372, %v2335, %v1443
  %v2401 = vsel %vm2372, %v2336, %v1445
  %v2402 = vsel %vm2372, %v2337, %v1447
  %v2403 = vsel %vm2372, %v2338, %v1449
  %v2404 = vsel %vm2372, %v2339, %v1451
  %v2405 = vsel %vm2372, %v2340, %v1453
  %v2406 = vsel %vm2372, %v2341, %v1455
  %v2407 = vsel %vm2372, %v2342, %v1457
  %v2408 = vsel %vm2372, %v2343, %v1459
  %v2409 = vsel %vm2372, %v2344, %v1461
  %v2410 = vsel %vm2372, %v2345, %v1463
  %v2411 = vsel %vm2372, %v2346, %v1465
  %v2412 = vsel %vm2372, %v2347, %v1467
  %v2413 = vsel %vm2372, %v2348, %v1469
  %v2414 = vsel %vm2372, %v2349, %v1471
  %v2415 = vsel %vm2372, %v2350, %v1473
  %v2416 = vsel %vm2372, %v2351, %v1475
  %v2417 = vsel %vm2372, %v2352, %v1477
  %v2418 = vsel %vm2372, %v2353, %v1479
  %v2419 = vsel %vm2372, %v2354, %v1481
  %v2420 = vsel %vm2372, %v2355, %v1483
  %v2421 = vsel %vm2372, %v2356, %v1485
  %v2422 = vsel %vm2372, %v2357, %v1487
  %v2423 = vsel %vm2372, %v2358, %v1489
  %v2424 = vsel %vm2372, %v2359, %v1491
  %v2425 = vsel %vm2372, %v2360, %v1493
  %v2426 = vsel %vm2372, %v2361, %v1495
  %v2427 = vsel %vm2372, %v2362, %v1497
  %v2428 = vsel %vm2372, %v2363, %v1499
  %v2429 = vsel %vm2372, %v2364, %v1501
  %v2430 = vsel %vm2372, %v2365, %v1503
  %v2431 = vsel %vm2372, %v2366, %v1505
  %v2432 = vsel %vm2372, %v2367, %v1507
  %v2433 = vsel %vm2372, %v2368, %v1509
  %v2434 = vsel %vm2372, %v2369, %v1511
  %v2435 = vsel %vm2372, %v2370, %v1513
  %v2436 = vsel %vm2372, %v2371, %v1515
  %vm2437 = vcmask 195584
  %v2438 = vsel %vm2437, %v2373, %v1581
  %v2439 = vsel %vm2437, %v2374, %v1583
  %v2440 = vsel %vm2437, %v2375, %v1585
  %v2441 = vsel %vm2437, %v2376, %v1587
  %v2442 = vsel %vm2437, %v2377, %v1589
  %v2443 = vsel %vm2437, %v2378, %v1591
  %v2444 = vsel %vm2437, %v2379, %v1593
  %v2445 = vsel %vm2437, %v2380, %v1595
  %v2446 = vsel %vm2437, %v2381, %v1597
  %v2447 = vsel %vm2437, %v2382, %v1599
  %v2448 = vsel %vm2437, %v2383, %v1601
  %v2449 = vsel %vm2437, %v2384, %v1603
  %v2450 = vsel %vm2437, %v2385, %v1605
  %v2451 = vsel %vm2437, %v2386, %v1607
  %v2452 = vsel %vm2437, %v2387, %v1609
  %v2453 = vsel %vm2437, %v2388, %v1611
  %v2454 = vsel %vm2437, %v2389, %v1613
  %v2455 = vsel %vm2437, %v2390, %v1615
  %v2456 = vsel %vm2437, %v2391, %v1617
  %v2457 = vsel %vm2437, %v2392, %v1619
  %v2458 = vsel %vm2437, %v2393, %v1621
  %v2459 = vsel %vm2437, %v2394, %v1623
  %v2460 = vsel %vm2437, %v2395, %v1625
  %v2461 = vsel %vm2437, %v2396, %v1627
  %v2462 = vsel %vm2437, %v2397, %v1629
  %v2463 = vsel %vm2437, %v2398, %v1631
  %v2464 = vsel %vm2437, %v2399, %v1633
  %v2465 = vsel %vm2437, %v2400, %v1635
  %v2466 = vsel %vm2437, %v2401, %v1637
  %v2467 = vsel %vm2437, %v2402, %v1639
  %v2468 = vsel %vm2437, %v2403, %v1633
  %v2469 = vsel %vm2437, %v2404, %v1635
  %v2470 = vsel %vm2437, %v2405, %v1641
  %v2471 = vsel %vm2437, %v2406, %v1643
  %v2472 = vsel %vm2437, %v2407, %v1645
  %v2473 = vsel %vm2437, %v2408, %v1647
  %v2474 = vsel %vm2437, %v2409, %v1649
  %v2475 = vsel %vm2437, %v2410, %v1651
  %v2476 = vsel %vm2437, %v2411, %v1653
  %v2477 = vsel %vm2437, %v2412, %v1655
  %v2478 = vsel %vm2437, %v2413, %v1657
  %v2479 = vsel %vm2437, %v2414, %v1659
  %v2480 = vsel %vm2437, %v2415, %v1661
  %v2481 = vsel %vm2437, %v2416, %v1663
  %v2482 = vsel %vm2437, %v2417, %v1665
  %v2483 = vsel %vm2437, %v2418, %v1667
  %v2484 = vsel %vm2437, %v2419, %v1669
  %v2485 = vsel %vm2437, %v2420, %v1671
  %v2486 = vsel %vm2437, %v2421, %v1673
  %v2487 = vsel %vm2437, %v2422, %v1675
  %v2488 = vsel %vm2437, %v2423, %v1677
  %v2489 = vsel %vm2437, %v2424, %v1679
  %v2490 = vsel %vm2437, %v2425, %v1681
  %v2491 = vsel %vm2437, %v2426, %v1683
  %v2492 = vsel %vm2437, %v2427, %v1685
  %v2493 = vsel %vm2437, %v2428, %v1687
  %v2494 = vsel %vm2437, %v2429, %v1689
  %v2495 = vsel %vm2437, %v2430, %v1691
  %v2496 = vsel %vm2437, %v2431, %v1693
  %v2497 = vsel %vm2437, %v2432, %v1695
  %v2498 = vsel %vm2437, %v2433, %v1697
  %v2499 = vsel %vm2437, %v2434, %v1699
  %v2500 = vsel %vm2437, %v2435, %v1693
  %v2501 = vsel %vm2437, %v2436, %v1695
  %vm2502 = vcmask 228352
  %v2503 = vsel %vm2502, %v2438, %v1761
  %v2504 = vsel %vm2502, %v2439, %v1763
  %v2505 = vsel %vm2502, %v2440, %v1765
  %v2506 = vsel %vm2502, %v2441, %v1767
  %v2507 = vsel %vm2502, %v2442, %v1769
  %v2508 = vsel %vm2502, %v2443, %v1771
  %v2509 = vsel %vm2502, %v2444, %v1773
  %v2510 = vsel %vm2502, %v2445, %v1775
  %v2511 = vsel %vm2502, %v2446, %v1777
  %v2512 = vsel %vm2502, %v2447, %v1779
  %v2513 = vsel %vm2502, %v2448, %v1781
  %v2514 = vsel %vm2502, %v2449, %v1783
  %v2515 = vsel %vm2502, %v2450, %v1785
  %v2516 = vsel %vm2502, %v2451, %v1787
  %v2517 = vsel %vm2502, %v2452, %v1789
  %v2518 = vsel %vm2502, %v2453, %v1791
  %v2519 = vsel %vm2502, %v2454, %v1793
  %v2520 = vsel %vm2502, %v2455, %v1795
  %v2521 = vsel %vm2502, %v2456, %v1797
  %v2522 = vsel %vm2502, %v2457, %v1799
  %v2523 = vsel %vm2502, %v2458, %v1801
  %v2524 = vsel %vm2502, %v2459, %v1803
  %v2525 = vsel %vm2502, %v2460, %v1805
  %v2526 = vsel %vm2502, %v2461, %v1807
  %v2527 = vsel %vm2502, %v2462, %v1809
  %v2528 = vsel %vm2502, %v2463, %v1811
  %v2529 = vsel %vm2502, %v2464, %v1813
  %v2530 = vsel %vm2502, %v2465, %v1815
  %v2531 = vsel %vm2502, %v2466, %v1817
  %v2532 = vsel %vm2502, %v2467, %v1819
  %v2533 = vsel %vm2502, %v2468, %v1813
  %v2534 = vsel %vm2502, %v2469, %v1815
  %v2535 = vsel %vm2502, %v2470, %v1821
  %v2536 = vsel %vm2502, %v2471, %v1823
  %v2537 = vsel %vm2502, %v2472, %v1825
  %v2538 = vsel %vm2502, %v2473, %v1827
  %v2539 = vsel %vm2502, %v2474, %v1829
  %v2540 = vsel %vm2502, %v2475, %v1831
  %v2541 = vsel %vm2502, %v2476, %v1833
  %v2542 = vsel %vm2502, %v2477, %v1835
  %v2543 = vsel %vm2502, %v2478, %v1837
  %v2544 = vsel %vm2502, %v2479, %v1839
  %v2545 = vsel %vm2502, %v2480, %v1841
  %v2546 = vsel %vm2502, %v2481, %v1843
  %v2547 = vsel %vm2502, %v2482, %v1845
  %v2548 = vsel %vm2502, %v2483, %v1847
  %v2549 = vsel %vm2502, %v2484, %v1849
  %v2550 = vsel %vm2502, %v2485, %v1851
  %v2551 = vsel %vm2502, %v2486, %v1853
  %v2552 = vsel %vm2502, %v2487, %v1855
  %v2553 = vsel %vm2502, %v2488, %v1857
  %v2554 = vsel %vm2502, %v2489, %v1859
  %v2555 = vsel %vm2502, %v2490, %v1861
  %v2556 = vsel %vm2502, %v2491, %v1863
  %v2557 = vsel %vm2502, %v2492, %v1865
  %v2558 = vsel %vm2502, %v2493, %v1867
  %v2559 = vsel %vm2502, %v2494, %v1869
  %v2560 = vsel %vm2502, %v2495, %v1871
  %v2561 = vsel %vm2502, %v2496, %v1873
  %v2562 = vsel %vm2502, %v2497, %v1875
  %v2563 = vsel %vm2502, %v2498, %v1877
  %v2564 = vsel %vm2502, %v2499, %v1879
  %v2565 = vsel %vm2502, %v2500, %v1873
  %v2566 = vsel %vm2502, %v2501, %v1875
  %vm2567 = vcmask 261120
  %v2568 = vsel %vm2567, %v2503, %v1941
  %v2569 = vsel %vm2567, %v2504, %v1943
  %v2570 = vsel %vm2567, %v2505, %v1945
  %v2571 = vsel %vm2567, %v2506, %v1947
  %v2572 = vsel %vm2567, %v2507, %v1949
  %v2573 = vsel %vm2567, %v2508, %v1951
  %v2574 = vsel %vm2567, %v2509, %v1953
  %v2575 = vsel %vm2567, %v2510, %v1955
  %v2576 = vsel %vm2567, %v2511, %v1957
  %v2577 = vsel %vm2567, %v2512, %v1959
  %v2578 = vsel %vm2567, %v2513, %v1961
  %v2579 = vsel %vm2567, %v2514, %v1963
  %v2580 = vsel %vm2567, %v2515, %v1965
  %v2581 = vsel %vm2567, %v2516, %v1967
  %v2582 = vsel %vm2567, %v2517, %v1969
  %v2583 = vsel %vm2567, %v2518, %v1971
  %v2584 = vsel %vm2567, %v2519, %v1973
  %v2585 = vsel %vm2567, %v2520, %v1975
  %v2586 = vsel %vm2567, %v2521, %v1977
  %v2587 = vsel %vm2567, %v2522, %v1979
  %v2588 = vsel %vm2567, %v2523, %v1981
  %v2589 = vsel %vm2567, %v2524, %v1983
  %v2590 = vsel %vm2567, %v2525, %v1985
  %v2591 = vsel %vm2567, %v2526, %v1987
  %v2592 = vsel %vm2567, %v2527, %v1989
  %v2593 = vsel %vm2567, %v2528, %v1991
  %v2594 = vsel %vm2567, %v2529, %v1993
  %v2595 = vsel %vm2567, %v2530, %v1995
  %v2596 = vsel %vm2567, %v2531, %v1997
  %v2597 = vsel %vm2567, %v2532, %v1999
  %v2598 = vsel %vm2567, %v2533, %v1993
  %v2599 = vsel %vm2567, %v2534, %v1995
  %v2600 = vsel %vm2567, %v2535, %v2001
  %v2601 = vsel %vm2567, %v2536, %v2003
  %v2602 = vsel %vm2567, %v2537, %v2005
  %v2603 = vsel %vm2567, %v2538, %v2007
  %v2604 = vsel %vm2567, %v2539, %v2009
  %v2605 = vsel %vm2567, %v2540, %v2011
  %v2606 = vsel %vm2567, %v2541, %v2013
  %v2607 = vsel %vm2567, %v2542, %v2015
  %v2608 = vsel %vm2567, %v2543, %v2017
  %v2609 = vsel %vm2567, %v2544, %v2019
  %v2610 = vsel %vm2567, %v2545, %v2021
  %v2611 = vsel %vm2567, %v2546, %v2023
  %v2612 = vsel %vm2567, %v2547, %v2025
  %v2613 = vsel %vm2567, %v2548, %v2027
  %v2614 = vsel %vm2567, %v2549, %v2029
  %v2615 = vsel %vm2567, %v2550, %v2031
  %v2616 = vsel %vm2567, %v2551, %v2033
  %v2617 = vsel %vm2567, %v2552, %v2035
  %v2618 = vsel %vm2567, %v2553, %v2037
  %v2619 = vsel %vm2567, %v2554, %v2039
  %v2620 = vsel %vm2567, %v2555, %v2041
  %v2621 = vsel %vm2567, %v2556, %v2043
  %v2622 = vsel %vm2567, %v2557, %v2045
  %v2623 = vsel %vm2567, %v2558, %v2047
  %v2624 = vsel %vm2567, %v2559, %v2049
  %v2625 = vsel %vm2567, %v2560, %v2051
  %v2626 = vsel %vm2567, %v2561, %v2053
  %v2627 = vsel %vm2567, %v2562, %v2055
  %v2628 = vsel %vm2567, %v2563, %v2057
  %v2629 = vsel %vm2567, %v2564, %v2059
  %v2630 = vsel %vm2567, %v2565, %v2053
  %v2631 = vsel %vm2567, %v2566, %v2055
  %vm2632 = vcmask 293888
  %v2634 = vsel %vm2632, %v2568, 0
  %v2637 = vsel %vm2632, %v2569, 0
  %v2640 = vsel %vm2632, %v2570, 0
  %v2643 = vsel %vm2632, %v2571, 0
  %v2646 = vsel %vm2632, %v2572, 0
  %v2649 = vsel %vm2632, %v2573, 0
  %v2652 = vsel %vm2632, %v2574, 0
  %v2655 = vsel %vm2632, %v2575, 0
  %v2658 = vsel %vm2632, %v2576, 0
  %v2661 = vsel %vm2632, %v2577, 0
  %v2664 = vsel %vm2632, %v2578, 0
  %v2667 = vsel %vm2632, %v2579, 0
  %v2670 = vsel %vm2632, %v2580, 0
  %v2673 = vsel %vm2632, %v2581, 0
  %v2676 = vsel %vm2632, %v2582, 0
  %v2679 = vsel %vm2632, %v2583, 0
  %v2682 = vsel %vm2632, %v2584, 0
  %v2685 = vsel %vm2632, %v2585, 0
  %v2688 = vsel %vm2632, %v2586, 0
  %v2691 = vsel %vm2632, %v2587, 0
  %v2694 = vsel %vm2632, %v2588, 0
  %v2697 = vsel %vm2632, %v2589, 0
  %v2700 = vsel %vm2632, %v2590, 0
  %v2703 = vsel %vm2632, %v2591, 0
  %v2706 = vsel %vm2632, %v2592, 0
  %v2709 = vsel %vm2632, %v2593, 0
  %v2712 = vsel %vm2632, %v2594, 0
  %v2715 = vsel %vm2632, %v2595, 0
  %v2718 = vsel %vm2632, %v2596, 0
  %v2721 = vsel %vm2632, %v2597, 0
  %v2724 = vsel %vm2632, %v2598, 0
  %v2727 = vsel %vm2632, %v2599, 0
  %v2730 = vsel %vm2632, %v2600, 0
  %v2733 = vsel %vm2632, %v2601, 0
  %v2736 = vsel %vm2632, %v2602, 0
  %v2739 = vsel %vm2632, %v2603, 0
  %v2742 = vsel %vm2632, %v2604, 0
  %v2745 = vsel %vm2632, %v2605, 0
  %v2748 = vsel %vm2632, %v2606, 0
  %v2751 = vsel %vm2632, %v2607, 0
  %v2754 = vsel %vm2632, %v2608, 0
  %v2757 = vsel %vm2632, %v2609, 0
  %v2760 = vsel %vm2632, %v2610, 0
  %v2763 = vsel %vm2632, %v2611, 0
  %v2766 = vsel %vm2632, %v2612, 0
  %v2769 = vsel %vm2632, %v2613, 0
  %v2772 = vsel %vm2632, %v2614, 0
  %v2775 = vsel %vm2632, %v2615, 0
  %v2778 = vsel %vm2632, %v2616, 0
  %v2781 = vsel %vm2632, %v2617, 0
  %v2784 = vsel %vm2632, %v2618, 0
  %v2787 = vsel %vm2632, %v2619, 0
  %v2790 = vsel %vm2632, %v2620, 0
  %v2793 = vsel %vm2632, %v2621, 0
  %v2796 = vsel %vm2632, %v2622, 0
  %v2799 = vsel %vm2632, %v2623, 0
  %v2802 = vsel %vm2632, %v2624, 0
  %v2805 = vsel %vm2632, %v2625, 0
  %v2808 = vsel %vm2632, %v2626, 0
  %v2811 = vsel %vm2632, %v2627, 0
  %v2814 = vsel %vm2632, %v2628, 0
  %v2817 = vsel %vm2632, %v2629, 0
  %v2820 = vsel %vm2632, %v2630, 0
  %v2823 = vsel %vm2632, %v2631, 0
  %vm2825 = vcmask 1043456
  %v2827 = vsel %vm2825, %v94, 0
  %2829 = vmatprep.subr.mxu0 0.0
  %2830 = vmatpush1.msra.mxu0 %v90
  %2831 = vmatprep.subr.mxu0 0.0
  %2832 = vmatpush1.msra.mxu0 %v91
  %2833 = vmatprep.subr.mxu0 0.0
  %2834 = vmatpush1.msra.mxu0 %v92
  %2835 = vmatprep.subr.mxu0 0.0
  %2836 = vmatpush1.msra.mxu0 %v93
  %2837 = vmatprep.subr.mxu0 0.0
  %2838 = vmatpush1.msra.mxu0 %v2827
  %2839 = vmatprep.subr.mxu0 0.0
  %2840 = vmatpush1.msra.mxu0 0.0
  %2841 = vmatprep.subr.mxu0 0.0
  %2842 = vmatpush1.msra.mxu0 0.0
  %2843 = vmatprep.subr.mxu0 0.0
  %2844 = vmatpush1.msra.mxu0 0.0
  %2845 = vmatprep.subr.mxu0 0.0
  %2846 = vmatpush1.msra.mxu0 0.0
  %2847 = vmatprep.subr.mxu0 0.0
  %2848 = vmatpush1.msra.mxu0 0.0
  %2849 = vmatprep.subr.mxu0 0.0
  %2850 = vmatpush1.msra.mxu0 0.0
  %2851 = vmatprep.subr.mxu0 0.0
  %2852 = vmatpush1.msra.mxu0 0.0
  %2853 = vmatprep.subr.mxu0 0.0
  %2854 = vmatpush1.msra.mxu0 0.0
  %2855 = vmatprep.subr.mxu0 0.0
  %2856 = vmatpush1.msra.mxu0 0.0
  %2857 = vmatprep.subr.mxu0 0.0
  %2858 = vmatpush1.msra.mxu0 0.0
  %2859 = vmatprep.subr.mxu0 0.0
  %2860 = vmatpush1.msra.mxu0 0.0
  %2861 = vmatprep.subr.mxu0 0.0
  %2862 = vmatpush1.msra.mxu0 0.0
  %2863 = vmatprep.subr.mxu0 0.0
  %2864 = vmatpush1.msra.mxu0 0.0
  %2865 = vmatprep.subr.mxu0 0.0
  %2866 = vmatpush1.msra.mxu0 0.0
  %2867 = vmatprep.subr.mxu0 0.0
  %2868 = vmatpush1.msra.mxu0 0.0
  %2869 = vmatprep.subr.mxu0 0.0
  %2870 = vmatpush1.msra.mxu0 0.0
  %2871 = vmatprep.subr.mxu0 0.0
  %2872 = vmatpush1.msra.mxu0 0.0
  %2873 = vmatprep.subr.mxu0 0.0
  %2874 = vmatpush1.msra.mxu0 0.0
  %2875 = vmatprep.subr.mxu0 0.0
  %2876 = vmatpush1.msra.mxu0 0.0
  %2877 = vmatprep.subr.mxu0 0.0
  %2878 = vmatpush1.msra.mxu0 0.0
  %2879 = vmatprep.subr.mxu0 0.0
  %2880 = vmatpush1.msra.mxu0 0.0
  %2881 = vmatprep.subr.mxu0 0.0
  %2882 = vmatpush1.msra.mxu0 0.0
  %2883 = vmatprep.subr.mxu0 0.0
  %2884 = vmatpush1.msra.mxu0 0.0
  %2885 = vmatprep.subr.mxu0 0.0
  %2886 = vmatpush1.msra.mxu0 0.0
  %2887 = vmatprep.subr.mxu0 0.0
  %2888 = vmatpush1.msra.mxu0 0.0
  %2889 = vmatprep.subr.mxu0 0.0
  %2890 = vmatpush1.msra.mxu0 0.0
  %2891 = vmatprep.subr.mxu0 0.0
  %2892 = vmatpush1.msra.mxu0 0.0
  %2893 = vmatprep.mubr.f32.mxu0 0.0
  %2894 = vmatmul.mubr.f32.gmra.mrb[0].mxu0 %v2634
  %v2895 = vpop.f32.mrb[0].mxu0
  %v2896 = vadd.f32 0.0, %v2895
  %v2897 = vpop.f32.mrb[0].mxu0
  %2898 = vmatprep.mubr.f32.mxu0 0.0
  %2899 = vmatmul.mubr.f32.gmra.mrb[0].mxu0 %v2637
  %v2900 = vpop.f32.mrb[0].mxu0
  %v2901 = vadd.f32 0.0, %v2900
  %v2902 = vpop.f32.mrb[0].mxu0
  %2903 = vmatprep.mubr.f32.mxu0 0.0
  %2904 = vmatmul.mubr.f32.gmra.mrb[0].mxu0 %v2640
  %v2905 = vpop.f32.mrb[0].mxu0
  %v2906 = vadd.f32 0.0, %v2905
  %v2907 = vpop.f32.mrb[0].mxu0
  %2908 = vmatprep.mubr.f32.mxu0 0.0
  %2909 = vmatmul.mubr.f32.gmra.mrb[0].mxu0 %v2643
  %v2910 = vpop.f32.mrb[0].mxu0
  %v2911 = vadd.f32 0.0, %v2910
  %v2912 = vpop.f32.mrb[0].mxu0
  %2913 = vmatprep.mubr.f32.mxu0 0.0
  %2914 = vmatmul.mubr.f32.gmra.mrb[0].mxu0 %v2646
  %v2915 = vpop.f32.mrb[0].mxu0
  %v2916 = vadd.f32 0.0, %v2915
  %v2917 = vpop.f32.mrb[0].mxu0
  %2918 = vmatprep.mubr.f32.mxu0 0.0
  %2919 = vmatmul.mubr.f32.gmra.mrb[0].mxu0 %v2649
  %v2920 = vpop.f32.mrb[0].mxu0
  %v2921 = vadd.f32 0.0, %v2920
  %v2922 = vpop.f32.mrb[0].mxu0
  %2923 = vmatprep.mubr.f32.mxu0 0.0
  %2924 = vmatmul.mubr.f32.gmra.mrb[0].mxu0 %v2652
  %v2925 = vpop.f32.mrb[0].mxu0
  %v2926 = vadd.f32 0.0, %v2925
  %v2927 = vpop.f32.mrb[0].mxu0
  %2928 = vmatprep.mubr.f32.mxu0 0.0
  %2929 = vmatmul.mubr.f32.gmra.mrb[0].mxu0 %v2655
  %v2930 = vpop.f32.mrb[0].mxu0
  %v2931 = vadd.f32 0.0, %v2930
  %v2932 = vpop.f32.mrb[0].mxu0
  %2933 = vmatprep.mubr.f32.mxu0 0.0
  %2934 = vmatmul.mubr.f32.gmra.mrb[0].mxu0 %v2658
  %v2935 = vpop.f32.mrb[0].mxu0
  %v2936 = vadd.f32 0.0, %v2935
  %v2937 = vpop.f32.mrb[0].mxu0
  %2938 = vmatprep.mubr.f32.mxu0 0.0
  %2939 = vmatmul.mubr.f32.gmra.mrb[0].mxu0 %v2661
  %v2940 = vpop.f32.mrb[0].mxu0
  %v2941 = vadd.f32 0.0, %v2940
  %v2942 = vpop.f32.mrb[0].mxu0
  %2943 = vmatprep.mubr.f32.mxu0 0.0
  %2944 = vmatmul.mubr.f32.gmra.mrb[0].mxu0 %v2664
  %v2945 = vpop.f32.mrb[0].mxu0
  %v2946 = vadd.f32 0.0, %v2945
  %v2947 = vpop.f32.mrb[0].mxu0
  %2948 = vmatprep.mubr.f32.mxu0 0.0
  %2949 = vmatmul.mubr.f32.gmra.mrb[0].mxu0 %v2667
  %v2950 = vpop.f32.mrb[0].mxu0
  %v2951 = vadd.f32 0.0, %v2950
  %v2952 = vpop.f32.mrb[0].mxu0
  %2953 = vmatprep.mubr.f32.mxu0 0.0
  %2954 = vmatmul.mubr.f32.gmra.mrb[0].mxu0 %v2670
  %v2955 = vpop.f32.mrb[0].mxu0
  %v2956 = vadd.f32 0.0, %v2955
  %v2957 = vpop.f32.mrb[0].mxu0
  %2958 = vmatprep.mubr.f32.mxu0 0.0
  %2959 = vmatmul.mubr.f32.gmra.mrb[0].mxu0 %v2673
  %v2960 = vpop.f32.mrb[0].mxu0
  %v2961 = vadd.f32 0.0, %v2960
  %v2962 = vpop.f32.mrb[0].mxu0
  %2963 = vmatprep.mubr.f32.mxu0 0.0
  %2964 = vmatmul.mubr.f32.gmra.mrb[0].mxu0 %v2676
  %v2965 = vpop.f32.mrb[0].mxu0
  %v2966 = vadd.f32 0.0, %v2965
  %v2967 = vpop.f32.mrb[0].mxu0
  %2968 = vmatprep.mubr.f32.mxu0 0.0
  %2969 = vmatmul.mubr.f32.gmra.mrb[0].mxu0 %v2679
  %v2970 = vpop.f32.mrb[0].mxu0
  %v2971 = vadd.f32 0.0, %v2970
  %v2972 = vpop.f32.mrb[0].mxu0
  %2973 = vmatprep.mubr.f32.mxu0 0.0
  %2974 = vmatmul.mubr.f32.gmra.mrb[0].mxu0 %v2682
  %v2975 = vpop.f32.mrb[0].mxu0
  %v2976 = vadd.f32 0.0, %v2975
  %v2977 = vpop.f32.mrb[0].mxu0
  %2978 = vmatprep.mubr.f32.mxu0 0.0
  %2979 = vmatmul.mubr.f32.gmra.mrb[0].mxu0 %v2685
  %v2980 = vpop.f32.mrb[0].mxu0
  %v2981 = vadd.f32 0.0, %v2980
  %v2982 = vpop.f32.mrb[0].mxu0
  %2983 = vmatprep.mubr.f32.mxu0 0.0
  %2984 = vmatmul.mubr.f32.gmra.mrb[0].mxu0 %v2688
  %v2985 = vpop.f32.mrb[0].mxu0
  %v2986 = vadd.f32 0.0, %v2985
  %v2987 = vpop.f32.mrb[0].mxu0
  %2988 = vmatprep.mubr.f32.mxu0 0.0
  %2989 = vmatmul.mubr.f32.gmra.mrb[0].mxu0 %v2691
  %v2990 = vpop.f32.mrb[0].mxu0
  %v2991 = vadd.f32 0.0, %v2990
  %v2992 = vpop.f32.mrb[0].mxu0
  %2993 = vmatprep.mubr.f32.mxu0 0.0
  %2994 = vmatmul.mubr.f32.gmra.mrb[0].mxu0 %v2694
  %v2995 = vpop.f32.mrb[0].mxu0
  %v2996 = vadd.f32 0.0, %v2995
  %v2997 = vpop.f32.mrb[0].mxu0
  %2998 = vmatprep.mubr.f32.mxu0 0.0
  %2999 = vmatmul.mubr.f32.gmra.mrb[0].mxu0 %v2697
  %v3000 = vpop.f32.mrb[0].mxu0
  %v3001 = vadd.f32 0.0, %v3000
  %v3002 = vpop.f32.mrb[0].mxu0
  %3003 = vmatprep.mubr.f32.mxu0 0.0
  %3004 = vmatmul.mubr.f32.gmra.mrb[0].mxu0 %v2700
  %v3005 = vpop.f32.mrb[0].mxu0
  %v3006 = vadd.f32 0.0, %v3005
  %v3007 = vpop.f32.mrb[0].mxu0
  %3008 = vmatprep.mubr.f32.mxu0 0.0
  %3009 = vmatmul.mubr.f32.gmra.mrb[0].mxu0 %v2703
  %v3010 = vpop.f32.mrb[0].mxu0
  %v3011 = vadd.f32 0.0, %v3010
  %v3012 = vpop.f32.mrb[0].mxu0
  %3013 = vmatprep.mubr.f32.mxu0 0.0
  %3014 = vmatmul.mubr.f32.gmra.mrb[0].mxu0 %v2706
  %v3015 = vpop.f32.mrb[0].mxu0
  %v3016 = vadd.f32 0.0, %v3015
  %v3017 = vpop.f32.mrb[0].mxu0
  %3018 = vmatprep.mubr.f32.mxu0 0.0
  %3019 = vmatmul.mubr.f32.gmra.mrb[0].mxu0 %v2709
  %v3020 = vpop.f32.mrb[0].mxu0
  %v3021 = vadd.f32 0.0, %v3020
  %v3022 = vpop.f32.mrb[0].mxu0
  %3023 = vmatprep.mubr.f32.mxu0 0.0
  %3024 = vmatmul.mubr.f32.gmra.mrb[0].mxu0 %v2712
  %v3025 = vpop.f32.mrb[0].mxu0
  %v3026 = vadd.f32 0.0, %v3025
  %v3027 = vpop.f32.mrb[0].mxu0
  %3028 = vmatprep.mubr.f32.mxu0 0.0
  %3029 = vmatmul.mubr.f32.gmra.mrb[0].mxu0 %v2715
  %v3030 = vpop.f32.mrb[0].mxu0
  %v3031 = vadd.f32 0.0, %v3030
  %v3032 = vpop.f32.mrb[0].mxu0
  %3033 = vmatprep.mubr.f32.mxu0 0.0
  %3034 = vmatmul.mubr.f32.gmra.mrb[0].mxu0 %v2718
  %v3035 = vpop.f32.mrb[0].mxu0
  %v3036 = vadd.f32 0.0, %v3035
  %v3037 = vpop.f32.mrb[0].mxu0
  %3038 = vmatprep.mubr.f32.mxu0 0.0
  %3039 = vmatmul.mubr.f32.gmra.mrb[0].mxu0 %v2721
  %v3040 = vpop.f32.mrb[0].mxu0
  %v3041 = vadd.f32 0.0, %v3040
  %v3042 = vpop.f32.mrb[0].mxu0
  %3043 = vmatprep.mubr.f32.mxu0 0.0
  %3044 = vmatmul.mubr.f32.gmra.mrb[0].mxu0 %v2724
  %v3045 = vpop.f32.mrb[0].mxu0
  %v3046 = vadd.f32 0.0, %v3045
  %v3047 = vpop.f32.mrb[0].mxu0
  %3048 = vmatprep.mubr.f32.mxu0 0.0
  %3049 = vmatmul.mubr.f32.gmra.mrb[0].mxu0 %v2727
  %v3050 = vpop.f32.mrb[0].mxu0
  %v3051 = vadd.f32 0.0, %v3050
  %v3052 = vpop.f32.mrb[0].mxu0
  %3053 = vmatprep.mubr.f32.mxu0 0.0
  %3054 = vmatmul.mubr.f32.gmra.mrb[0].mxu0 %v2730
  %v3055 = vpop.f32.mrb[0].mxu0
  %v3056 = vadd.f32 0.0, %v3055
  %v3057 = vpop.f32.mrb[0].mxu0
  %3058 = vmatprep.mubr.f32.mxu0 0.0
  %3059 = vmatmul.mubr.f32.gmra.mrb[0].mxu0 %v2733
  %v3060 = vpop.f32.mrb[0].mxu0
  %v3061 = vadd.f32 0.0, %v3060
  %v3062 = vpop.f32.mrb[0].mxu0
  %3063 = vmatprep.mubr.f32.mxu0 0.0
  %3064 = vmatmul.mubr.f32.gmra.mrb[0].mxu0 %v2736
  %v3065 = vpop.f32.mrb[0].mxu0
  %v3066 = vadd.f32 0.0, %v3065
  %v3067 = vpop.f32.mrb[0].mxu0
  %3068 = vmatprep.mubr.f32.mxu0 0.0
  %3069 = vmatmul.mubr.f32.gmra.mrb[0].mxu0 %v2739
  %v3070 = vpop.f32.mrb[0].mxu0
  %v3071 = vadd.f32 0.0, %v3070
  %v3072 = vpop.f32.mrb[0].mxu0
  %3073 = vmatprep.mubr.f32.mxu0 0.0
  %3074 = vmatmul.mubr.f32.gmra.mrb[0].mxu0 %v2742
  %v3075 = vpop.f32.mrb[0].mxu0
  %v3076 = vadd.f32 0.0, %v3075
  %v3077 = vpop.f32.mrb[0].mxu0
  %3078 = vmatprep.mubr.f32.mxu0 0.0
  %3079 = vmatmul.mubr.f32.gmra.mrb[0].mxu0 %v2745
  %v3080 = vpop.f32.mrb[0].mxu0
  %v3081 = vadd.f32 0.0, %v3080
  %v3082 = vpop.f32.mrb[0].mxu0
  %3083 = vmatprep.mubr.f32.mxu0 0.0
  %3084 = vmatmul.mubr.f32.gmra.mrb[0].mxu0 %v2748
  %v3085 = vpop.f32.mrb[0].mxu0
  %v3086 = vadd.f32 0.0, %v3085
  %v3087 = vpop.f32.mrb[0].mxu0
  %3088 = vmatprep.mubr.f32.mxu0 0.0
  %3089 = vmatmul.mubr.f32.gmra.mrb[0].mxu0 %v2751
  %v3090 = vpop.f32.mrb[0].mxu0
  %v3091 = vadd.f32 0.0, %v3090
  %v3092 = vpop.f32.mrb[0].mxu0
  %3093 = vmatprep.mubr.f32.mxu0 0.0
  %3094 = vmatmul.mubr.f32.gmra.mrb[0].mxu0 %v2754
  %v3095 = vpop.f32.mrb[0].mxu0
  %v3096 = vadd.f32 0.0, %v3095
  %v3097 = vpop.f32.mrb[0].mxu0
  %3098 = vmatprep.mubr.f32.mxu0 0.0
  %3099 = vmatmul.mubr.f32.gmra.mrb[0].mxu0 %v2757
  %v3100 = vpop.f32.mrb[0].mxu0
  %v3101 = vadd.f32 0.0, %v3100
  %v3102 = vpop.f32.mrb[0].mxu0
  %3103 = vmatprep.mubr.f32.mxu0 0.0
  %3104 = vmatmul.mubr.f32.gmra.mrb[0].mxu0 %v2760
  %v3105 = vpop.f32.mrb[0].mxu0
  %v3106 = vadd.f32 0.0, %v3105
  %v3107 = vpop.f32.mrb[0].mxu0
  %3108 = vmatprep.mubr.f32.mxu0 0.0
  %3109 = vmatmul.mubr.f32.gmra.mrb[0].mxu0 %v2763
  %v3110 = vpop.f32.mrb[0].mxu0
  %v3111 = vadd.f32 0.0, %v3110
  %v3112 = vpop.f32.mrb[0].mxu0
  %3113 = vmatprep.mubr.f32.mxu0 0.0
  %3114 = vmatmul.mubr.f32.gmra.mrb[0].mxu0 %v2766
  %v3115 = vpop.f32.mrb[0].mxu0
  %v3116 = vadd.f32 0.0, %v3115
  %v3117 = vpop.f32.mrb[0].mxu0
  %3118 = vmatprep.mubr.f32.mxu0 0.0
  %3119 = vmatmul.mubr.f32.gmra.mrb[0].mxu0 %v2769
  %v3120 = vpop.f32.mrb[0].mxu0
  %v3121 = vadd.f32 0.0, %v3120
  %v3122 = vpop.f32.mrb[0].mxu0
  %3123 = vmatprep.mubr.f32.mxu0 0.0
  %3124 = vmatmul.mubr.f32.gmra.mrb[0].mxu0 %v2772
  %v3125 = vpop.f32.mrb[0].mxu0
  %v3126 = vadd.f32 0.0, %v3125
  %v3127 = vpop.f32.mrb[0].mxu0
  %3128 = vmatprep.mubr.f32.mxu0 0.0
  %3129 = vmatmul.mubr.f32.gmra.mrb[0].mxu0 %v2775
  %v3130 = vpop.f32.mrb[0].mxu0
  %v3131 = vadd.f32 0.0, %v3130
  %v3132 = vpop.f32.mrb[0].mxu0
  %3133 = vmatprep.mubr.f32.mxu0 0.0
  %3134 = vmatmul.mubr.f32.gmra.mrb[0].mxu0 %v2778
  %v3135 = vpop.f32.mrb[0].mxu0
  %v3136 = vadd.f32 0.0, %v3135
  %v3137 = vpop.f32.mrb[0].mxu0
  %3138 = vmatprep.mubr.f32.mxu0 0.0
  %3139 = vmatmul.mubr.f32.gmra.mrb[0].mxu0 %v2781
  %v3140 = vpop.f32.mrb[0].mxu0
  %v3141 = vadd.f32 0.0, %v3140
  %v3142 = vpop.f32.mrb[0].mxu0
  %3143 = vmatprep.mubr.f32.mxu0 0.0
  %3144 = vmatmul.mubr.f32.gmra.mrb[0].mxu0 %v2784
  %v3145 = vpop.f32.mrb[0].mxu0
  %v3146 = vadd.f32 0.0, %v3145
  %v3147 = vpop.f32.mrb[0].mxu0
  %3148 = vmatprep.mubr.f32.mxu0 0.0
  %3149 = vmatmul.mubr.f32.gmra.mrb[0].mxu0 %v2787
  %v3150 = vpop.f32.mrb[0].mxu0
  %v3151 = vadd.f32 0.0, %v3150
  %v3152 = vpop.f32.mrb[0].mxu0
  %3153 = vmatprep.mubr.f32.mxu0 0.0
  %3154 = vmatmul.mubr.f32.gmra.mrb[0].mxu0 %v2790
  %v3155 = vpop.f32.mrb[0].mxu0
  %v3156 = vadd.f32 0.0, %v3155
  %v3157 = vpop.f32.mrb[0].mxu0
  %3158 = vmatprep.mubr.f32.mxu0 0.0
  %3159 = vmatmul.mubr.f32.gmra.mrb[0].mxu0 %v2793
  %v3160 = vpop.f32.mrb[0].mxu0
  %v3161 = vadd.f32 0.0, %v3160
  %v3162 = vpop.f32.mrb[0].mxu0
  %3163 = vmatprep.mubr.f32.mxu0 0.0
  %3164 = vmatmul.mubr.f32.gmra.mrb[0].mxu0 %v2796
  %v3165 = vpop.f32.mrb[0].mxu0
  %v3166 = vadd.f32 0.0, %v3165
  %v3167 = vpop.f32.mrb[0].mxu0
  %3168 = vmatprep.mubr.f32.mxu0 0.0
  %3169 = vmatmul.mubr.f32.gmra.mrb[0].mxu0 %v2799
  %v3170 = vpop.f32.mrb[0].mxu0
  %v3171 = vadd.f32 0.0, %v3170
  %v3172 = vpop.f32.mrb[0].mxu0
  %3173 = vmatprep.mubr.f32.mxu0 0.0
  %3174 = vmatmul.mubr.f32.gmra.mrb[0].mxu0 %v2802
  %v3175 = vpop.f32.mrb[0].mxu0
  %v3176 = vadd.f32 0.0, %v3175
  %v3177 = vpop.f32.mrb[0].mxu0
  %3178 = vmatprep.mubr.f32.mxu0 0.0
  %3179 = vmatmul.mubr.f32.gmra.mrb[0].mxu0 %v2805
  %v3180 = vpop.f32.mrb[0].mxu0
  %v3181 = vadd.f32 0.0, %v3180
  %v3182 = vpop.f32.mrb[0].mxu0
  %3183 = vmatprep.mubr.f32.mxu0 0.0
  %3184 = vmatmul.mubr.f32.gmra.mrb[0].mxu0 %v2808
  %v3185 = vpop.f32.mrb[0].mxu0
  %v3186 = vadd.f32 0.0, %v3185
  %v3187 = vpop.f32.mrb[0].mxu0
  %3188 = vmatprep.mubr.f32.mxu0 0.0
  %3189 = vmatmul.mubr.f32.gmra.mrb[0].mxu0 %v2811
  %v3190 = vpop.f32.mrb[0].mxu0
  %v3191 = vadd.f32 0.0, %v3190
  %v3192 = vpop.f32.mrb[0].mxu0
  %3193 = vmatprep.mubr.f32.mxu0 0.0
  %3194 = vmatmul.mubr.f32.gmra.mrb[0].mxu0 %v2814
  %v3195 = vpop.f32.mrb[0].mxu0
  %v3196 = vadd.f32 0.0, %v3195
  %v3197 = vpop.f32.mrb[0].mxu0
  %3198 = vmatprep.mubr.f32.mxu0 0.0
  %3199 = vmatmul.mubr.f32.gmra.mrb[0].mxu0 %v2817
  %v3200 = vpop.f32.mrb[0].mxu0
  %v3201 = vadd.f32 0.0, %v3200
  %v3202 = vpop.f32.mrb[0].mxu0
  %3203 = vmatprep.mubr.f32.mxu0 0.0
  %3204 = vmatmul.mubr.f32.gmra.mrb[0].mxu0 %v2820
  %v3205 = vpop.f32.mrb[0].mxu0
  %v3206 = vadd.f32 0.0, %v3205
  %v3207 = vpop.f32.mrb[0].mxu0
  %3208 = vmatprep.mubr.f32.mxu0 0.0
  %3209 = vmatmul.mubr.f32.gmra.mrb[0].mxu0 %v2823
  %v3210 = vpop.f32.mrb[0].mxu0
  %v3211 = vadd.f32 0.0, %v3210
  %v3212 = vpop.f32.mrb[0].mxu0
  %3213 = vdwg.mxu0
  %v3214 = vld [vmem:[%s2] sm:$0x1]
  %v3215 = vld [vmem:[%s3] sm:$0x1]
  %v3216 = vsel %vm2120, %v2896, 0.0
  %v3217 = vsel %vm2120, %v2901, 0.0
  %v3218 = vadd.f32 %v3216, %v3217
  %v3219 = vsel %vm2120, %v2906, 0.0
  %v3220 = vadd.f32 %v3218, %v3219
  %v3221 = vsel %vm2120, %v2911, 0.0
  %v3222 = vadd.f32 %v3220, %v3221
  %v3223 = vsel %vm2120, %v2916, 0.0
  %v3224 = vadd.f32 %v3222, %v3223
  %v3225 = vsel %vm2120, %v2921, 0.0
  %v3226 = vadd.f32 %v3224, %v3225
  %v3227 = vsel %vm2120, %v2926, 0.0
  %v3228 = vadd.f32 %v3226, %v3227
  %v3229 = vsel %vm2120, %v2931, 0.0
  %v3230 = vadd.f32 %v3228, %v3229
  %v3231 = vsel %vm2120, %v2936, 0.0
  %v3232 = vadd.f32 %v3230, %v3231
  %v3233 = vsel %vm2120, %v2941, 0.0
  %v3234 = vadd.f32 %v3232, %v3233
  %v3235 = vsel %vm2120, %v2946, 0.0
  %v3236 = vadd.f32 %v3234, %v3235
  %v3237 = vsel %vm2120, %v2951, 0.0
  %v3238 = vadd.f32 %v3236, %v3237
  %v3239 = vsel %vm2120, %v2956, 0.0
  %v3240 = vadd.f32 %v3238, %v3239
  %v3241 = vsel %vm2120, %v2961, 0.0
  %v3242 = vadd.f32 %v3240, %v3241
  %v3243 = vsel %vm2120, %v2966, 0.0
  %v3244 = vadd.f32 %v3242, %v3243
  %v3245 = vsel %vm2120, %v2971, 0.0
  %v3246 = vadd.f32 %v3244, %v3245
  %v3247 = vsel %vm2120, %v2976, 0.0
  %v3248 = vadd.f32 %v3246, %v3247
  %v3249 = vsel %vm2120, %v2981, 0.0
  %v3250 = vadd.f32 %v3248, %v3249
  %v3251 = vsel %vm2120, %v2986, 0.0
  %v3252 = vadd.f32 %v3250, %v3251
  %v3253 = vsel %vm2120, %v2991, 0.0
  %v3254 = vadd.f32 %v3252, %v3253
  %v3255 = vsel %vm2120, %v2996, 0.0
  %v3256 = vadd.f32 %v3254, %v3255
  %v3257 = vsel %vm2120, %v3001, 0.0
  %v3258 = vadd.f32 %v3256, %v3257
  %v3259 = vsel %vm2120, %v3006, 0.0
  %v3260 = vadd.f32 %v3258, %v3259
  %v3261 = vsel %vm2120, %v3011, 0.0
  %v3262 = vadd.f32 %v3260, %v3261
  %v3263 = vsel %vm2120, %v3016, 0.0
  %v3264 = vadd.f32 %v3262, %v3263
  %v3265 = vsel %vm2120, %v3021, 0.0
  %v3266 = vadd.f32 %v3264, %v3265
  %v3267 = vsel %vm2120, %v3026, 0.0
  %v3268 = vadd.f32 %v3266, %v3267
  %v3269 = vsel %vm2120, %v3031, 0.0
  %v3270 = vadd.f32 %v3268, %v3269
  %v3271 = vsel %vm2120, %v3036, 0.0
  %v3272 = vadd.f32 %v3270, %v3271
  %v3273 = vsel %vm2120, %v3041, 0.0
  %v3274 = vadd.f32 %v3272, %v3273
  %v3275 = vsel %vm2120, %v3046, 0.0
  %v3276 = vadd.f32 %v3274, %v3275
  %v3277 = vsel %vm2120, %v3051, 0.0
  %v3278 = vadd.f32 %v3276, %v3277
  %v3279 = vrot.slane %v3278, 4
  %v3280 = vadd.f32 %v3278, %v3279
  %v3281 = vrot.slane %v3280, 2
  %v3282 = vadd.f32 %v3280, %v3281
  %v3283 = vrot.slane %v3282, 1
  %v3284 = vadd.f32 %v3282, %v3283
  %v3285 = vsel %vm2120, %v3056, 0.0
  %v3286 = vsel %vm2120, %v3061, 0.0
  %v3287 = vadd.f32 %v3285, %v3286
  %v3288 = vsel %vm2120, %v3066, 0.0
  %v3289 = vadd.f32 %v3287, %v3288
  %v3290 = vsel %vm2120, %v3071, 0.0
  %v3291 = vadd.f32 %v3289, %v3290
  %v3292 = vsel %vm2120, %v3076, 0.0
  %v3293 = vadd.f32 %v3291, %v3292
  %v3294 = vsel %vm2120, %v3081, 0.0
  %v3295 = vadd.f32 %v3293, %v3294
  %v3296 = vsel %vm2120, %v3086, 0.0
  %v3297 = vadd.f32 %v3295, %v3296
  %v3298 = vsel %vm2120, %v3091, 0.0
  %v3299 = vadd.f32 %v3297, %v3298
  %v3300 = vsel %vm2120, %v3096, 0.0
  %v3301 = vadd.f32 %v3299, %v3300
  %v3302 = vsel %vm2120, %v3101, 0.0
  %v3303 = vadd.f32 %v3301, %v3302
  %v3304 = vsel %vm2120, %v3106, 0.0
  %v3305 = vadd.f32 %v3303, %v3304
  %v3306 = vsel %vm2120, %v3111, 0.0
  %v3307 = vadd.f32 %v3305, %v3306
  %v3308 = vsel %vm2120, %v3116, 0.0
  %v3309 = vadd.f32 %v3307, %v3308
  %v3310 = vsel %vm2120, %v3121, 0.0
  %v3311 = vadd.f32 %v3309, %v3310
  %v3312 = vsel %vm2120, %v3126, 0.0
  %v3313 = vadd.f32 %v3311, %v3312
  %v3314 = vsel %vm2120, %v3131, 0.0
  %v3315 = vadd.f32 %v3313, %v3314
  %v3316 = vsel %vm2120, %v3136, 0.0
  %v3317 = vadd.f32 %v3315, %v3316
  %v3318 = vsel %vm2120, %v3141, 0.0
  %v3319 = vadd.f32 %v3317, %v3318
  %v3320 = vsel %vm2120, %v3146, 0.0
  %v3321 = vadd.f32 %v3319, %v3320
  %v3322 = vsel %vm2120, %v3151, 0.0
  %v3323 = vadd.f32 %v3321, %v3322
  %v3324 = vsel %vm2120, %v3156, 0.0
  %v3325 = vadd.f32 %v3323, %v3324
  %v3326 = vsel %vm2120, %v3161, 0.0
  %v3327 = vadd.f32 %v3325, %v3326
  %v3328 = vsel %vm2120, %v3166, 0.0
  %v3329 = vadd.f32 %v3327, %v3328
  %v3330 = vsel %vm2120, %v3171, 0.0
  %v3331 = vadd.f32 %v3329, %v3330
  %v3332 = vsel %vm2120, %v3176, 0.0
  %v3333 = vadd.f32 %v3331, %v3332
  %v3334 = vsel %vm2120, %v3181, 0.0
  %v3335 = vadd.f32 %v3333, %v3334
  %v3336 = vsel %vm2120, %v3186, 0.0
  %v3337 = vadd.f32 %v3335, %v3336
  %v3338 = vsel %vm2120, %v3191, 0.0
  %v3339 = vadd.f32 %v3337, %v3338
  %v3340 = vsel %vm2120, %v3196, 0.0
  %v3341 = vadd.f32 %v3339, %v3340
  %v3342 = vsel %vm2120, %v3201, 0.0
  %v3343 = vadd.f32 %v3341, %v3342
  %v3344 = vsel %vm2120, %v3206, 0.0
  %v3345 = vadd.f32 %v3343, %v3344
  %v3346 = vsel %vm2120, %v3211, 0.0
  %v3347 = vadd.f32 %v3345, %v3346
  %v3348 = vrot.slane %v3347, 4
  %v3349 = vadd.f32 %v3347, %v3348
  %v3350 = vrot.slane %v3349, 2
  %v3351 = vadd.f32 %v3349, %v3350
  %v3352 = vrot.slane %v3351, 1
  %v3353 = vadd.f32 %v3351, %v3352
  %v3354 = vmul.f32 %v2896, %v2896
  %v3355 = vmul.f32 %v2901, %v2901
  %v3356 = vmul.f32 %v2906, %v2906
  %v3357 = vmul.f32 %v2911, %v2911
  %v3358 = vmul.f32 %v2916, %v2916
  %v3359 = vmul.f32 %v2921, %v2921
  %v3360 = vmul.f32 %v2926, %v2926
  %v3361 = vmul.f32 %v2931, %v2931
  %v3362 = vmul.f32 %v2936, %v2936
  %v3363 = vmul.f32 %v2941, %v2941
  %v3364 = vmul.f32 %v2946, %v2946
  %v3365 = vmul.f32 %v2951, %v2951
  %v3366 = vmul.f32 %v2956, %v2956
  %v3367 = vmul.f32 %v2961, %v2961
  %v3368 = vmul.f32 %v2966, %v2966
  %v3369 = vmul.f32 %v2971, %v2971
  %v3370 = vmul.f32 %v2976, %v2976
  %v3371 = vmul.f32 %v2981, %v2981
  %v3372 = vmul.f32 %v2986, %v2986
  %v3373 = vmul.f32 %v2991, %v2991
  %v3374 = vmul.f32 %v2996, %v2996
  %v3375 = vmul.f32 %v3001, %v3001
  %v3376 = vmul.f32 %v3006, %v3006
  %v3377 = vmul.f32 %v3011, %v3011
  %v3378 = vmul.f32 %v3016, %v3016
  %v3379 = vmul.f32 %v3021, %v3021
  %v3380 = vmul.f32 %v3026, %v3026
  %v3381 = vmul.f32 %v3031, %v3031
  %v3382 = vmul.f32 %v3036, %v3036
  %v3383 = vmul.f32 %v3041, %v3041
  %v3384 = vmul.f32 %v3046, %v3046
  %v3385 = vmul.f32 %v3051, %v3051
  %v3386 = vmul.f32 %v3056, %v3056
  %v3387 = vmul.f32 %v3061, %v3061
  %v3388 = vmul.f32 %v3066, %v3066
  %v3389 = vmul.f32 %v3071, %v3071
  %v3390 = vmul.f32 %v3076, %v3076
  %v3391 = vmul.f32 %v3081, %v3081
  %v3392 = vmul.f32 %v3086, %v3086
  %v3393 = vmul.f32 %v3091, %v3091
  %v3394 = vmul.f32 %v3096, %v3096
  %v3395 = vmul.f32 %v3101, %v3101
  %v3396 = vmul.f32 %v3106, %v3106
  %v3397 = vmul.f32 %v3111, %v3111
  %v3398 = vmul.f32 %v3116, %v3116
  %v3399 = vmul.f32 %v3121, %v3121
  %v3400 = vmul.f32 %v3126, %v3126
  %v3401 = vmul.f32 %v3131, %v3131
  %v3402 = vmul.f32 %v3136, %v3136
  %v3403 = vmul.f32 %v3141, %v3141
  %v3404 = vmul.f32 %v3146, %v3146
  %v3405 = vmul.f32 %v3151, %v3151
  %v3406 = vmul.f32 %v3156, %v3156
  %v3407 = vmul.f32 %v3161, %v3161
  %v3408 = vmul.f32 %v3166, %v3166
  %v3409 = vmul.f32 %v3171, %v3171
  %v3410 = vmul.f32 %v3176, %v3176
  %v3411 = vmul.f32 %v3181, %v3181
  %v3412 = vmul.f32 %v3186, %v3186
  %v3413 = vmul.f32 %v3191, %v3191
  %v3414 = vmul.f32 %v3196, %v3196
  %v3415 = vmul.f32 %v3201, %v3201
  %v3416 = vmul.f32 %v3206, %v3206
  %v3417 = vmul.f32 %v3211, %v3211
  %v3418 = vsel %vm2120, %v3354, 0.0
  %v3419 = vsel %vm2120, %v3355, 0.0
  %v3420 = vadd.f32 %v3418, %v3419
  %v3421 = vsel %vm2120, %v3356, 0.0
  %v3422 = vadd.f32 %v3420, %v3421
  %v3423 = vsel %vm2120, %v3357, 0.0
  %v3424 = vadd.f32 %v3422, %v3423
  %v3425 = vsel %vm2120, %v3358, 0.0
  %v3426 = vadd.f32 %v3424, %v3425
  %v3427 = vsel %vm2120, %v3359, 0.0
  %v3428 = vadd.f32 %v3426, %v3427
  %v3429 = vsel %vm2120, %v3360, 0.0
  %v3430 = vadd.f32 %v3428, %v3429
  %v3431 = vsel %vm2120, %v3361, 0.0
  %v3432 = vadd.f32 %v3430, %v3431
  %v3433 = vsel %vm2120, %v3362, 0.0
  %v3434 = vadd.f32 %v3432, %v3433
  %v3435 = vsel %vm2120, %v3363, 0.0
  %v3436 = vadd.f32 %v3434, %v3435
  %v3437 = vsel %vm2120, %v3364, 0.0
  %v3438 = vadd.f32 %v3436, %v3437
  %v3439 = vsel %vm2120, %v3365, 0.0
  %v3440 = vadd.f32 %v3438, %v3439
  %v3441 = vsel %vm2120, %v3366, 0.0
  %v3442 = vadd.f32 %v3440, %v3441
  %v3443 = vsel %vm2120, %v3367, 0.0
  %v3444 = vadd.f32 %v3442, %v3443
  %v3445 = vsel %vm2120, %v3368, 0.0
  %v3446 = vadd.f32 %v3444, %v3445
  %v3447 = vsel %vm2120, %v3369, 0.0
  %v3448 = vadd.f32 %v3446, %v3447
  %v3449 = vsel %vm2120, %v3370, 0.0
  %v3450 = vadd.f32 %v3448, %v3449
  %v3451 = vsel %vm2120, %v3371, 0.0
  %v3452 = vadd.f32 %v3450, %v3451
  %v3453 = vsel %vm2120, %v3372, 0.0
  %v3454 = vadd.f32 %v3452, %v3453
  %v3455 = vsel %vm2120, %v3373, 0.0
  %v3456 = vadd.f32 %v3454, %v3455
  %v3457 = vsel %vm2120, %v3374, 0.0
  %v3458 = vadd.f32 %v3456, %v3457
  %v3459 = vsel %vm2120, %v3375, 0.0
  %v3460 = vadd.f32 %v3458, %v3459
  %v3461 = vsel %vm2120, %v3376, 0.0
  %v3462 = vadd.f32 %v3460, %v3461
  %v3463 = vsel %vm2120, %v3377, 0.0
  %v3464 = vadd.f32 %v3462, %v3463
  %v3465 = vsel %vm2120, %v3378, 0.0
  %v3466 = vadd.f32 %v3464, %v3465
  %v3467 = vsel %vm2120, %v3379, 0.0
  %v3468 = vadd.f32 %v3466, %v3467
  %v3469 = vsel %vm2120, %v3380, 0.0
  %v3470 = vadd.f32 %v3468, %v3469
  %v3471 = vsel %vm2120, %v3381, 0.0
  %v3472 = vadd.f32 %v3470, %v3471
  %v3473 = vsel %vm2120, %v3382, 0.0
  %v3474 = vadd.f32 %v3472, %v3473
  %v3475 = vsel %vm2120, %v3383, 0.0
  %v3476 = vadd.f32 %v3474, %v3475
  %v3477 = vsel %vm2120, %v3384, 0.0
  %v3478 = vadd.f32 %v3476, %v3477
  %v3479 = vsel %vm2120, %v3385, 0.0
  %v3480 = vadd.f32 %v3478, %v3479
  %v3481 = vrot.slane %v3480, 4
  %v3482 = vadd.f32 %v3480, %v3481
  %v3483 = vrot.slane %v3482, 2
  %v3484 = vadd.f32 %v3482, %v3483
  %v3485 = vrot.slane %v3484, 1
  %v3486 = vadd.f32 %v3484, %v3485
  %v3487 = vsel %vm2120, %v3386, 0.0
  %v3488 = vsel %vm2120, %v3387, 0.0
  %v3489 = vadd.f32 %v3487, %v3488
  %v3490 = vsel %vm2120, %v3388, 0.0
  %v3491 = vadd.f32 %v3489, %v3490
  %v3492 = vsel %vm2120, %v3389, 0.0
  %v3493 = vadd.f32 %v3491, %v3492
  %v3494 = vsel %vm2120, %v3390, 0.0
  %v3495 = vadd.f32 %v3493, %v3494
  %v3496 = vsel %vm2120, %v3391, 0.0
  %v3497 = vadd.f32 %v3495, %v3496
  %v3498 = vsel %vm2120, %v3392, 0.0
  %v3499 = vadd.f32 %v3497, %v3498
  %v3500 = vsel %vm2120, %v3393, 0.0
  %v3501 = vadd.f32 %v3499, %v3500
  %v3502 = vsel %vm2120, %v3394, 0.0
  %v3503 = vadd.f32 %v3501, %v3502
  %v3504 = vsel %vm2120, %v3395, 0.0
  %v3505 = vadd.f32 %v3503, %v3504
  %v3506 = vsel %vm2120, %v3396, 0.0
  %v3507 = vadd.f32 %v3505, %v3506
  %v3508 = vsel %vm2120, %v3397, 0.0
  %v3509 = vadd.f32 %v3507, %v3508
  %v3510 = vsel %vm2120, %v3398, 0.0
  %v3511 = vadd.f32 %v3509, %v3510
  %v3512 = vsel %vm2120, %v3399, 0.0
  %v3513 = vadd.f32 %v3511, %v3512
  %v3514 = vsel %vm2120, %v3400, 0.0
  %v3515 = vadd.f32 %v3513, %v3514
  %v3516 = vsel %vm2120, %v3401, 0.0
  %v3517 = vadd.f32 %v3515, %v3516
  %v3518 = vsel %vm2120, %v3402, 0.0
  %v3519 = vadd.f32 %v3517, %v3518
  %v3520 = vsel %vm2120, %v3403, 0.0
  %v3521 = vadd.f32 %v3519, %v3520
  %v3522 = vsel %vm2120, %v3404, 0.0
  %v3523 = vadd.f32 %v3521, %v3522
  %v3524 = vsel %vm2120, %v3405, 0.0
  %v3525 = vadd.f32 %v3523, %v3524
  %v3526 = vsel %vm2120, %v3406, 0.0
  %v3527 = vadd.f32 %v3525, %v3526
  %v3528 = vsel %vm2120, %v3407, 0.0
  %v3529 = vadd.f32 %v3527, %v3528
  %v3530 = vsel %vm2120, %v3408, 0.0
  %v3531 = vadd.f32 %v3529, %v3530
  %v3532 = vsel %vm2120, %v3409, 0.0
  %v3533 = vadd.f32 %v3531, %v3532
  %v3534 = vsel %vm2120, %v3410, 0.0
  %v3535 = vadd.f32 %v3533, %v3534
  %v3536 = vsel %vm2120, %v3411, 0.0
  %v3537 = vadd.f32 %v3535, %v3536
  %v3538 = vsel %vm2120, %v3412, 0.0
  %v3539 = vadd.f32 %v3537, %v3538
  %v3540 = vsel %vm2120, %v3413, 0.0
  %v3541 = vadd.f32 %v3539, %v3540
  %v3542 = vsel %vm2120, %v3414, 0.0
  %v3543 = vadd.f32 %v3541, %v3542
  %v3544 = vsel %vm2120, %v3415, 0.0
  %v3545 = vadd.f32 %v3543, %v3544
  %v3546 = vsel %vm2120, %v3416, 0.0
  %v3547 = vadd.f32 %v3545, %v3546
  %v3548 = vsel %vm2120, %v3417, 0.0
  %v3549 = vadd.f32 %v3547, %v3548
  %v3550 = vrot.slane %v3549, 4
  %v3551 = vadd.f32 %v3549, %v3550
  %v3552 = vrot.slane %v3551, 2
  %v3553 = vadd.f32 %v3551, %v3552
  %v3554 = vrot.slane %v3553, 1
  %v3555 = vadd.f32 %v3553, %v3554
  %v3556 = vmul.f32 %v3284, 0.00390625
  %v3557 = vmul.f32 %v3353, 0.00390625
  %v3558 = vmul.f32 %v3486, 0.00390625
  %v3559 = vmul.f32 %v3555, 0.00390625
  %v3560 = vmul.f32 %v3556, %v3556
  %v3561 = vmul.f32 %v3557, %v3557
  %v3562 = vsub.f32 %v3558, %v3560
  %v3563 = vsub.f32 %v3559, %v3561
  %v3564 = vadd.f32 %v3562, 1e-05
  %v3565 = vadd.f32 %v3563, 1e-05
  %v3566 = vrsqrt.pop %v3564
  %v3567 = vrsqrt.pop %v3565
  %v3568 = vmul.f32 %v3566, %v3214
  %v3569 = vmul.f32 %v3567, %v3214
  %v3570 = vmul.f32 %v3556, %v3568
  %v3571 = vmul.f32 %v3557, %v3569
  %v3572 = vsub.f32 %v3215, %v3570
  %v3573 = vsub.f32 %v3215, %v3571
  %v3574 = vlaneseq
  %v3575 = vshrl.u32 %v3574, 7
  %v3576 = vsub.s32 0, %v3575
  %v3577 = vrot.slane %v3568, %v3576
  %v3578 = vlaneseq
  %v3579 = vshrl.u32 %v3578, 7
  %v3580 = vsub.s32 0, %v3579
  %v3581 = vrot.slane %v3569, %v3580
  %v3582 = vmul.f32 %v2896, %v3577
  %v3583 = vmul.f32 %v2901, %v3577
  %v3584 = vmul.f32 %v2906, %v3577
  %v3585 = vmul.f32 %v2911, %v3577
  %v3586 = vmul.f32 %v2916, %v3577
  %v3587 = vmul.f32 %v2921, %v3577
  %v3588 = vmul.f32 %v2926, %v3577
  %v3589 = vmul.f32 %v2931, %v3577
  %v3590 = vmul.f32 %v2936, %v3577
  %v3591 = vmul.f32 %v2941, %v3577
  %v3592 = vmul.f32 %v2946, %v3577
  %v3593 = vmul.f32 %v2951, %v3577
  %v3594 = vmul.f32 %v2956, %v3577
  %v3595 = vmul.f32 %v2961, %v3577
  %v3596 = vmul.f32 %v2966, %v3577
  %v3597 = vmul.f32 %v2971, %v3577
  %v3598 = vmul.f32 %v2976, %v3577
  %v3599 = vmul.f32 %v2981, %v3577
  %v3600 = vmul.f32 %v2986, %v3577
  %v3601 = vmul.f32 %v2991, %v3577
  %v3602 = vmul.f32 %v2996, %v3577
  %v3603 = vmul.f32 %v3001, %v3577
  %v3604 = vmul.f32 %v3006, %v3577
  %v3605 = vmul.f32 %v3011, %v3577
  %v3606 = vmul.f32 %v3016, %v3577
  %v3607 = vmul.f32 %v3021, %v3577
  %v3608 = vmul.f32 %v3026, %v3577
  %v3609 = vmul.f32 %v3031, %v3577
  %v3610 = vmul.f32 %v3036, %v3577
  %v3611 = vmul.f32 %v3041, %v3577
  %v3612 = vmul.f32 %v3046, %v3577
  %v3613 = vmul.f32 %v3051, %v3577
  %v3614 = vmul.f32 %v3056, %v3581
  %v3615 = vmul.f32 %v3061, %v3581
  %v3616 = vmul.f32 %v3066, %v3581
  %v3617 = vmul.f32 %v3071, %v3581
  %v3618 = vmul.f32 %v3076, %v3581
  %v3619 = vmul.f32 %v3081, %v3581
  %v3620 = vmul.f32 %v3086, %v3581
  %v3621 = vmul.f32 %v3091, %v3581
  %v3622 = vmul.f32 %v3096, %v3581
  %v3623 = vmul.f32 %v3101, %v3581
  %v3624 = vmul.f32 %v3106, %v3581
  %v3625 = vmul.f32 %v3111, %v3581
  %v3626 = vmul.f32 %v3116, %v3581
  %v3627 = vmul.f32 %v3121, %v3581
  %v3628 = vmul.f32 %v3126, %v3581
  %v3629 = vmul.f32 %v3131, %v3581
  %v3630 = vmul.f32 %v3136, %v3581
  %v3631 = vmul.f32 %v3141, %v3581
  %v3632 = vmul.f32 %v3146, %v3581
  %v3633 = vmul.f32 %v3151, %v3581
  %v3634 = vmul.f32 %v3156, %v3581
  %v3635 = vmul.f32 %v3161, %v3581
  %v3636 = vmul.f32 %v3166, %v3581
  %v3637 = vmul.f32 %v3171, %v3581
  %v3638 = vmul.f32 %v3176, %v3581
  %v3639 = vmul.f32 %v3181, %v3581
  %v3640 = vmul.f32 %v3186, %v3581
  %v3641 = vmul.f32 %v3191, %v3581
  %v3642 = vmul.f32 %v3196, %v3581
  %v3643 = vmul.f32 %v3201, %v3581
  %v3644 = vmul.f32 %v3206, %v3581
  %v3645 = vmul.f32 %v3211, %v3581
  %v3648 = vlaneseq
  %v3649 = vshrl.u32 %v3648, 7
  %v3650 = vsub.s32 0, %v3649
  %v3651 = vrot.slane %v3572, %v3650
  %v3652 = vlaneseq
  %v3653 = vshrl.u32 %v3652, 7
  %v3654 = vsub.s32 0, %v3653
  %v3655 = vrot.slane %v3573, %v3654
  %v3658 = vadd.f32 %v3582, %v3651
  %v3659 = vadd.f32 %v3583, %v3651
  %v3660 = vadd.f32 %v3584, %v3651
  %v3661 = vadd.f32 %v3585, %v3651
  %v3662 = vadd.f32 %v3586, %v3651
  %v3663 = vadd.f32 %v3587, %v3651
  %v3664 = vadd.f32 %v3588, %v3651
  %v3665 = vadd.f32 %v3589, %v3651
  %v3666 = vadd.f32 %v3590, %v3651
  %v3667 = vadd.f32 %v3591, %v3651
  %v3668 = vadd.f32 %v3592, %v3651
  %v3669 = vadd.f32 %v3593, %v3651
  %v3670 = vadd.f32 %v3594, %v3651
  %v3671 = vadd.f32 %v3595, %v3651
  %v3672 = vadd.f32 %v3596, %v3651
  %v3673 = vadd.f32 %v3597, %v3651
  %v3674 = vadd.f32 %v3598, %v3651
  %v3675 = vadd.f32 %v3599, %v3651
  %v3676 = vadd.f32 %v3600, %v3651
  %v3677 = vadd.f32 %v3601, %v3651
  %v3678 = vadd.f32 %v3602, %v3651
  %v3679 = vadd.f32 %v3603, %v3651
  %v3680 = vadd.f32 %v3604, %v3651
  %v3681 = vadd.f32 %v3605, %v3651
  %v3682 = vadd.f32 %v3606, %v3651
  %v3683 = vadd.f32 %v3607, %v3651
  %v3684 = vadd.f32 %v3608, %v3651
  %v3685 = vadd.f32 %v3609, %v3651
  %v3686 = vadd.f32 %v3610, %v3651
  %v3687 = vadd.f32 %v3611, %v3651
  %v3688 = vadd.f32 %v3612, %v3651
  %v3689 = vadd.f32 %v3613, %v3651
  %v3690 = vadd.f32 %v3614, %v3655
  %v3691 = vadd.f32 %v3615, %v3655
  %v3692 = vadd.f32 %v3616, %v3655
  %v3693 = vadd.f32 %v3617, %v3655
  %v3694 = vadd.f32 %v3618, %v3655
  %v3695 = vadd.f32 %v3619, %v3655
  %v3696 = vadd.f32 %v3620, %v3655
  %v3697 = vadd.f32 %v3621, %v3655
  %v3698 = vadd.f32 %v3622, %v3655
  %v3699 = vadd.f32 %v3623, %v3655
  %v3700 = vadd.f32 %v3624, %v3655
  %v3701 = vadd.f32 %v3625, %v3655
  %v3702 = vadd.f32 %v3626, %v3655
  %v3703 = vadd.f32 %v3627, %v3655
  %v3704 = vadd.f32 %v3628, %v3655
  %v3705 = vadd.f32 %v3629, %v3655
  %v3706 = vadd.f32 %v3630, %v3655
  %v3707 = vadd.f32 %v3631, %v3655
  %v3708 = vadd.f32 %v3632, %v3655
  %v3709 = vadd.f32 %v3633, %v3655
  %v3710 = vadd.f32 %v3634, %v3655
  %v3711 = vadd.f32 %v3635, %v3655
  %v3712 = vadd.f32 %v3636, %v3655
  %v3713 = vadd.f32 %v3637, %v3655
  %v3714 = vadd.f32 %v3638, %v3655
  %v3715 = vadd.f32 %v3639, %v3655
  %v3716 = vadd.f32 %v3640, %v3655
  %v3717 = vadd.f32 %v3641, %v3655
  %v3718 = vadd.f32 %v3642, %v3655
  %v3719 = vadd.f32 %v3643, %v3655
  %v3720 = vadd.f32 %v3644, %v3655
  %v3721 = vadd.f32 %v3645, %v3655
  %v3722 = vmax.f32 %v3658, 0.0
  %v3723 = vmax.f32 %v3659, 0.0
  %v3724 = vmax.f32 %v3660, 0.0
  %v3725 = vmax.f32 %v3661, 0.0
  %v3726 = vmax.f32 %v3662, 0.0
  %v3727 = vmax.f32 %v3663, 0.0
  %v3728 = vmax.f32 %v3664, 0.0
  %v3729 = vmax.f32 %v3665, 0.0
  %v3730 = vmax.f32 %v3666, 0.0
  %v3731 = vmax.f32 %v3667, 0.0
  %v3732 = vmax.f32 %v3668, 0.0
  %v3733 = vmax.f32 %v3669, 0.0
  %v3734 = vmax.f32 %v3670, 0.0
  %v3735 = vmax.f32 %v3671, 0.0
  %v3736 = vmax.f32 %v3672, 0.0
  %v3737 = vmax.f32 %v3673, 0.0
  %v3738 = vmax.f32 %v3674, 0.0
  %v3739 = vmax.f32 %v3675, 0.0
  %v3740 = vmax.f32 %v3676, 0.0
  %v3741 = vmax.f32 %v3677, 0.0
  %v3742 = vmax.f32 %v3678, 0.0
  %v3743 = vmax.f32 %v3679, 0.0
  %v3744 = vmax.f32 %v3680, 0.0
  %v3745 = vmax.f32 %v3681, 0.0
  %v3746 = vmax.f32 %v3682, 0.0
  %v3747 = vmax.f32 %v3683, 0.0
  %v3748 = vmax.f32 %v3684, 0.0
  %v3749 = vmax.f32 %v3685, 0.0
  %v3750 = vmax.f32 %v3686, 0.0
  %v3751 = vmax.f32 %v3687, 0.0
  %v3752 = vmax.f32 %v3688, 0.0
  %v3753 = vmax.f32 %v3689, 0.0
  %v3754 = vmax.f32 %v3690, 0.0
  %v3755 = vmax.f32 %v3691, 0.0
  %v3756 = vmax.f32 %v3692, 0.0
  %v3757 = vmax.f32 %v3693, 0.0
  %v3758 = vmax.f32 %v3694, 0.0
  %v3759 = vmax.f32 %v3695, 0.0
  %v3760 = vmax.f32 %v3696, 0.0
  %v3761 = vmax.f32 %v3697, 0.0
  %v3762 = vmax.f32 %v3698, 0.0
  %v3763 = vmax.f32 %v3699, 0.0
  %v3764 = vmax.f32 %v3700, 0.0
  %v3765 = vmax.f32 %v3701, 0.0
  %v3766 = vmax.f32 %v3702, 0.0
  %v3767 = vmax.f32 %v3703, 0.0
  %v3768 = vmax.f32 %v3704, 0.0
  %v3769 = vmax.f32 %v3705, 0.0
  %v3770 = vmax.f32 %v3706, 0.0
  %v3771 = vmax.f32 %v3707, 0.0
  %v3772 = vmax.f32 %v3708, 0.0
  %v3773 = vmax.f32 %v3709, 0.0
  %v3774 = vmax.f32 %v3710, 0.0
  %v3775 = vmax.f32 %v3711, 0.0
  %v3776 = vmax.f32 %v3712, 0.0
  %v3777 = vmax.f32 %v3713, 0.0
  %v3778 = vmax.f32 %v3714, 0.0
  %v3779 = vmax.f32 %v3715, 0.0
  %v3780 = vmax.f32 %v3716, 0.0
  %v3781 = vmax.f32 %v3717, 0.0
  %v3782 = vmax.f32 %v3718, 0.0
  %v3783 = vmax.f32 %v3719, 0.0
  %v3784 = vmax.f32 %v3720, 0.0
  %v3785 = vmax.f32 %v3721, 0.0
  %v3818 = vrot.slane %v3724, 1
  %v3819 = vrot.slane %v3722, 1
  %v3820 = vrot.slane %v3726, 1
  %v3821 = vrot.slane %v3728, 1
  %v3822 = vrot.slane %v3730, 1
  %v3823 = vrot.slane %v3732, 1
  %v3824 = vrot.slane %v3734, 1
  %v3825 = vrot.slane %v3736, 1
  %v3826 = vrot.slane %v3738, 1
  %v3827 = vrot.slane %v3740, 1
  %v3828 = vrot.slane %v3742, 1
  %v3829 = vrot.slane %v3744, 1
  %v3830 = vrot.slane %v3746, 1
  %v3831 = vrot.slane %v3748, 1
  %v3832 = vrot.slane %v3750, 1
  %v3833 = vrot.slane %v3752, 1
  %v3834 = vrot.slane %v3756, 1
  %v3835 = vrot.slane %v3754, 1
  %v3836 = vrot.slane %v3758, 1
  %v3837 = vrot.slane %v3760, 1
  %v3838 = vrot.slane %v3762, 1
  %v3839 = vrot.slane %v3764, 1
  %v3840 = vrot.slane %v3766, 1
  %v3841 = vrot.slane %v3768, 1
  %v3842 = vrot.slane %v3770, 1
  %v3843 = vrot.slane %v3772, 1
  %v3844 = vrot.slane %v3774, 1
  %v3845 = vrot.slane %v3776, 1
  %v3846 = vrot.slane %v3778, 1
  %v3847 = vrot.slane %v3780, 1
  %v3848 = vrot.slane %v3782, 1
  %v3849 = vrot.slane %v3784, 1
  %v3914 = vrot.slane %v3724, 7
  %v3915 = vrot.slane %v3725, 7
  %v3916 = vsel %vm228, %v3914, %v3915
  %v3917 = vrot.slane %v3722, 7
  %v3918 = vrot.slane %v3723, 7
  %v3919 = vsel %vm228, %v3917, %v3918
  %v3920 = vrot.slane %v3726, 7
  %v3921 = vrot.slane %v3727, 7
  %v3922 = vsel %vm228, %v3920, %v3921
  %v3923 = vrot.slane %v3728, 7
  %v3924 = vrot.slane %v3729, 7
  %v3925 = vsel %vm228, %v3923, %v3924
  %v3926 = vrot.slane %v3730, 7
  %v3927 = vrot.slane %v3731, 7
  %v3928 = vsel %vm228, %v3926, %v3927
  %v3929 = vrot.slane %v3732, 7
  %v3930 = vrot.slane %v3733, 7
  %v3931 = vsel %vm228, %v3929, %v3930
  %v3932 = vrot.slane %v3734, 7
  %v3933 = vrot.slane %v3735, 7
  %v3934 = vsel %vm228, %v3932, %v3933
  %v3935 = vrot.slane %v3736, 7
  %v3936 = vrot.slane %v3737, 7
  %v3937 = vsel %vm228, %v3935, %v3936
  %v3938 = vrot.slane %v3738, 7
  %v3939 = vrot.slane %v3739, 7
  %v3940 = vsel %vm228, %v3938, %v3939
  %v3941 = vrot.slane %v3740, 7
  %v3942 = vrot.slane %v3741, 7
  %v3943 = vsel %vm228, %v3941, %v3942
  %v3944 = vrot.slane %v3742, 7
  %v3945 = vrot.slane %v3743, 7
  %v3946 = vsel %vm228, %v3944, %v3945
  %v3947 = vrot.slane %v3744, 7
  %v3948 = vrot.slane %v3745, 7
  %v3949 = vsel %vm228, %v3947, %v3948
  %v3950 = vrot.slane %v3746, 7
  %v3951 = vrot.slane %v3747, 7
  %v3952 = vsel %vm228, %v3950, %v3951
  %v3953 = vrot.slane %v3748, 7
  %v3954 = vrot.slane %v3749, 7
  %v3955 = vsel %vm228, %v3953, %v3954
  %v3956 = vrot.slane %v3750, 7
  %v3957 = vrot.slane %v3751, 7
  %v3958 = vsel %vm228, %v3956, %v3957
  %v3959 = vrot.slane %v3752, 7
  %v3960 = vrot.slane %v3753, 7
  %v3961 = vsel %vm228, %v3959, %v3960
  %v3962 = vrot.slane %v3756, 7
  %v3963 = vrot.slane %v3757, 7
  %v3964 = vsel %vm228, %v3962, %v3963
  %v3965 = vrot.slane %v3754, 7
  %v3966 = vrot.slane %v3755, 7
  %v3967 = vsel %vm228, %v3965, %v3966
  %v3968 = vrot.slane %v3758, 7
  %v3969 = vrot.slane %v3759, 7
  %v3970 = vsel %vm228, %v3968, %v3969
  %v3971 = vrot.slane %v3760, 7
  %v3972 = vrot.slane %v3761, 7
  %v3973 = vsel %vm228, %v3971, %v3972
  %v3974 = vrot.slane %v3762, 7
  %v3975 = vrot.slane %v3763, 7
  %v3976 = vsel %vm228, %v3974, %v3975
  %v3977 = vrot.slane %v3764, 7
  %v3978 = vrot.slane %v3765, 7
  %v3979 = vsel %vm228, %v3977, %v3978
  %v3980 = vrot.slane %v3766, 7
  %v3981 = vrot.slane %v3767, 7
  %v3982 = vsel %vm228, %v3980, %v3981
  %v3983 = vrot.slane %v3768, 7
  %v3984 = vrot.slane %v3769, 7
  %v3985 = vsel %vm228, %v3983, %v3984
  %v3986 = vrot.slane %v3770, 7
  %v3987 = vrot.slane %v3771, 7
  %v3988 = vsel %vm228, %v3986, %v3987
  %v3989 = vrot.slane %v3772, 7
  %v3990 = vrot.slane %v3773, 7
  %v3991 = vsel %vm228, %v3989, %v3990
  %v3992 = vrot.slane %v3774, 7
  %v3993 = vrot.slane %v3775, 7
  %v3994 = vsel %vm228, %v3992, %v3993
  %v3995 = vrot.slane %v3776, 7
  %v3996 = vrot.slane %v3777, 7
  %v3997 = vsel %vm228, %v3995, %v3996
  %v3998 = vrot.slane %v3778, 7
  %v3999 = vrot.slane %v3779, 7
  %v4000 = vsel %vm228, %v3998, %v3999
  %v4001 = vrot.slane %v3780, 7
  %v4002 = vrot.slane %v3781, 7
  %v4003 = vsel %vm228, %v4001, %v4002
  %v4004 = vrot.slane %v3782, 7
  %v4005 = vrot.slane %v3783, 7
  %v4006 = vsel %vm228, %v4004, %v4005
  %v4007 = vrot.slane %v3784, 7
  %v4008 = vrot.slane %v3785, 7
  %v4009 = vsel %vm228, %v4007, %v4008
  %v4072 = vsel %vm228, %v3818, %v3914
  %v4073 = vsel %vm228, %v3819, %v3917
  %v4074 = vsel %vm228, %v3820, %v3920
  %v4075 = vsel %vm228, %v3821, %v3923
  %v4076 = vsel %vm228, %v3822, %v3926
  %v4077 = vsel %vm228, %v3823, %v3929
  %v4078 = vsel %vm228, %v3824, %v3932
  %v4079 = vsel %vm228, %v3825, %v3935
  %v4080 = vsel %vm228, %v3826, %v3938
  %v4081 = vsel %vm228, %v3827, %v3941
  %v4082 = vsel %vm228, %v3828, %v3944
  %v4083 = vsel %vm228, %v3829, %v3947
  %v4084 = vsel %vm228, %v3830, %v3950
  %v4085 = vsel %vm228, %v3831, %v3953
  %v4086 = vsel %vm228, %v3832, %v3956
  %v4087 = vsel %vm228, %v3833, %v3959
  %v4088 = vsel %vm228, %v3834, %v3962
  %v4089 = vsel %vm228, %v3835, %v3965
  %v4090 = vsel %vm228, %v3836, %v3968
  %v4091 = vsel %vm228, %v3837, %v3971
  %v4092 = vsel %vm228, %v3838, %v3974
  %v4093 = vsel %vm228, %v3839, %v3977
  %v4094 = vsel %vm228, %v3840, %v3980
  %v4095 = vsel %vm228, %v3841, %v3983
  %v4096 = vsel %vm228, %v3842, %v3986
  %v4097 = vsel %vm228, %v3843, %v3989
  %v4098 = vsel %vm228, %v3844, %v3992
  %v4099 = vsel %vm228, %v3845, %v3995
  %v4100 = vsel %vm228, %v3846, %v3998
  %v4101 = vsel %vm228, %v3847, %v4001
  %v4102 = vsel %vm228, %v3848, %v4004
  %v4103 = vsel %vm228, %v3849, %v4007
  %v4104 = vrot.slane %v3725, 1
  %v4105 = vsel %vm419, %v3818, %v4104
  %v4106 = vrot.slane %v3723, 1
  %v4107 = vsel %vm419, %v3819, %v4106
  %v4108 = vrot.slane %v3727, 1
  %v4109 = vsel %vm419, %v3820, %v4108
  %v4110 = vrot.slane %v3729, 1
  %v4111 = vsel %vm419, %v3821, %v4110
  %v4112 = vrot.slane %v3731, 1
  %v4113 = vsel %vm419, %v3822, %v4112
  %v4114 = vrot.slane %v3733, 1
  %v4115 = vsel %vm419, %v3823, %v4114
  %v4116 = vrot.slane %v3735, 1
  %v4117 = vsel %vm419, %v3824, %v4116
  %v4118 = vrot.slane %v3737, 1
  %v4119 = vsel %vm419, %v3825, %v4118
  %v4120 = vrot.slane %v3739, 1
  %v4121 = vsel %vm419, %v3826, %v4120
  %v4122 = vrot.slane %v3741, 1
  %v4123 = vsel %vm419, %v3827, %v4122
  %v4124 = vrot.slane %v3743, 1
  %v4125 = vsel %vm419, %v3828, %v4124
  %v4126 = vrot.slane %v3745, 1
  %v4127 = vsel %vm419, %v3829, %v4126
  %v4128 = vrot.slane %v3747, 1
  %v4129 = vsel %vm419, %v3830, %v4128
  %v4130 = vrot.slane %v3749, 1
  %v4131 = vsel %vm419, %v3831, %v4130
  %v4132 = vrot.slane %v3751, 1
  %v4133 = vsel %vm419, %v3832, %v4132
  %v4134 = vrot.slane %v3753, 1
  %v4135 = vsel %vm419, %v3833, %v4134
  %v4136 = vrot.slane %v3757, 1
  %v4137 = vsel %vm419, %v3834, %v4136
  %v4138 = vrot.slane %v3755, 1
  %v4139 = vsel %vm419, %v3835, %v4138
  %v4140 = vrot.slane %v3759, 1
  %v4141 = vsel %vm419, %v3836, %v4140
  %v4142 = vrot.slane %v3761, 1
  %v4143 = vsel %vm419, %v3837, %v4142
  %v4144 = vrot.slane %v3763, 1
  %v4145 = vsel %vm419, %v3838, %v4144
  %v4146 = vrot.slane %v3765, 1
  %v4147 = vsel %vm419, %v3839, %v4146
  %v4148 = vrot.slane %v3767, 1
  %v4149 = vsel %vm419, %v3840, %v4148
  %v4150 = vrot.slane %v3769, 1
  %v4151 = vsel %vm419, %v3841, %v4150
  %v4152 = vrot.slane %v3771, 1
  %v4153 = vsel %vm419, %v3842, %v4152
  %v4154 = vrot.slane %v3773, 1
  %v4155 = vsel %vm419, %v3843, %v4154
  %v4156 = vrot.slane %v3775, 1
  %v4157 = vsel %vm419, %v3844, %v4156
  %v4158 = vrot.slane %v3777, 1
  %v4159 = vsel %vm419, %v3845, %v4158
  %v4160 = vrot.slane %v3779, 1
  %v4161 = vsel %vm419, %v3846, %v4160
  %v4162 = vrot.slane %v3781, 1
  %v4163 = vsel %vm419, %v3847, %v4162
  %v4164 = vrot.slane %v3783, 1
  %v4165 = vsel %vm419, %v3848, %v4164
  %v4166 = vrot.slane %v3785, 1
  %v4167 = vsel %vm419, %v3849, %v4166
  %v4232 = vsel %vm419, %v4104, %v3915
  %v4233 = vsel %vm419, %v4106, %v3918
  %v4234 = vsel %vm419, %v4108, %v3921
  %v4235 = vsel %vm419, %v4110, %v3924
  %v4236 = vsel %vm419, %v4112, %v3927
  %v4237 = vsel %vm419, %v4114, %v3930
  %v4238 = vsel %vm419, %v4116, %v3933
  %v4239 = vsel %vm419, %v4118, %v3936
  %v4240 = vsel %vm419, %v4120, %v3939
  %v4241 = vsel %vm419, %v4122, %v3942
  %v4242 = vsel %vm419, %v4124, %v3945
  %v4243 = vsel %vm419, %v4126, %v3948
  %v4244 = vsel %vm419, %v4128, %v3951
  %v4245 = vsel %vm419, %v4130, %v3954
  %v4246 = vsel %vm419, %v4132, %v3957
  %v4247 = vsel %vm419, %v4134, %v3960
  %v4248 = vsel %vm419, %v4136, %v3963
  %v4249 = vsel %vm419, %v4138, %v3966
  %v4250 = vsel %vm419, %v4140, %v3969
  %v4251 = vsel %vm419, %v4142, %v3972
  %v4252 = vsel %vm419, %v4144, %v3975
  %v4253 = vsel %vm419, %v4146, %v3978
  %v4254 = vsel %vm419, %v4148, %v3981
  %v4255 = vsel %vm419, %v4150, %v3984
  %v4256 = vsel %vm419, %v4152, %v3987
  %v4257 = vsel %vm419, %v4154, %v3990
  %v4258 = vsel %vm419, %v4156, %v3993
  %v4259 = vsel %vm419, %v4158, %v3996
  %v4260 = vsel %vm419, %v4160, %v3999
  %v4261 = vsel %vm419, %v4162, %v4002
  %v4262 = vsel %vm419, %v4164, %v4005
  %v4263 = vsel %vm419, %v4166, %v4008
  %4264 = vrot.lane.b32.xlu0 %v3724, 4
  %v4265 = vpop.permute.xlu0 %4264
  %4266 = vrot.lane.b32.xlu0 %v3725, 4
  %v4267 = vpop.permute.xlu0 %4266
  %4268 = vrot.lane.b32.xlu0 %v3722, 4
  %v4269 = vpop.permute.xlu0 %4268
  %4270 = vrot.lane.b32.xlu0 %v3723, 4
  %v4271 = vpop.permute.xlu0 %4270
  %4272 = vrot.lane.b32.xlu0 %v3726, 4
  %v4273 = vpop.permute.xlu0 %4272
  %4274 = vrot.lane.b32.xlu0 %v3727, 4
  %v4275 = vpop.permute.xlu0 %4274
  %4276 = vrot.lane.b32.xlu0 %v3728, 4
  %v4277 = vpop.permute.xlu0 %4276
  %4278 = vrot.lane.b32.xlu0 %v3729, 4
  %v4279 = vpop.permute.xlu0 %4278
  %4280 = vrot.lane.b32.xlu0 %v3730, 4
  %v4281 = vpop.permute.xlu0 %4280
  %4282 = vrot.lane.b32.xlu0 %v3731, 4
  %v4283 = vpop.permute.xlu0 %4282
  %4284 = vrot.lane.b32.xlu0 %v3732, 4
  %v4285 = vpop.permute.xlu0 %4284
  %4286 = vrot.lane.b32.xlu0 %v3733, 4
  %v4287 = vpop.permute.xlu0 %4286
  %4288 = vrot.lane.b32.xlu0 %v3734, 4
  %v4289 = vpop.permute.xlu0 %4288
  %4290 = vrot.lane.b32.xlu0 %v3735, 4
  %v4291 = vpop.permute.xlu0 %4290
  %4292 = vrot.lane.b32.xlu0 %v3736, 4
  %v4293 = vpop.permute.xlu0 %4292
  %4294 = vrot.lane.b32.xlu0 %v3737, 4
  %v4295 = vpop.permute.xlu0 %4294
  %4296 = vrot.lane.b32.xlu0 %v3738, 4
  %v4297 = vpop.permute.xlu0 %4296
  %4298 = vrot.lane.b32.xlu0 %v3739, 4
  %v4299 = vpop.permute.xlu0 %4298
  %4300 = vrot.lane.b32.xlu0 %v3740, 4
  %v4301 = vpop.permute.xlu0 %4300
  %4302 = vrot.lane.b32.xlu0 %v3741, 4
  %v4303 = vpop.permute.xlu0 %4302
  %4304 = vrot.lane.b32.xlu0 %v3742, 4
  %v4305 = vpop.permute.xlu0 %4304
  %4306 = vrot.lane.b32.xlu0 %v3743, 4
  %v4307 = vpop.permute.xlu0 %4306
  %4308 = vrot.lane.b32.xlu0 %v3744, 4
  %v4309 = vpop.permute.xlu0 %4308
  %4310 = vrot.lane.b32.xlu0 %v3745, 4
  %v4311 = vpop.permute.xlu0 %4310
  %4312 = vrot.lane.b32.xlu0 %v3746, 4
  %v4313 = vpop.permute.xlu0 %4312
  %4314 = vrot.lane.b32.xlu0 %v3747, 4
  %v4315 = vpop.permute.xlu0 %4314
  %4316 = vrot.lane.b32.xlu0 %v3748, 4
  %v4317 = vpop.permute.xlu0 %4316
  %4318 = vrot.lane.b32.xlu0 %v3749, 4
  %v4319 = vpop.permute.xlu0 %4318
  %4320 = vrot.lane.b32.xlu0 %v3750, 4
  %v4321 = vpop.permute.xlu0 %4320
  %4322 = vrot.lane.b32.xlu0 %v3751, 4
  %v4323 = vpop.permute.xlu0 %4322
  %4324 = vrot.lane.b32.xlu0 %v3756, 4
  %v4325 = vpop.permute.xlu0 %4324
  %4326 = vrot.lane.b32.xlu0 %v3757, 4
  %v4327 = vpop.permute.xlu0 %4326
  %4328 = vrot.lane.b32.xlu0 %v3754, 4
  %v4329 = vpop.permute.xlu0 %4328
  %4330 = vrot.lane.b32.xlu0 %v3755, 4
  %v4331 = vpop.permute.xlu0 %4330
  %4332 = vrot.lane.b32.xlu0 %v3758, 4
  %v4333 = vpop.permute.xlu0 %4332
  %4334 = vrot.lane.b32.xlu0 %v3759, 4
  %v4335 = vpop.permute.xlu0 %4334
  %4336 = vrot.lane.b32.xlu0 %v3760, 4
  %v4337 = vpop.permute.xlu0 %4336
  %4338 = vrot.lane.b32.xlu0 %v3761, 4
  %v4339 = vpop.permute.xlu0 %4338
  %4340 = vrot.lane.b32.xlu0 %v3762, 4
  %v4341 = vpop.permute.xlu0 %4340
  %4342 = vrot.lane.b32.xlu0 %v3763, 4
  %v4343 = vpop.permute.xlu0 %4342
  %4344 = vrot.lane.b32.xlu0 %v3764, 4
  %v4345 = vpop.permute.xlu0 %4344
  %4346 = vrot.lane.b32.xlu0 %v3765, 4
  %v4347 = vpop.permute.xlu0 %4346
  %4348 = vrot.lane.b32.xlu0 %v3766, 4
  %v4349 = vpop.permute.xlu0 %4348
  %4350 = vrot.lane.b32.xlu0 %v3767, 4
  %v4351 = vpop.permute.xlu0 %4350
  %4352 = vrot.lane.b32.xlu0 %v3768, 4
  %v4353 = vpop.permute.xlu0 %4352
  %4354 = vrot.lane.b32.xlu0 %v3769, 4
  %v4355 = vpop.permute.xlu0 %4354
  %4356 = vrot.lane.b32.xlu0 %v3770, 4
  %v4357 = vpop.permute.xlu0 %4356
  %4358 = vrot.lane.b32.xlu0 %v3771, 4
  %v4359 = vpop.permute.xlu0 %4358
  %4360 = vrot.lane.b32.xlu0 %v3772, 4
  %v4361 = vpop.permute.xlu0 %4360
  %4362 = vrot.lane.b32.xlu0 %v3773, 4
  %v4363 = vpop.permute.xlu0 %4362
  %4364 = vrot.lane.b32.xlu0 %v3774, 4
  %v4365 = vpop.permute.xlu0 %4364
  %4366 = vrot.lane.b32.xlu0 %v3775, 4
  %v4367 = vpop.permute.xlu0 %4366
  %4368 = vrot.lane.b32.xlu0 %v3776, 4
  %v4369 = vpop.permute.xlu0 %4368
  %4370 = vrot.lane.b32.xlu0 %v3777, 4
  %v4371 = vpop.permute.xlu0 %4370
  %4372 = vrot.lane.b32.xlu0 %v3778, 4
  %v4373 = vpop.permute.xlu0 %4372
  %4374 = vrot.lane.b32.xlu0 %v3779, 4
  %v4375 = vpop.permute.xlu0 %4374
  %4376 = vrot.lane.b32.xlu0 %v3780, 4
  %v4377 = vpop.permute.xlu0 %4376
  %4378 = vrot.lane.b32.xlu0 %v3781, 4
  %v4379 = vpop.permute.xlu0 %4378
  %4380 = vrot.lane.b32.xlu0 %v3782, 4
  %v4381 = vpop.permute.xlu0 %4380
  %4382 = vrot.lane.b32.xlu0 %v3783, 4
  %v4383 = vpop.permute.xlu0 %4382
  %4474 = vrot.lane.b32.xlu0 %v4105, 8
  %v4475 = vpop.permute.xlu0 %4474
  %4476 = vrot.lane.b32.xlu0 %v4232, 8
  %v4477 = vpop.permute.xlu0 %4476
  %4478 = vrot.lane.b32.xlu0 %v4107, 8
  %v4479 = vpop.permute.xlu0 %4478
  %4480 = vrot.lane.b32.xlu0 %v4233, 8
  %v4481 = vpop.permute.xlu0 %4480
  %4482 = vrot.lane.b32.xlu0 %v4109, 8
  %v4483 = vpop.permute.xlu0 %4482
  %4484 = vrot.lane.b32.xlu0 %v4234, 8
  %v4485 = vpop.permute.xlu0 %4484
  %4486 = vrot.lane.b32.xlu0 %v4111, 8
  %v4487 = vpop.permute.xlu0 %4486
  %4488 = vrot.lane.b32.xlu0 %v4235, 8
  %v4489 = vpop.permute.xlu0 %4488
  %4490 = vrot.lane.b32.xlu0 %v4113, 8
  %v4491 = vpop.permute.xlu0 %4490
  %4492 = vrot.lane.b32.xlu0 %v4236, 8
  %v4493 = vpop.permute.xlu0 %4492
  %4494 = vrot.lane.b32.xlu0 %v4115, 8
  %v4495 = vpop.permute.xlu0 %4494
  %4496 = vrot.lane.b32.xlu0 %v4237, 8
  %v4497 = vpop.permute.xlu0 %4496
  %4498 = vrot.lane.b32.xlu0 %v4117, 8
  %v4499 = vpop.permute.xlu0 %4498
  %4500 = vrot.lane.b32.xlu0 %v4238, 8
  %v4501 = vpop.permute.xlu0 %4500
  %4502 = vrot.lane.b32.xlu0 %v4119, 8
  %v4503 = vpop.permute.xlu0 %4502
  %4504 = vrot.lane.b32.xlu0 %v4239, 8
  %v4505 = vpop.permute.xlu0 %4504
  %4506 = vrot.lane.b32.xlu0 %v4121, 8
  %v4507 = vpop.permute.xlu0 %4506
  %4508 = vrot.lane.b32.xlu0 %v4240, 8
  %v4509 = vpop.permute.xlu0 %4508
  %4510 = vrot.lane.b32.xlu0 %v4123, 8
  %v4511 = vpop.permute.xlu0 %4510
  %4512 = vrot.lane.b32.xlu0 %v4241, 8
  %v4513 = vpop.permute.xlu0 %4512
  %4514 = vrot.lane.b32.xlu0 %v4125, 8
  %v4515 = vpop.permute.xlu0 %4514
  %4516 = vrot.lane.b32.xlu0 %v4242, 8
  %v4517 = vpop.permute.xlu0 %4516
  %4518 = vrot.lane.b32.xlu0 %v4127, 8
  %v4519 = vpop.permute.xlu0 %4518
  %4520 = vrot.lane.b32.xlu0 %v4243, 8
  %v4521 = vpop.permute.xlu0 %4520
  %4522 = vrot.lane.b32.xlu0 %v4129, 8
  %v4523 = vpop.permute.xlu0 %4522
  %4524 = vrot.lane.b32.xlu0 %v4244, 8
  %v4525 = vpop.permute.xlu0 %4524
  %4526 = vrot.lane.b32.xlu0 %v4131, 8
  %v4527 = vpop.permute.xlu0 %4526
  %4528 = vrot.lane.b32.xlu0 %v4245, 8
  %v4529 = vpop.permute.xlu0 %4528
  %4530 = vrot.lane.b32.xlu0 %v4133, 8
  %v4531 = vpop.permute.xlu0 %4530
  %4532 = vrot.lane.b32.xlu0 %v4246, 8
  %v4533 = vpop.permute.xlu0 %4532
  %4534 = vrot.lane.b32.xlu0 %v4137, 8
  %v4535 = vpop.permute.xlu0 %4534
  %4536 = vrot.lane.b32.xlu0 %v4248, 8
  %v4537 = vpop.permute.xlu0 %4536
  %4538 = vrot.lane.b32.xlu0 %v4139, 8
  %v4539 = vpop.permute.xlu0 %4538
  %4540 = vrot.lane.b32.xlu0 %v4249, 8
  %v4541 = vpop.permute.xlu0 %4540
  %4542 = vrot.lane.b32.xlu0 %v4141, 8
  %v4543 = vpop.permute.xlu0 %4542
  %4544 = vrot.lane.b32.xlu0 %v4250, 8
  %v4545 = vpop.permute.xlu0 %4544
  %4546 = vrot.lane.b32.xlu0 %v4143, 8
  %v4547 = vpop.permute.xlu0 %4546
  %4548 = vrot.lane.b32.xlu0 %v4251, 8
  %v4549 = vpop.permute.xlu0 %4548
  %4550 = vrot.lane.b32.xlu0 %v4145, 8
  %v4551 = vpop.permute.xlu0 %4550
  %4552 = vrot.lane.b32.xlu0 %v4252, 8
  %v4553 = vpop.permute.xlu0 %4552
  %4554 = vrot.lane.b32.xlu0 %v4147, 8
  %v4555 = vpop.permute.xlu0 %4554
  %4556 = vrot.lane.b32.xlu0 %v4253, 8
  %v4557 = vpop.permute.xlu0 %4556
  %4558 = vrot.lane.b32.xlu0 %v4149, 8
  %v4559 = vpop.permute.xlu0 %4558
  %4560 = vrot.lane.b32.xlu0 %v4254, 8
  %v4561 = vpop.permute.xlu0 %4560
  %4562 = vrot.lane.b32.xlu0 %v4151, 8
  %v4563 = vpop.permute.xlu0 %4562
  %4564 = vrot.lane.b32.xlu0 %v4255, 8
  %v4565 = vpop.permute.xlu0 %4564
  %4566 = vrot.lane.b32.xlu0 %v4153, 8
  %v4567 = vpop.permute.xlu0 %4566
  %4568 = vrot.lane.b32.xlu0 %v4256, 8
  %v4569 = vpop.permute.xlu0 %4568
  %4570 = vrot.lane.b32.xlu0 %v4155, 8
  %v4571 = vpop.permute.xlu0 %4570
  %4572 = vrot.lane.b32.xlu0 %v4257, 8
  %v4573 = vpop.permute.xlu0 %4572
  %4574 = vrot.lane.b32.xlu0 %v4157, 8
  %v4575 = vpop.permute.xlu0 %4574
  %4576 = vrot.lane.b32.xlu0 %v4258, 8
  %v4577 = vpop.permute.xlu0 %4576
  %4578 = vrot.lane.b32.xlu0 %v4159, 8
  %v4579 = vpop.permute.xlu0 %4578
  %4580 = vrot.lane.b32.xlu0 %v4259, 8
  %v4581 = vpop.permute.xlu0 %4580
  %4582 = vrot.lane.b32.xlu0 %v4161, 8
  %v4583 = vpop.permute.xlu0 %4582
  %4584 = vrot.lane.b32.xlu0 %v4260, 8
  %v4585 = vpop.permute.xlu0 %4584
  %4586 = vrot.lane.b32.xlu0 %v4163, 8
  %v4587 = vpop.permute.xlu0 %4586
  %4588 = vrot.lane.b32.xlu0 %v4261, 8
  %v4589 = vpop.permute.xlu0 %4588
  %4590 = vrot.lane.b32.xlu0 %v4165, 8
  %v4591 = vpop.permute.xlu0 %4590
  %4592 = vrot.lane.b32.xlu0 %v4262, 8
  %v4593 = vpop.permute.xlu0 %4592
  %4686 = vrot.lane.b32.xlu0 %v4073, 12
  %v4687 = vpop.permute.xlu0 %4686
  %4688 = vrot.lane.b32.xlu0 %v3919, 12
  %v4689 = vpop.permute.xlu0 %4688
  %4690 = vrot.lane.b32.xlu0 %v4072, 12
  %v4691 = vpop.permute.xlu0 %4690
  %4692 = vrot.lane.b32.xlu0 %v3916, 12
  %v4693 = vpop.permute.xlu0 %4692
  %4694 = vrot.lane.b32.xlu0 %v4074, 12
  %v4695 = vpop.permute.xlu0 %4694
  %4696 = vrot.lane.b32.xlu0 %v3922, 12
  %v4697 = vpop.permute.xlu0 %4696
  %4698 = vrot.lane.b32.xlu0 %v4075, 12
  %v4699 = vpop.permute.xlu0 %4698
  %4700 = vrot.lane.b32.xlu0 %v3925, 12
  %v4701 = vpop.permute.xlu0 %4700
  %4702 = vrot.lane.b32.xlu0 %v4076, 12
  %v4703 = vpop.permute.xlu0 %4702
  %4704 = vrot.lane.b32.xlu0 %v3928, 12
  %v4705 = vpop.permute.xlu0 %4704
  %4706 = vrot.lane.b32.xlu0 %v4077, 12
  %v4707 = vpop.permute.xlu0 %4706
  %4708 = vrot.lane.b32.xlu0 %v3931, 12
  %v4709 = vpop.permute.xlu0 %4708
  %4710 = vrot.lane.b32.xlu0 %v4078, 12
  %v4711 = vpop.permute.xlu0 %4710
  %4712 = vrot.lane.b32.xlu0 %v3934, 12
  %v4713 = vpop.permute.xlu0 %4712
  %4714 = vrot.lane.b32.xlu0 %v4079, 12
  %v4715 = vpop.permute.xlu0 %4714
  %4716 = vrot.lane.b32.xlu0 %v3937, 12
  %v4717 = vpop.permute.xlu0 %4716
  %4718 = vrot.lane.b32.xlu0 %v4080, 12
  %v4719 = vpop.permute.xlu0 %4718
  %4720 = vrot.lane.b32.xlu0 %v3940, 12
  %v4721 = vpop.permute.xlu0 %4720
  %4722 = vrot.lane.b32.xlu0 %v4081, 12
  %v4723 = vpop.permute.xlu0 %4722
  %4724 = vrot.lane.b32.xlu0 %v3943, 12
  %v4725 = vpop.permute.xlu0 %4724
  %4726 = vrot.lane.b32.xlu0 %v4082, 12
  %v4727 = vpop.permute.xlu0 %4726
  %4728 = vrot.lane.b32.xlu0 %v3946, 12
  %v4729 = vpop.permute.xlu0 %4728
  %4730 = vrot.lane.b32.xlu0 %v4083, 12
  %v4731 = vpop.permute.xlu0 %4730
  %4732 = vrot.lane.b32.xlu0 %v3949, 12
  %v4733 = vpop.permute.xlu0 %4732
  %4734 = vrot.lane.b32.xlu0 %v4084, 12
  %v4735 = vpop.permute.xlu0 %4734
  %4736 = vrot.lane.b32.xlu0 %v3952, 12
  %v4737 = vpop.permute.xlu0 %4736
  %4738 = vrot.lane.b32.xlu0 %v4085, 12
  %v4739 = vpop.permute.xlu0 %4738
  %4740 = vrot.lane.b32.xlu0 %v3955, 12
  %v4741 = vpop.permute.xlu0 %4740
  %4742 = vrot.lane.b32.xlu0 %v4086, 12
  %v4743 = vpop.permute.xlu0 %4742
  %4744 = vrot.lane.b32.xlu0 %v3958, 12
  %v4745 = vpop.permute.xlu0 %4744
  %4746 = vrot.lane.b32.xlu0 %v4087, 12
  %v4747 = vpop.permute.xlu0 %4746
  %4748 = vrot.lane.b32.xlu0 %v3961, 12
  %v4749 = vpop.permute.xlu0 %4748
  %4750 = vrot.lane.b32.xlu0 %v4089, 12
  %v4751 = vpop.permute.xlu0 %4750
  %4752 = vrot.lane.b32.xlu0 %v3967, 12
  %v4753 = vpop.permute.xlu0 %4752
  %4754 = vrot.lane.b32.xlu0 %v4088, 12
  %v4755 = vpop.permute.xlu0 %4754
  %4756 = vrot.lane.b32.xlu0 %v3964, 12
  %v4757 = vpop.permute.xlu0 %4756
  %4758 = vrot.lane.b32.xlu0 %v4090, 12
  %v4759 = vpop.permute.xlu0 %4758
  %4760 = vrot.lane.b32.xlu0 %v3970, 12
  %v4761 = vpop.permute.xlu0 %4760
  %4762 = vrot.lane.b32.xlu0 %v4091, 12
  %v4763 = vpop.permute.xlu0 %4762
  %4764 = vrot.lane.b32.xlu0 %v3973, 12
  %v4765 = vpop.permute.xlu0 %4764
  %4766 = vrot.lane.b32.xlu0 %v4092, 12
  %v4767 = vpop.permute.xlu0 %4766
  %4768 = vrot.lane.b32.xlu0 %v3976, 12
  %v4769 = vpop.permute.xlu0 %4768
  %4770 = vrot.lane.b32.xlu0 %v4093, 12
  %v4771 = vpop.permute.xlu0 %4770
  %4772 = vrot.lane.b32.xlu0 %v3979, 12
  %v4773 = vpop.permute.xlu0 %4772
  %4774 = vrot.lane.b32.xlu0 %v4094, 12
  %v4775 = vpop.permute.xlu0 %4774
  %4776 = vrot.lane.b32.xlu0 %v3982, 12
  %v4777 = vpop.permute.xlu0 %4776
  %4778 = vrot.lane.b32.xlu0 %v4095, 12
  %v4779 = vpop.permute.xlu0 %4778
  %4780 = vrot.lane.b32.xlu0 %v3985, 12
  %v4781 = vpop.permute.xlu0 %4780
  %4782 = vrot.lane.b32.xlu0 %v4096, 12
  %v4783 = vpop.permute.xlu0 %4782
  %4784 = vrot.lane.b32.xlu0 %v3988, 12
  %v4785 = vpop.permute.xlu0 %4784
  %4786 = vrot.lane.b32.xlu0 %v4097, 12
  %v4787 = vpop.permute.xlu0 %4786
  %4788 = vrot.lane.b32.xlu0 %v3991, 12
  %v4789 = vpop.permute.xlu0 %4788
  %4790 = vrot.lane.b32.xlu0 %v4098, 12
  %v4791 = vpop.permute.xlu0 %4790
  %4792 = vrot.lane.b32.xlu0 %v3994, 12
  %v4793 = vpop.permute.xlu0 %4792
  %4794 = vrot.lane.b32.xlu0 %v4099, 12
  %v4795 = vpop.permute.xlu0 %4794
  %4796 = vrot.lane.b32.xlu0 %v3997, 12
  %v4797 = vpop.permute.xlu0 %4796
  %4798 = vrot.lane.b32.xlu0 %v4100, 12
  %v4799 = vpop.permute.xlu0 %4798
  %4800 = vrot.lane.b32.xlu0 %v4000, 12
  %v4801 = vpop.permute.xlu0 %4800
  %4802 = vrot.lane.b32.xlu0 %v4101, 12
  %v4803 = vpop.permute.xlu0 %4802
  %4804 = vrot.lane.b32.xlu0 %v4003, 12
  %v4805 = vpop.permute.xlu0 %4804
  %4806 = vrot.lane.b32.xlu0 %v4102, 12
  %v4807 = vpop.permute.xlu0 %4806
  %4808 = vrot.lane.b32.xlu0 %v4006, 12
  %v4809 = vpop.permute.xlu0 %4808
  %4810 = vrot.lane.b32.xlu0 %v4103, 12
  %v4811 = vpop.permute.xlu0 %4810
  %4812 = vrot.lane.b32.xlu0 %v4009, 12
  %v4813 = vpop.permute.xlu0 %4812
  %4878 = vrot.lane.b32.xlu0 %v3722, 16
  %v4879 = vpop.permute.xlu0 %4878
  %4880 = vrot.lane.b32.xlu0 %v3723, 16
  %v4881 = vpop.permute.xlu0 %4880
  %4882 = vrot.lane.b32.xlu0 %v3724, 16
  %v4883 = vpop.permute.xlu0 %4882
  %4884 = vrot.lane.b32.xlu0 %v3725, 16
  %v4885 = vpop.permute.xlu0 %4884
  %4886 = vrot.lane.b32.xlu0 %v3726, 16
  %v4887 = vpop.permute.xlu0 %4886
  %4888 = vrot.lane.b32.xlu0 %v3727, 16
  %v4889 = vpop.permute.xlu0 %4888
  %4890 = vrot.lane.b32.xlu0 %v3728, 16
  %v4891 = vpop.permute.xlu0 %4890
  %4892 = vrot.lane.b32.xlu0 %v3729, 16
  %v4893 = vpop.permute.xlu0 %4892
  %4894 = vrot.lane.b32.xlu0 %v3730, 16
  %v4895 = vpop.permute.xlu0 %4894
  %4896 = vrot.lane.b32.xlu0 %v3731, 16
  %v4897 = vpop.permute.xlu0 %4896
  %4898 = vrot.lane.b32.xlu0 %v3732, 16
  %v4899 = vpop.permute.xlu0 %4898
  %4900 = vrot.lane.b32.xlu0 %v3733, 16
  %v4901 = vpop.permute.xlu0 %4900
  %4902 = vrot.lane.b32.xlu0 %v3734, 16
  %v4903 = vpop.permute.xlu0 %4902
  %4904 = vrot.lane.b32.xlu0 %v3735, 16
  %v4905 = vpop.permute.xlu0 %4904
  %4906 = vrot.lane.b32.xlu0 %v3736, 16
  %v4907 = vpop.permute.xlu0 %4906
  %4908 = vrot.lane.b32.xlu0 %v3737, 16
  %v4909 = vpop.permute.xlu0 %4908
  %4910 = vrot.lane.b32.xlu0 %v3738, 16
  %v4911 = vpop.permute.xlu0 %4910
  %4912 = vrot.lane.b32.xlu0 %v3739, 16
  %v4913 = vpop.permute.xlu0 %4912
  %4914 = vrot.lane.b32.xlu0 %v3740, 16
  %v4915 = vpop.permute.xlu0 %4914
  %4916 = vrot.lane.b32.xlu0 %v3741, 16
  %v4917 = vpop.permute.xlu0 %4916
  %4918 = vrot.lane.b32.xlu0 %v3742, 16
  %v4919 = vpop.permute.xlu0 %4918
  %4920 = vrot.lane.b32.xlu0 %v3743, 16
  %v4921 = vpop.permute.xlu0 %4920
  %4922 = vrot.lane.b32.xlu0 %v3744, 16
  %v4923 = vpop.permute.xlu0 %4922
  %4924 = vrot.lane.b32.xlu0 %v3745, 16
  %v4925 = vpop.permute.xlu0 %4924
  %4926 = vrot.lane.b32.xlu0 %v3746, 16
  %v4927 = vpop.permute.xlu0 %4926
  %4928 = vrot.lane.b32.xlu0 %v3747, 16
  %v4929 = vpop.permute.xlu0 %4928
  %4930 = vrot.lane.b32.xlu0 %v3748, 16
  %v4931 = vpop.permute.xlu0 %4930
  %4932 = vrot.lane.b32.xlu0 %v3749, 16
  %v4933 = vpop.permute.xlu0 %4932
  %4934 = vrot.lane.b32.xlu0 %v3750, 16
  %v4935 = vpop.permute.xlu0 %4934
  %4936 = vrot.lane.b32.xlu0 %v3751, 16
  %v4937 = vpop.permute.xlu0 %4936
  %4938 = vrot.lane.b32.xlu0 %v3752, 16
  %v4939 = vpop.permute.xlu0 %4938
  %4940 = vrot.lane.b32.xlu0 %v3753, 16
  %v4941 = vpop.permute.xlu0 %4940
  %4942 = vrot.lane.b32.xlu0 %v3754, 16
  %v4943 = vpop.permute.xlu0 %4942
  %4944 = vrot.lane.b32.xlu0 %v3755, 16
  %v4945 = vpop.permute.xlu0 %4944
  %4946 = vrot.lane.b32.xlu0 %v3756, 16
  %v4947 = vpop.permute.xlu0 %4946
  %4948 = vrot.lane.b32.xlu0 %v3757, 16
  %v4949 = vpop.permute.xlu0 %4948
  %4950 = vrot.lane.b32.xlu0 %v3758, 16
  %v4951 = vpop.permute.xlu0 %4950
  %4952 = vrot.lane.b32.xlu0 %v3759, 16
  %v4953 = vpop.permute.xlu0 %4952
  %4954 = vrot.lane.b32.xlu0 %v3760, 16
  %v4955 = vpop.permute.xlu0 %4954
  %4956 = vrot.lane.b32.xlu0 %v3761, 16
  %v4957 = vpop.permute.xlu0 %4956
  %4958 = vrot.lane.b32.xlu0 %v3762, 16
  %v4959 = vpop.permute.xlu0 %4958
  %4960 = vrot.lane.b32.xlu0 %v3763, 16
  %v4961 = vpop.permute.xlu0 %4960
  %4962 = vrot.lane.b32.xlu0 %v3764, 16
  %v4963 = vpop.permute.xlu0 %4962
  %4964 = vrot.lane.b32.xlu0 %v3765, 16
  %v4965 = vpop.permute.xlu0 %4964
  %4966 = vrot.lane.b32.xlu0 %v3766, 16
  %v4967 = vpop.permute.xlu0 %4966
  %4968 = vrot.lane.b32.xlu0 %v3767, 16
  %v4969 = vpop.permute.xlu0 %4968
  %4970 = vrot.lane.b32.xlu0 %v3768, 16
  %v4971 = vpop.permute.xlu0 %4970
  %4972 = vrot.lane.b32.xlu0 %v3769, 16
  %v4973 = vpop.permute.xlu0 %4972
  %4974 = vrot.lane.b32.xlu0 %v3770, 16
  %v4975 = vpop.permute.xlu0 %4974
  %4976 = vrot.lane.b32.xlu0 %v3771, 16
  %v4977 = vpop.permute.xlu0 %4976
  %4978 = vrot.lane.b32.xlu0 %v3772, 16
  %v4979 = vpop.permute.xlu0 %4978
  %4980 = vrot.lane.b32.xlu0 %v3773, 16
  %v4981 = vpop.permute.xlu0 %4980
  %4982 = vrot.lane.b32.xlu0 %v3774, 16
  %v4983 = vpop.permute.xlu0 %4982
  %4984 = vrot.lane.b32.xlu0 %v3775, 16
  %v4985 = vpop.permute.xlu0 %4984
  %4986 = vrot.lane.b32.xlu0 %v3776, 16
  %v4987 = vpop.permute.xlu0 %4986
  %4988 = vrot.lane.b32.xlu0 %v3777, 16
  %v4989 = vpop.permute.xlu0 %4988
  %4990 = vrot.lane.b32.xlu0 %v3778, 16
  %v4991 = vpop.permute.xlu0 %4990
  %4992 = vrot.lane.b32.xlu0 %v3779, 16
  %v4993 = vpop.permute.xlu0 %4992
  %4994 = vrot.lane.b32.xlu0 %v3780, 16
  %v4995 = vpop.permute.xlu0 %4994
  %4996 = vrot.lane.b32.xlu0 %v3781, 16
  %v4997 = vpop.permute.xlu0 %4996
  %4998 = vrot.lane.b32.xlu0 %v3782, 16
  %v4999 = vpop.permute.xlu0 %4998
  %5000 = vrot.lane.b32.xlu0 %v3783, 16
  %v5001 = vpop.permute.xlu0 %5000
  %5002 = vrot.lane.b32.xlu0 %v3784, 16
  %v5003 = vpop.permute.xlu0 %5002
  %5004 = vrot.lane.b32.xlu0 %v3785, 16
  %v5005 = vpop.permute.xlu0 %5004
  %5072 = vrot.lane.b32.xlu0 %v4107, 20
  %v5073 = vpop.permute.xlu0 %5072
  %5074 = vrot.lane.b32.xlu0 %v4233, 20
  %v5075 = vpop.permute.xlu0 %5074
  %5076 = vrot.lane.b32.xlu0 %v4105, 20
  %v5077 = vpop.permute.xlu0 %5076
  %5078 = vrot.lane.b32.xlu0 %v4232, 20
  %v5079 = vpop.permute.xlu0 %5078
  %5080 = vrot.lane.b32.xlu0 %v4109, 20
  %v5081 = vpop.permute.xlu0 %5080
  %5082 = vrot.lane.b32.xlu0 %v4234, 20
  %v5083 = vpop.permute.xlu0 %5082
  %5084 = vrot.lane.b32.xlu0 %v4111, 20
  %v5085 = vpop.permute.xlu0 %5084
  %5086 = vrot.lane.b32.xlu0 %v4235, 20
  %v5087 = vpop.permute.xlu0 %5086
  %5088 = vrot.lane.b32.xlu0 %v4113, 20
  %v5089 = vpop.permute.xlu0 %5088
  %5090 = vrot.lane.b32.xlu0 %v4236, 20
  %v5091 = vpop.permute.xlu0 %5090
  %5092 = vrot.lane.b32.xlu0 %v4115, 20
  %v5093 = vpop.permute.xlu0 %5092
  %5094 = vrot.lane.b32.xlu0 %v4237, 20
  %v5095 = vpop.permute.xlu0 %5094
  %5096 = vrot.lane.b32.xlu0 %v4117, 20
  %v5097 = vpop.permute.xlu0 %5096
  %5098 = vrot.lane.b32.xlu0 %v4238, 20
  %v5099 = vpop.permute.xlu0 %5098
  %5100 = vrot.lane.b32.xlu0 %v4119, 20
  %v5101 = vpop.permute.xlu0 %5100
  %5102 = vrot.lane.b32.xlu0 %v4239, 20
  %v5103 = vpop.permute.xlu0 %5102
  %5104 = vrot.lane.b32.xlu0 %v4121, 20
  %v5105 = vpop.permute.xlu0 %5104
  %5106 = vrot.lane.b32.xlu0 %v4240, 20
  %v5107 = vpop.permute.xlu0 %5106
  %5108 = vrot.lane.b32.xlu0 %v4123, 20
  %v5109 = vpop.permute.xlu0 %5108
  %5110 = vrot.lane.b32.xlu0 %v4241, 20
  %v5111 = vpop.permute.xlu0 %5110
  %5112 = vrot.lane.b32.xlu0 %v4125, 20
  %v5113 = vpop.permute.xlu0 %5112
  %5114 = vrot.lane.b32.xlu0 %v4242, 20
  %v5115 = vpop.permute.xlu0 %5114
  %5116 = vrot.lane.b32.xlu0 %v4127, 20
  %v5117 = vpop.permute.xlu0 %5116
  %5118 = vrot.lane.b32.xlu0 %v4243, 20
  %v5119 = vpop.permute.xlu0 %5118
  %5120 = vrot.lane.b32.xlu0 %v4129, 20
  %v5121 = vpop.permute.xlu0 %5120
  %5122 = vrot.lane.b32.xlu0 %v4244, 20
  %v5123 = vpop.permute.xlu0 %5122
  %5124 = vrot.lane.b32.xlu0 %v4131, 20
  %v5125 = vpop.permute.xlu0 %5124
  %5126 = vrot.lane.b32.xlu0 %v4245, 20
  %v5127 = vpop.permute.xlu0 %5126
  %5128 = vrot.lane.b32.xlu0 %v4133, 20
  %v5129 = vpop.permute.xlu0 %5128
  %5130 = vrot.lane.b32.xlu0 %v4246, 20
  %v5131 = vpop.permute.xlu0 %5130
  %5132 = vrot.lane.b32.xlu0 %v4135, 20
  %v5133 = vpop.permute.xlu0 %5132
  %5134 = vrot.lane.b32.xlu0 %v4247, 20
  %v5135 = vpop.permute.xlu0 %5134
  %5136 = vrot.lane.b32.xlu0 %v4139, 20
  %v5137 = vpop.permute.xlu0 %5136
  %5138 = vrot.lane.b32.xlu0 %v4249, 20
  %v5139 = vpop.permute.xlu0 %5138
  %5140 = vrot.lane.b32.xlu0 %v4137, 20
  %v5141 = vpop.permute.xlu0 %5140
  %5142 = vrot.lane.b32.xlu0 %v4248, 20
  %v5143 = vpop.permute.xlu0 %5142
  %5144 = vrot.lane.b32.xlu0 %v4141, 20
  %v5145 = vpop.permute.xlu0 %5144
  %5146 = vrot.lane.b32.xlu0 %v4250, 20
  %v5147 = vpop.permute.xlu0 %5146
  %5148 = vrot.lane.b32.xlu0 %v4143, 20
  %v5149 = vpop.permute.xlu0 %5148
  %5150 = vrot.lane.b32.xlu0 %v4251, 20
  %v5151 = vpop.permute.xlu0 %5150
  %5152 = vrot.lane.b32.xlu0 %v4145, 20
  %v5153 = vpop.permute.xlu0 %5152
  %5154 = vrot.lane.b32.xlu0 %v4252, 20
  %v5155 = vpop.permute.xlu0 %5154
  %5156 = vrot.lane.b32.xlu0 %v4147, 20
  %v5157 = vpop.permute.xlu0 %5156
  %5158 = vrot.lane.b32.xlu0 %v4253, 20
  %v5159 = vpop.permute.xlu0 %5158
  %5160 = vrot.lane.b32.xlu0 %v4149, 20
  %v5161 = vpop.permute.xlu0 %5160
  %5162 = vrot.lane.b32.xlu0 %v4254, 20
  %v5163 = vpop.permute.xlu0 %5162
  %5164 = vrot.lane.b32.xlu0 %v4151, 20
  %v5165 = vpop.permute.xlu0 %5164
  %5166 = vrot.lane.b32.xlu0 %v4255, 20
  %v5167 = vpop.permute.xlu0 %5166
  %5168 = vrot.lane.b32.xlu0 %v4153, 20
  %v5169 = vpop.permute.xlu0 %5168
  %5170 = vrot.lane.b32.xlu0 %v4256, 20
  %v5171 = vpop.permute.xlu0 %5170
  %5172 = vrot.lane.b32.xlu0 %v4155, 20
  %v5173 = vpop.permute.xlu0 %5172
  %5174 = vrot.lane.b32.xlu0 %v4257, 20
  %v5175 = vpop.permute.xlu0 %5174
  %5176 = vrot.lane.b32.xlu0 %v4157, 20
  %v5177 = vpop.permute.xlu0 %5176
  %5178 = vrot.lane.b32.xlu0 %v4258, 20
  %v5179 = vpop.permute.xlu0 %5178
  %5180 = vrot.lane.b32.xlu0 %v4159, 20
  %v5181 = vpop.permute.xlu0 %5180
  %5182 = vrot.lane.b32.xlu0 %v4259, 20
  %v5183 = vpop.permute.xlu0 %5182
  %5184 = vrot.lane.b32.xlu0 %v4161, 20
  %v5185 = vpop.permute.xlu0 %5184
  %5186 = vrot.lane.b32.xlu0 %v4260, 20
  %v5187 = vpop.permute.xlu0 %5186
  %5188 = vrot.lane.b32.xlu0 %v4163, 20
  %v5189 = vpop.permute.xlu0 %5188
  %5190 = vrot.lane.b32.xlu0 %v4261, 20
  %v5191 = vpop.permute.xlu0 %5190
  %5192 = vrot.lane.b32.xlu0 %v4165, 20
  %v5193 = vpop.permute.xlu0 %5192
  %5194 = vrot.lane.b32.xlu0 %v4262, 20
  %v5195 = vpop.permute.xlu0 %5194
  %5196 = vrot.lane.b32.xlu0 %v4167, 20
  %v5197 = vpop.permute.xlu0 %5196
  %5198 = vrot.lane.b32.xlu0 %v4263, 20
  %v5199 = vpop.permute.xlu0 %5198
  %5264 = vrot.lane.b32.xlu0 %v4072, 24
  %v5265 = vpop.permute.xlu0 %5264
  %5266 = vrot.lane.b32.xlu0 %v3916, 24
  %v5267 = vpop.permute.xlu0 %5266
  %5268 = vrot.lane.b32.xlu0 %v4074, 24
  %v5269 = vpop.permute.xlu0 %5268
  %5270 = vrot.lane.b32.xlu0 %v3922, 24
  %v5271 = vpop.permute.xlu0 %5270
  %5272 = vrot.lane.b32.xlu0 %v4075, 24
  %v5273 = vpop.permute.xlu0 %5272
  %5274 = vrot.lane.b32.xlu0 %v3925, 24
  %v5275 = vpop.permute.xlu0 %5274
  %5276 = vrot.lane.b32.xlu0 %v4076, 24
  %v5277 = vpop.permute.xlu0 %5276
  %5278 = vrot.lane.b32.xlu0 %v3928, 24
  %v5279 = vpop.permute.xlu0 %5278
  %5280 = vrot.lane.b32.xlu0 %v4077, 24
  %v5281 = vpop.permute.xlu0 %5280
  %5282 = vrot.lane.b32.xlu0 %v3931, 24
  %v5283 = vpop.permute.xlu0 %5282
  %5284 = vrot.lane.b32.xlu0 %v4078, 24
  %v5285 = vpop.permute.xlu0 %5284
  %5286 = vrot.lane.b32.xlu0 %v3934, 24
  %v5287 = vpop.permute.xlu0 %5286
  %5288 = vrot.lane.b32.xlu0 %v4079, 24
  %v5289 = vpop.permute.xlu0 %5288
  %5290 = vrot.lane.b32.xlu0 %v3937, 24
  %v5291 = vpop.permute.xlu0 %5290
  %5292 = vrot.lane.b32.xlu0 %v4080, 24
  %v5293 = vpop.permute.xlu0 %5292
  %5294 = vrot.lane.b32.xlu0 %v3940, 24
  %v5295 = vpop.permute.xlu0 %5294
  %5296 = vrot.lane.b32.xlu0 %v4081, 24
  %v5297 = vpop.permute.xlu0 %5296
  %5298 = vrot.lane.b32.xlu0 %v3943, 24
  %v5299 = vpop.permute.xlu0 %5298
  %5300 = vrot.lane.b32.xlu0 %v4082, 24
  %v5301 = vpop.permute.xlu0 %5300
  %5302 = vrot.lane.b32.xlu0 %v3946, 24
  %v5303 = vpop.permute.xlu0 %5302
  %5304 = vrot.lane.b32.xlu0 %v4083, 24
  %v5305 = vpop.permute.xlu0 %5304
  %5306 = vrot.lane.b32.xlu0 %v3949, 24
  %v5307 = vpop.permute.xlu0 %5306
  %5308 = vrot.lane.b32.xlu0 %v4084, 24
  %v5309 = vpop.permute.xlu0 %5308
  %5310 = vrot.lane.b32.xlu0 %v3952, 24
  %v5311 = vpop.permute.xlu0 %5310
  %5312 = vrot.lane.b32.xlu0 %v4085, 24
  %v5313 = vpop.permute.xlu0 %5312
  %5314 = vrot.lane.b32.xlu0 %v3955, 24
  %v5315 = vpop.permute.xlu0 %5314
  %5316 = vrot.lane.b32.xlu0 %v4086, 24
  %v5317 = vpop.permute.xlu0 %5316
  %5318 = vrot.lane.b32.xlu0 %v3958, 24
  %v5319 = vpop.permute.xlu0 %5318
  %5320 = vrot.lane.b32.xlu0 %v4087, 24
  %v5321 = vpop.permute.xlu0 %5320
  %5322 = vrot.lane.b32.xlu0 %v3961, 24
  %v5323 = vpop.permute.xlu0 %5322
  %5324 = vrot.lane.b32.xlu0 %v4088, 24
  %v5325 = vpop.permute.xlu0 %5324
  %5326 = vrot.lane.b32.xlu0 %v3964, 24
  %v5327 = vpop.permute.xlu0 %5326
  %5328 = vrot.lane.b32.xlu0 %v4090, 24
  %v5329 = vpop.permute.xlu0 %5328
  %5330 = vrot.lane.b32.xlu0 %v3970, 24
  %v5331 = vpop.permute.xlu0 %5330
  %5332 = vrot.lane.b32.xlu0 %v4091, 24
  %v5333 = vpop.permute.xlu0 %5332
  %5334 = vrot.lane.b32.xlu0 %v3973, 24
  %v5335 = vpop.permute.xlu0 %5334
  %5336 = vrot.lane.b32.xlu0 %v4092, 24
  %v5337 = vpop.permute.xlu0 %5336
  %5338 = vrot.lane.b32.xlu0 %v3976, 24
  %v5339 = vpop.permute.xlu0 %5338
  %5340 = vrot.lane.b32.xlu0 %v4093, 24
  %v5341 = vpop.permute.xlu0 %5340
  %5342 = vrot.lane.b32.xlu0 %v3979, 24
  %v5343 = vpop.permute.xlu0 %5342
  %5344 = vrot.lane.b32.xlu0 %v4094, 24
  %v5345 = vpop.permute.xlu0 %5344
  %5346 = vrot.lane.b32.xlu0 %v3982, 24
  %v5347 = vpop.permute.xlu0 %5346
  %5348 = vrot.lane.b32.xlu0 %v4095, 24
  %v5349 = vpop.permute.xlu0 %5348
  %5350 = vrot.lane.b32.xlu0 %v3985, 24
  %v5351 = vpop.permute.xlu0 %5350
  %5352 = vrot.lane.b32.xlu0 %v4096, 24
  %v5353 = vpop.permute.xlu0 %5352
  %5354 = vrot.lane.b32.xlu0 %v3988, 24
  %v5355 = vpop.permute.xlu0 %5354
  %5356 = vrot.lane.b32.xlu0 %v4097, 24
  %v5357 = vpop.permute.xlu0 %5356
  %5358 = vrot.lane.b32.xlu0 %v3991, 24
  %v5359 = vpop.permute.xlu0 %5358
  %5360 = vrot.lane.b32.xlu0 %v4098, 24
  %v5361 = vpop.permute.xlu0 %5360
  %5362 = vrot.lane.b32.xlu0 %v3994, 24
  %v5363 = vpop.permute.xlu0 %5362
  %5364 = vrot.lane.b32.xlu0 %v4099, 24
  %v5365 = vpop.permute.xlu0 %5364
  %5366 = vrot.lane.b32.xlu0 %v3997, 24
  %v5367 = vpop.permute.xlu0 %5366
  %5368 = vrot.lane.b32.xlu0 %v4100, 24
  %v5369 = vpop.permute.xlu0 %5368
  %5370 = vrot.lane.b32.xlu0 %v4000, 24
  %v5371 = vpop.permute.xlu0 %5370
  %5372 = vrot.lane.b32.xlu0 %v4101, 24
  %v5373 = vpop.permute.xlu0 %5372
  %5374 = vrot.lane.b32.xlu0 %v4003, 24
  %v5375 = vpop.permute.xlu0 %5374
  %5376 = vrot.lane.b32.xlu0 %v4102, 24
  %v5377 = vpop.permute.xlu0 %5376
  %5378 = vrot.lane.b32.xlu0 %v4006, 24
  %v5379 = vpop.permute.xlu0 %5378
  %5380 = vrot.lane.b32.xlu0 %v4103, 24
  %v5381 = vpop.permute.xlu0 %5380
  %5382 = vrot.lane.b32.xlu0 %v4009, 24
  %v5383 = vpop.permute.xlu0 %5382
  %5444 = vrot.lane.b32.xlu0 %v3724, 28
  %v5445 = vpop.permute.xlu0 %5444
  %5446 = vrot.lane.b32.xlu0 %v3725, 28
  %v5447 = vpop.permute.xlu0 %5446
  %5448 = vrot.lane.b32.xlu0 %v3726, 28
  %v5449 = vpop.permute.xlu0 %5448
  %5450 = vrot.lane.b32.xlu0 %v3727, 28
  %v5451 = vpop.permute.xlu0 %5450
  %5452 = vrot.lane.b32.xlu0 %v3728, 28
  %v5453 = vpop.permute.xlu0 %5452
  %5454 = vrot.lane.b32.xlu0 %v3729, 28
  %v5455 = vpop.permute.xlu0 %5454
  %5456 = vrot.lane.b32.xlu0 %v3730, 28
  %v5457 = vpop.permute.xlu0 %5456
  %5458 = vrot.lane.b32.xlu0 %v3731, 28
  %v5459 = vpop.permute.xlu0 %5458
  %5460 = vrot.lane.b32.xlu0 %v3732, 28
  %v5461 = vpop.permute.xlu0 %5460
  %5462 = vrot.lane.b32.xlu0 %v3733, 28
  %v5463 = vpop.permute.xlu0 %5462
  %5464 = vrot.lane.b32.xlu0 %v3734, 28
  %v5465 = vpop.permute.xlu0 %5464
  %5466 = vrot.lane.b32.xlu0 %v3735, 28
  %v5467 = vpop.permute.xlu0 %5466
  %5468 = vrot.lane.b32.xlu0 %v3736, 28
  %v5469 = vpop.permute.xlu0 %5468
  %5470 = vrot.lane.b32.xlu0 %v3737, 28
  %v5471 = vpop.permute.xlu0 %5470
  %5472 = vrot.lane.b32.xlu0 %v3738, 28
  %v5473 = vpop.permute.xlu0 %5472
  %5474 = vrot.lane.b32.xlu0 %v3739, 28
  %v5475 = vpop.permute.xlu0 %5474
  %5476 = vrot.lane.b32.xlu0 %v3740, 28
  %v5477 = vpop.permute.xlu0 %5476
  %5478 = vrot.lane.b32.xlu0 %v3741, 28
  %v5479 = vpop.permute.xlu0 %5478
  %5480 = vrot.lane.b32.xlu0 %v3742, 28
  %v5481 = vpop.permute.xlu0 %5480
  %5482 = vrot.lane.b32.xlu0 %v3743, 28
  %v5483 = vpop.permute.xlu0 %5482
  %5484 = vrot.lane.b32.xlu0 %v3744, 28
  %v5485 = vpop.permute.xlu0 %5484
  %5486 = vrot.lane.b32.xlu0 %v3745, 28
  %v5487 = vpop.permute.xlu0 %5486
  %5488 = vrot.lane.b32.xlu0 %v3746, 28
  %v5489 = vpop.permute.xlu0 %5488
  %5490 = vrot.lane.b32.xlu0 %v3747, 28
  %v5491 = vpop.permute.xlu0 %5490
  %5492 = vrot.lane.b32.xlu0 %v3748, 28
  %v5493 = vpop.permute.xlu0 %5492
  %5494 = vrot.lane.b32.xlu0 %v3749, 28
  %v5495 = vpop.permute.xlu0 %5494
  %5496 = vrot.lane.b32.xlu0 %v3750, 28
  %v5497 = vpop.permute.xlu0 %5496
  %5498 = vrot.lane.b32.xlu0 %v3751, 28
  %v5499 = vpop.permute.xlu0 %5498
  %5500 = vrot.lane.b32.xlu0 %v3752, 28
  %v5501 = vpop.permute.xlu0 %5500
  %5502 = vrot.lane.b32.xlu0 %v3753, 28
  %v5503 = vpop.permute.xlu0 %5502
  %5504 = vrot.lane.b32.xlu0 %v3756, 28
  %v5505 = vpop.permute.xlu0 %5504
  %5506 = vrot.lane.b32.xlu0 %v3757, 28
  %v5507 = vpop.permute.xlu0 %5506
  %5508 = vrot.lane.b32.xlu0 %v3758, 28
  %v5509 = vpop.permute.xlu0 %5508
  %5510 = vrot.lane.b32.xlu0 %v3759, 28
  %v5511 = vpop.permute.xlu0 %5510
  %5512 = vrot.lane.b32.xlu0 %v3760, 28
  %v5513 = vpop.permute.xlu0 %5512
  %5514 = vrot.lane.b32.xlu0 %v3761, 28
  %v5515 = vpop.permute.xlu0 %5514
  %5516 = vrot.lane.b32.xlu0 %v3762, 28
  %v5517 = vpop.permute.xlu0 %5516
  %5518 = vrot.lane.b32.xlu0 %v3763, 28
  %v5519 = vpop.permute.xlu0 %5518
  %5520 = vrot.lane.b32.xlu0 %v3764, 28
  %v5521 = vpop.permute.xlu0 %5520
  %5522 = vrot.lane.b32.xlu0 %v3765, 28
  %v5523 = vpop.permute.xlu0 %5522
  %5524 = vrot.lane.b32.xlu0 %v3766, 28
  %v5525 = vpop.permute.xlu0 %5524
  %5526 = vrot.lane.b32.xlu0 %v3767, 28
  %v5527 = vpop.permute.xlu0 %5526
  %5528 = vrot.lane.b32.xlu0 %v3768, 28
  %v5529 = vpop.permute.xlu0 %5528
  %5530 = vrot.lane.b32.xlu0 %v3769, 28
  %v5531 = vpop.permute.xlu0 %5530
  %5532 = vrot.lane.b32.xlu0 %v3770, 28
  %v5533 = vpop.permute.xlu0 %5532
  %5534 = vrot.lane.b32.xlu0 %v3771, 28
  %v5535 = vpop.permute.xlu0 %5534
  %5536 = vrot.lane.b32.xlu0 %v3772, 28
  %v5537 = vpop.permute.xlu0 %5536
  %5538 = vrot.lane.b32.xlu0 %v3773, 28
  %v5539 = vpop.permute.xlu0 %5538
  %5540 = vrot.lane.b32.xlu0 %v3774, 28
  %v5541 = vpop.permute.xlu0 %5540
  %5542 = vrot.lane.b32.xlu0 %v3775, 28
  %v5543 = vpop.permute.xlu0 %5542
  %5544 = vrot.lane.b32.xlu0 %v3776, 28
  %v5545 = vpop.permute.xlu0 %5544
  %5546 = vrot.lane.b32.xlu0 %v3777, 28
  %v5547 = vpop.permute.xlu0 %5546
  %5548 = vrot.lane.b32.xlu0 %v3778, 28
  %v5549 = vpop.permute.xlu0 %5548
  %5550 = vrot.lane.b32.xlu0 %v3779, 28
  %v5551 = vpop.permute.xlu0 %5550
  %5552 = vrot.lane.b32.xlu0 %v3780, 28
  %v5553 = vpop.permute.xlu0 %5552
  %5554 = vrot.lane.b32.xlu0 %v3781, 28
  %v5555 = vpop.permute.xlu0 %5554
  %5556 = vrot.lane.b32.xlu0 %v3782, 28
  %v5557 = vpop.permute.xlu0 %5556
  %5558 = vrot.lane.b32.xlu0 %v3783, 28
  %v5559 = vpop.permute.xlu0 %5558
  %5560 = vrot.lane.b32.xlu0 %v3784, 28
  %v5561 = vpop.permute.xlu0 %5560
  %5562 = vrot.lane.b32.xlu0 %v3785, 28
  %v5563 = vpop.permute.xlu0 %5562
  %5624 = vrot.lane.b32.xlu0 %v4105, 32
  %v5625 = vpop.permute.xlu0 %5624
  %5626 = vrot.lane.b32.xlu0 %v4232, 32
  %v5627 = vpop.permute.xlu0 %5626
  %5628 = vrot.lane.b32.xlu0 %v4109, 32
  %v5629 = vpop.permute.xlu0 %5628
  %5630 = vrot.lane.b32.xlu0 %v4234, 32
  %v5631 = vpop.permute.xlu0 %5630
  %5632 = vrot.lane.b32.xlu0 %v4111, 32
  %v5633 = vpop.permute.xlu0 %5632
  %5634 = vrot.lane.b32.xlu0 %v4235, 32
  %v5635 = vpop.permute.xlu0 %5634
  %5636 = vrot.lane.b32.xlu0 %v4113, 32
  %v5637 = vpop.permute.xlu0 %5636
  %5638 = vrot.lane.b32.xlu0 %v4236, 32
  %v5639 = vpop.permute.xlu0 %5638
  %5640 = vrot.lane.b32.xlu0 %v4115, 32
  %v5641 = vpop.permute.xlu0 %5640
  %5642 = vrot.lane.b32.xlu0 %v4237, 32
  %v5643 = vpop.permute.xlu0 %5642
  %5644 = vrot.lane.b32.xlu0 %v4117, 32
  %v5645 = vpop.permute.xlu0 %5644
  %5646 = vrot.lane.b32.xlu0 %v4238, 32
  %v5647 = vpop.permute.xlu0 %5646
  %5648 = vrot.lane.b32.xlu0 %v4119, 32
  %v5649 = vpop.permute.xlu0 %5648
  %5650 = vrot.lane.b32.xlu0 %v4239, 32
  %v5651 = vpop.permute.xlu0 %5650
  %5652 = vrot.lane.b32.xlu0 %v4121, 32
  %v5653 = vpop.permute.xlu0 %5652
  %5654 = vrot.lane.b32.xlu0 %v4240, 32
  %v5655 = vpop.permute.xlu0 %5654
  %5656 = vrot.lane.b32.xlu0 %v4123, 32
  %v5657 = vpop.permute.xlu0 %5656
  %5658 = vrot.lane.b32.xlu0 %v4241, 32
  %v5659 = vpop.permute.xlu0 %5658
  %5660 = vrot.lane.b32.xlu0 %v4125, 32
  %v5661 = vpop.permute.xlu0 %5660
  %5662 = vrot.lane.b32.xlu0 %v4242, 32
  %v5663 = vpop.permute.xlu0 %5662
  %5664 = vrot.lane.b32.xlu0 %v4127, 32
  %v5665 = vpop.permute.xlu0 %5664
  %5666 = vrot.lane.b32.xlu0 %v4243, 32
  %v5667 = vpop.permute.xlu0 %5666
  %5668 = vrot.lane.b32.xlu0 %v4129, 32
  %v5669 = vpop.permute.xlu0 %5668
  %5670 = vrot.lane.b32.xlu0 %v4244, 32
  %v5671 = vpop.permute.xlu0 %5670
  %5672 = vrot.lane.b32.xlu0 %v4131, 32
  %v5673 = vpop.permute.xlu0 %5672
  %5674 = vrot.lane.b32.xlu0 %v4245, 32
  %v5675 = vpop.permute.xlu0 %5674
  %5676 = vrot.lane.b32.xlu0 %v4133, 32
  %v5677 = vpop.permute.xlu0 %5676
  %5678 = vrot.lane.b32.xlu0 %v4246, 32
  %v5679 = vpop.permute.xlu0 %5678
  %5680 = vrot.lane.b32.xlu0 %v4135, 32
  %v5681 = vpop.permute.xlu0 %5680
  %5682 = vrot.lane.b32.xlu0 %v4247, 32
  %v5683 = vpop.permute.xlu0 %5682
  %5684 = vrot.lane.b32.xlu0 %v4137, 32
  %v5685 = vpop.permute.xlu0 %5684
  %5686 = vrot.lane.b32.xlu0 %v4248, 32
  %v5687 = vpop.permute.xlu0 %5686
  %5688 = vrot.lane.b32.xlu0 %v4141, 32
  %v5689 = vpop.permute.xlu0 %5688
  %5690 = vrot.lane.b32.xlu0 %v4250, 32
  %v5691 = vpop.permute.xlu0 %5690
  %5692 = vrot.lane.b32.xlu0 %v4143, 32
  %v5693 = vpop.permute.xlu0 %5692
  %5694 = vrot.lane.b32.xlu0 %v4251, 32
  %v5695 = vpop.permute.xlu0 %5694
  %5696 = vrot.lane.b32.xlu0 %v4145, 32
  %v5697 = vpop.permute.xlu0 %5696
  %5698 = vrot.lane.b32.xlu0 %v4252, 32
  %v5699 = vpop.permute.xlu0 %5698
  %5700 = vrot.lane.b32.xlu0 %v4147, 32
  %v5701 = vpop.permute.xlu0 %5700
  %5702 = vrot.lane.b32.xlu0 %v4253, 32
  %v5703 = vpop.permute.xlu0 %5702
  %5704 = vrot.lane.b32.xlu0 %v4149, 32
  %v5705 = vpop.permute.xlu0 %5704
  %5706 = vrot.lane.b32.xlu0 %v4254, 32
  %v5707 = vpop.permute.xlu0 %5706
  %5708 = vrot.lane.b32.xlu0 %v4151, 32
  %v5709 = vpop.permute.xlu0 %5708
  %5710 = vrot.lane.b32.xlu0 %v4255, 32
  %v5711 = vpop.permute.xlu0 %5710
  %5712 = vrot.lane.b32.xlu0 %v4153, 32
  %v5713 = vpop.permute.xlu0 %5712
  %5714 = vrot.lane.b32.xlu0 %v4256, 32
  %v5715 = vpop.permute.xlu0 %5714
  %5716 = vrot.lane.b32.xlu0 %v4155, 32
  %v5717 = vpop.permute.xlu0 %5716
  %5718 = vrot.lane.b32.xlu0 %v4257, 32
  %v5719 = vpop.permute.xlu0 %5718
  %5720 = vrot.lane.b32.xlu0 %v4157, 32
  %v5721 = vpop.permute.xlu0 %5720
  %5722 = vrot.lane.b32.xlu0 %v4258, 32
  %v5723 = vpop.permute.xlu0 %5722
  %5724 = vrot.lane.b32.xlu0 %v4159, 32
  %v5725 = vpop.permute.xlu0 %5724
  %5726 = vrot.lane.b32.xlu0 %v4259, 32
  %v5727 = vpop.permute.xlu0 %5726
  %5728 = vrot.lane.b32.xlu0 %v4161, 32
  %v5729 = vpop.permute.xlu0 %5728
  %5730 = vrot.lane.b32.xlu0 %v4260, 32
  %v5731 = vpop.permute.xlu0 %5730
  %5732 = vrot.lane.b32.xlu0 %v4163, 32
  %v5733 = vpop.permute.xlu0 %5732
  %5734 = vrot.lane.b32.xlu0 %v4261, 32
  %v5735 = vpop.permute.xlu0 %5734
  %5736 = vrot.lane.b32.xlu0 %v4165, 32
  %v5737 = vpop.permute.xlu0 %5736
  %5738 = vrot.lane.b32.xlu0 %v4262, 32
  %v5739 = vpop.permute.xlu0 %5738
  %5740 = vrot.lane.b32.xlu0 %v4167, 32
  %v5741 = vpop.permute.xlu0 %5740
  %5742 = vrot.lane.b32.xlu0 %v4263, 32
  %v5743 = vpop.permute.xlu0 %5742
  %v5804 = vsel %vm2120, %v4072, %v4265
  %v5805 = vsel %vm2120, %v3916, %v4267
  %v5806 = vsel %vm2120, %v4073, %v4269
  %v5807 = vsel %vm2120, %v3919, %v4271
  %v5808 = vsel %vm2120, %v4074, %v4273
  %v5809 = vsel %vm2120, %v3922, %v4275
  %v5810 = vsel %vm2120, %v4075, %v4277
  %v5811 = vsel %vm2120, %v3925, %v4279
  %v5812 = vsel %vm2120, %v4076, %v4281
  %v5813 = vsel %vm2120, %v3928, %v4283
  %v5814 = vsel %vm2120, %v4077, %v4285
  %v5815 = vsel %vm2120, %v3931, %v4287
  %v5816 = vsel %vm2120, %v4078, %v4289
  %v5817 = vsel %vm2120, %v3934, %v4291
  %v5818 = vsel %vm2120, %v4079, %v4293
  %v5819 = vsel %vm2120, %v3937, %v4295
  %v5820 = vsel %vm2120, %v4080, %v4297
  %v5821 = vsel %vm2120, %v3940, %v4299
  %v5822 = vsel %vm2120, %v4081, %v4301
  %v5823 = vsel %vm2120, %v3943, %v4303
  %v5824 = vsel %vm2120, %v4082, %v4305
  %v5825 = vsel %vm2120, %v3946, %v4307
  %v5826 = vsel %vm2120, %v4083, %v4309
  %v5827 = vsel %vm2120, %v3949, %v4311
  %v5828 = vsel %vm2120, %v4084, %v4313
  %v5829 = vsel %vm2120, %v3952, %v4315
  %v5830 = vsel %vm2120, %v4085, %v4317
  %v5831 = vsel %vm2120, %v3955, %v4319
  %v5832 = vsel %vm2120, %v4086, %v4321
  %v5833 = vsel %vm2120, %v3958, %v4323
  %v5834 = vsel %vm2120, %v4088, %v4325
  %v5835 = vsel %vm2120, %v3964, %v4327
  %v5836 = vsel %vm2120, %v4089, %v4329
  %v5837 = vsel %vm2120, %v3967, %v4331
  %v5838 = vsel %vm2120, %v4090, %v4333
  %v5839 = vsel %vm2120, %v3970, %v4335
  %v5840 = vsel %vm2120, %v4091, %v4337
  %v5841 = vsel %vm2120, %v3973, %v4339
  %v5842 = vsel %vm2120, %v4092, %v4341
  %v5843 = vsel %vm2120, %v3976, %v4343
  %v5844 = vsel %vm2120, %v4093, %v4345
  %v5845 = vsel %vm2120, %v3979, %v4347
  %v5846 = vsel %vm2120, %v4094, %v4349
  %v5847 = vsel %vm2120, %v3982, %v4351
  %v5848 = vsel %vm2120, %v4095, %v4353
  %v5849 = vsel %vm2120, %v3985, %v4355
  %v5850 = vsel %vm2120, %v4096, %v4357
  %v5851 = vsel %vm2120, %v3988, %v4359
  %v5852 = vsel %vm2120, %v4097, %v4361
  %v5853 = vsel %vm2120, %v3991, %v4363
  %v5854 = vsel %vm2120, %v4098, %v4365
  %v5855 = vsel %vm2120, %v3994, %v4367
  %v5856 = vsel %vm2120, %v4099, %v4369
  %v5857 = vsel %vm2120, %v3997, %v4371
  %v5858 = vsel %vm2120, %v4100, %v4373
  %v5859 = vsel %vm2120, %v4000, %v4375
  %v5860 = vsel %vm2120, %v4101, %v4377
  %v5861 = vsel %vm2120, %v4003, %v4379
  %v5862 = vsel %vm2120, %v4102, %v4381
  %v5863 = vsel %vm2120, %v4006, %v4383
  %v5864 = vsel %vm2181, %v5804, %v4475
  %v5865 = vsel %vm2181, %v5805, %v4477
  %v5866 = vsel %vm2181, %v5806, %v4479
  %v5867 = vsel %vm2181, %v5807, %v4481
  %v5868 = vsel %vm2181, %v5808, %v4483
  %v5869 = vsel %vm2181, %v5809, %v4485
  %v5870 = vsel %vm2181, %v5810, %v4487
  %v5871 = vsel %vm2181, %v5811, %v4489
  %v5872 = vsel %vm2181, %v5812, %v4491
  %v5873 = vsel %vm2181, %v5813, %v4493
  %v5874 = vsel %vm2181, %v5814, %v4495
  %v5875 = vsel %vm2181, %v5815, %v4497
  %v5876 = vsel %vm2181, %v5816, %v4499
  %v5877 = vsel %vm2181, %v5817, %v4501
  %v5878 = vsel %vm2181, %v5818, %v4503
  %v5879 = vsel %vm2181, %v5819, %v4505
  %v5880 = vsel %vm2181, %v5820, %v4507
  %v5881 = vsel %vm2181, %v5821, %v4509
  %v5882 = vsel %vm2181, %v5822, %v4511
  %v5883 = vsel %vm2181, %v5823, %v4513
  %v5884 = vsel %vm2181, %v5824, %v4515
  %v5885 = vsel %vm2181, %v5825, %v4517
  %v5886 = vsel %vm2181, %v5826, %v4519
  %v5887 = vsel %vm2181, %v5827, %v4521
  %v5888 = vsel %vm2181, %v5828, %v4523
  %v5889 = vsel %vm2181, %v5829, %v4525
  %v5890 = vsel %vm2181, %v5830, %v4527
  %v5891 = vsel %vm2181, %v5831, %v4529
  %v5892 = vsel %vm2181, %v5832, %v4531
  %v5893 = vsel %vm2181, %v5833, %v4533
  %v5894 = vsel %vm2181, %v5834, %v4535
  %v5895 = vsel %vm2181, %v5835, %v4537
  %v5896 = vsel %vm2181, %v5836, %v4539
  %v5897 = vsel %vm2181, %v5837, %v4541
  %v5898 = vsel %vm2181, %v5838, %v4543
  %v5899 = vsel %vm2181, %v5839, %v4545
  %v5900 = vsel %vm2181, %v5840, %v4547
  %v5901 = vsel %vm2181, %v5841, %v4549
  %v5902 = vsel %vm2181, %v5842, %v4551
  %v5903 = vsel %vm2181, %v5843, %v4553
  %v5904 = vsel %vm2181, %v5844, %v4555
  %v5905 = vsel %vm2181, %v5845, %v4557
  %v5906 = vsel %vm2181, %v5846, %v4559
  %v5907 = vsel %vm2181, %v5847, %v4561
  %v5908 = vsel %vm2181, %v5848, %v4563
  %v5909 = vsel %vm2181, %v5849, %v4565
  %v5910 = vsel %vm2181, %v5850, %v4567
  %v5911 = vsel %vm2181, %v5851, %v4569
  %v5912 = vsel %vm2181, %v5852, %v4571
  %v5913 = vsel %vm2181, %v5853, %v4573
  %v5914 = vsel %vm2181, %v5854, %v4575
  %v5915 = vsel %vm2181, %v5855, %v4577
  %v5916 = vsel %vm2181, %v5856, %v4579
  %v5917 = vsel %vm2181, %v5857, %v4581
  %v5918 = vsel %vm2181, %v5858, %v4583
  %v5919 = vsel %vm2181, %v5859, %v4585
  %v5920 = vsel %vm2181, %v5860, %v4587
  %v5921 = vsel %vm2181, %v5861, %v4589
  %v5922 = vsel %vm2181, %v5862, %v4591
  %v5923 = vsel %vm2181, %v5863, %v4593
  %v5924 = vsel %vm2242, %v5864, %v4687
  %v5925 = vsel %vm2242, %v5865, %v4689
  %v5926 = vsel %vm2242, %v5866, %v4691
  %v5927 = vsel %vm2242, %v5867, %v4693
  %v5928 = vsel %vm2242, %v5864, %v4695
  %v5929 = vsel %vm2242, %v5865, %v4697
  %v5930 = vsel %vm2242, %v5868, %v4699
  %v5931 = vsel %vm2242, %v5869, %v4701
  %v5932 = vsel %vm2242, %v5870, %v4703
  %v5933 = vsel %vm2242, %v5871, %v4705
  %v5934 = vsel %vm2242, %v5872, %v4707
  %v5935 = vsel %vm2242, %v5873, %v4709
  %v5936 = vsel %vm2242, %v5874, %v4711
  %v5937 = vsel %vm2242, %v5875, %v4713
  %v5938 = vsel %vm2242, %v5876, %v4715
  %v5939 = vsel %vm2242, %v5877, %v4717
  %v5940 = vsel %vm2242, %v5878, %v4719
  %v5941 = vsel %vm2242, %v5879, %v4721
  %v5942 = vsel %vm2242, %v5880, %v4723
  %v5943 = vsel %vm2242, %v5881, %v4725
  %v5944 = vsel %vm2242, %v5882, %v4727
  %v5945 = vsel %vm2242, %v5883, %v4729
  %v5946 = vsel %vm2242, %v5884, %v4731
  %v5947 = vsel %vm2242, %v5885, %v4733
  %v5948 = vsel %vm2242, %v5886, %v4735
  %v5949 = vsel %vm2242, %v5887, %v4737
  %v5950 = vsel %vm2242, %v5888, %v4739
  %v5951 = vsel %vm2242, %v5889, %v4741
  %v5952 = vsel %vm2242, %v5890, %v4743
  %v5953 = vsel %vm2242, %v5891, %v4745
  %v5954 = vsel %vm2242, %v5892, %v4747
  %v5955 = vsel %vm2242, %v5893, %v4749
  %v5956 = vsel %vm2242, %v5894, %v4751
  %v5957 = vsel %vm2242, %v5895, %v4753
  %v5958 = vsel %vm2242, %v5896, %v4755
  %v5959 = vsel %vm2242, %v5897, %v4757
  %v5960 = vsel %vm2242, %v5894, %v4759
  %v5961 = vsel %vm2242, %v5895, %v4761
  %v5962 = vsel %vm2242, %v5898, %v4763
  %v5963 = vsel %vm2242, %v5899, %v4765
  %v5964 = vsel %vm2242, %v5900, %v4767
  %v5965 = vsel %vm2242, %v5901, %v4769
  %v5966 = vsel %vm2242, %v5902, %v4771
  %v5967 = vsel %vm2242, %v5903, %v4773
  %v5968 = vsel %vm2242, %v5904, %v4775
  %v5969 = vsel %vm2242, %v5905, %v4777
  %v5970 = vsel %vm2242, %v5906, %v4779
  %v5971 = vsel %vm2242, %v5907, %v4781
  %v5972 = vsel %vm2242, %v5908, %v4783
  %v5973 = vsel %vm2242, %v5909, %v4785
  %v5974 = vsel %vm2242, %v5910, %v4787
  %v5975 = vsel %vm2242, %v5911, %v4789
  %v5976 = vsel %vm2242, %v5912, %v4791
  %v5977 = vsel %vm2242, %v5913, %v4793
  %v5978 = vsel %vm2242, %v5914, %v4795
  %v5979 = vsel %vm2242, %v5915, %v4797
  %v5980 = vsel %vm2242, %v5916, %v4799
  %v5981 = vsel %vm2242, %v5917, %v4801
  %v5982 = vsel %vm2242, %v5918, %v4803
  %v5983 = vsel %vm2242, %v5919, %v4805
  %v5984 = vsel %vm2242, %v5920, %v4807
  %v5985 = vsel %vm2242, %v5921, %v4809
  %v5986 = vsel %vm2242, %v5922, %v4811
  %v5987 = vsel %vm2242, %v5923, %v4813
  %v5988 = vsel %vm2307, %v5924, %v4879
  %v5989 = vsel %vm2307, %v5925, %v4881
  %v5990 = vsel %vm2307, %v5926, %v4883
  %v5991 = vsel %vm2307, %v5927, %v4885
  %v5992 = vsel %vm2307, %v5928, %v4887
  %v5993 = vsel %vm2307, %v5929, %v4889
  %v5994 = vsel %vm2307, %v5930, %v4891
  %v5995 = vsel %vm2307, %v5931, %v4893
  %v5996 = vsel %vm2307, %v5932, %v4895
  %v5997 = vsel %vm2307, %v5933, %v4897
  %v5998 = vsel %vm2307, %v5934, %v4899
  %v5999 = vsel %vm2307, %v5935, %v4901
  %v6000 = vsel %vm2307, %v5936, %v4903
  %v6001 = vsel %vm2307, %v5937, %v4905
  %v6002 = vsel %vm2307, %v5938, %v4907
  %v6003 = vsel %vm2307, %v5939, %v4909
  %v6004 = vsel %vm2307, %v5940, %v4911
  %v6005 = vsel %vm2307, %v5941, %v4913
  %v6006 = vsel %vm2307, %v5942, %v4915
  %v6007 = vsel %vm2307, %v5943, %v4917
  %v6008 = vsel %vm2307, %v5944, %v4919
  %v6009 = vsel %vm2307, %v5945, %v4921
  %v6010 = vsel %vm2307, %v5946, %v4923
  %v6011 = vsel %vm2307, %v5947, %v4925
  %v6012 = vsel %vm2307, %v5948, %v4927
  %v6013 = vsel %vm2307, %v5949, %v4929
  %v6014 = vsel %vm2307, %v5950, %v4931
  %v6015 = vsel %vm2307, %v5951, %v4933
  %v6016 = vsel %vm2307, %v5952, %v4935
  %v6017 = vsel %vm2307, %v5953, %v4937
  %v6018 = vsel %vm2307, %v5954, %v4939
  %v6019 = vsel %vm2307, %v5955, %v4941
  %v6020 = vsel %vm2307, %v5956, %v4943
  %v6021 = vsel %vm2307, %v5957, %v4945
  %v6022 = vsel %vm2307, %v5958, %v4947
  %v6023 = vsel %vm2307, %v5959, %v4949
  %v6024 = vsel %vm2307, %v5960, %v4951
  %v6025 = vsel %vm2307, %v5961, %v4953
  %v6026 = vsel %vm2307, %v5962, %v4955
  %v6027 = vsel %vm2307, %v5963, %v4957
  %v6028 = vsel %vm2307, %v5964, %v4959
  %v6029 = vsel %vm2307, %v5965, %v4961
  %v6030 = vsel %vm2307, %v5966, %v4963
  %v6031 = vsel %vm2307, %v5967, %v4965
  %v6032 = vsel %vm2307, %v5968, %v4967
  %v6033 = vsel %vm2307, %v5969, %v4969
  %v6034 = vsel %vm2307, %v5970, %v4971
  %v6035 = vsel %vm2307, %v5971, %v4973
  %v6036 = vsel %vm2307, %v5972, %v4975
  %v6037 = vsel %vm2307, %v5973, %v4977
  %v6038 = vsel %vm2307, %v5974, %v4979
  %v6039 = vsel %vm2307, %v5975, %v4981
  %v6040 = vsel %vm2307, %v5976, %v4983
  %v6041 = vsel %vm2307, %v5977, %v4985
  %v6042 = vsel %vm2307, %v5978, %v4987
  %v6043 = vsel %vm2307, %v5979, %v4989
  %v6044 = vsel %vm2307, %v5980, %v4991
  %v6045 = vsel %vm2307, %v5981, %v4993
  %v6046 = vsel %vm2307, %v5982, %v4995
  %v6047 = vsel %vm2307, %v5983, %v4997
  %v6048 = vsel %vm2307, %v5984, %v4999
  %v6049 = vsel %vm2307, %v5985, %v5001
  %v6050 = vsel %vm2307, %v5986, %v5003
  %v6051 = vsel %vm2307, %v5987, %v5005
  %v6052 = vsel %vm2372, %v5988, %v5073
  %v6053 = vsel %vm2372, %v5989, %v5075
  %v6054 = vsel %vm2372, %v5990, %v5077
  %v6055 = vsel %vm2372, %v5991, %v5079
  %v6056 = vsel %vm2372, %v5992, %v5081
  %v6057 = vsel %vm2372, %v5993, %v5083
  %v6058 = vsel %vm2372, %v5994, %v5085
  %v6059 = vsel %vm2372, %v5995, %v5087
  %v6060 = vsel %vm2372, %v5996, %v5089
  %v6061 = vsel %vm2372, %v5997, %v5091
  %v6062 = vsel %vm2372, %v5998, %v5093
  %v6063 = vsel %vm2372, %v5999, %v5095
  %v6064 = vsel %vm2372, %v6000, %v5097
  %v6065 = vsel %vm2372, %v6001, %v5099
  %v6066 = vsel %vm2372, %v6002, %v5101
  %v6067 = vsel %vm2372, %v6003, %v5103
  %v6068 = vsel %vm2372, %v6004, %v5105
  %v6069 = vsel %vm2372, %v6005, %v5107
  %v6070 = vsel %vm2372, %v6006, %v5109
  %v6071 = vsel %vm2372, %v6007, %v5111
  %v6072 = vsel %vm2372, %v6008, %v5113
  %v6073 = vsel %vm2372, %v6009, %v5115
  %v6074 = vsel %vm2372, %v6010, %v5117
  %v6075 = vsel %vm2372, %v6011, %v5119
  %v6076 = vsel %vm2372, %v6012, %v5121
  %v6077 = vsel %vm2372, %v6013, %v5123
  %v6078 = vsel %vm2372, %v6014, %v5125
  %v6079 = vsel %vm2372, %v6015, %v5127
  %v6080 = vsel %vm2372, %v6016, %v5129
  %v6081 = vsel %vm2372, %v6017, %v5131
  %v6082 = vsel %vm2372, %v6018, %v5133
  %v6083 = vsel %vm2372, %v6019, %v5135
  %v6084 = vsel %vm2372, %v6020, %v5137
  %v6085 = vsel %vm2372, %v6021, %v5139
  %v6086 = vsel %vm2372, %v6022, %v5141
  %v6087 = vsel %vm2372, %v6023, %v5143
  %v6088 = vsel %vm2372, %v6024, %v5145
  %v6089 = vsel %vm2372, %v6025, %v5147
  %v6090 = vsel %vm2372, %v6026, %v5149
  %v6091 = vsel %vm2372, %v6027, %v5151
  %v6092 = vsel %vm2372, %v6028, %v5153
  %v6093 = vsel %vm2372, %v6029, %v5155
  %v6094 = vsel %vm2372, %v6030, %v5157
  %v6095 = vsel %vm2372, %v6031, %v5159
  %v6096 = vsel %vm2372, %v6032, %v5161
  %v6097 = vsel %vm2372, %v6033, %v5163
  %v6098 = vsel %vm2372, %v6034, %v5165
  %v6099 = vsel %vm2372, %v6035, %v5167
  %v6100 = vsel %vm2372, %v6036, %v5169
  %v6101 = vsel %vm2372, %v6037, %v5171
  %v6102 = vsel %vm2372, %v6038, %v5173
  %v6103 = vsel %vm2372, %v6039, %v5175
  %v6104 = vsel %vm2372, %v6040, %v5177
  %v6105 = vsel %vm2372, %v6041, %v5179
  %v6106 = vsel %vm2372, %v6042, %v5181
  %v6107 = vsel %vm2372, %v6043, %v5183
  %v6108 = vsel %vm2372, %v6044, %v5185
  %v6109 = vsel %vm2372, %v6045, %v5187
  %v6110 = vsel %vm2372, %v6046, %v5189
  %v6111 = vsel %vm2372, %v6047, %v5191
  %v6112 = vsel %vm2372, %v6048, %v5193
  %v6113 = vsel %vm2372, %v6049, %v5195
  %v6114 = vsel %vm2372, %v6050, %v5197
  %v6115 = vsel %vm2372, %v6051, %v5199
  %v6116 = vsel %vm2437, %v6052, %v5265
  %v6117 = vsel %vm2437, %v6053, %v5267
  %v6118 = vsel %vm2437, %v6054, %v5269
  %v6119 = vsel %vm2437, %v6055, %v5271
  %v6120 = vsel %vm2437, %v6056, %v5273
  %v6121 = vsel %vm2437, %v6057, %v5275
  %v6122 = vsel %vm2437, %v6058, %v5277
  %v6123 = vsel %vm2437, %v6059, %v5279
  %v6124 = vsel %vm2437, %v6060, %v5281
  %v6125 = vsel %vm2437, %v6061, %v5283
  %v6126 = vsel %vm2437, %v6062, %v5285
  %v6127 = vsel %vm2437, %v6063, %v5287
  %v6128 = vsel %vm2437, %v6064, %v5289
  %v6129 = vsel %vm2437, %v6065, %v5291
  %v6130 = vsel %vm2437, %v6066, %v5293
  %v6131 = vsel %vm2437, %v6067, %v5295
  %v6132 = vsel %vm2437, %v6068, %v5297
  %v6133 = vsel %vm2437, %v6069, %v5299
  %v6134 = vsel %vm2437, %v6070, %v5301
  %v6135 = vsel %vm2437, %v6071, %v5303
  %v6136 = vsel %vm2437, %v6072, %v5305
  %v6137 = vsel %vm2437, %v6073, %v5307
  %v6138 = vsel %vm2437, %v6074, %v5309
  %v6139 = vsel %vm2437, %v6075, %v5311
  %v6140 = vsel %vm2437, %v6076, %v5313
  %v6141 = vsel %vm2437, %v6077, %v5315
  %v6142 = vsel %vm2437, %v6078, %v5317
  %v6143 = vsel %vm2437, %v6079, %v5319
  %v6144 = vsel %vm2437, %v6080, %v5321
  %v6145 = vsel %vm2437, %v6081, %v5323
  %v6146 = vsel %vm2437, %v6082, %v5317
  %v6147 = vsel %vm2437, %v6083, %v5319
  %v6148 = vsel %vm2437, %v6084, %v5325
  %v6149 = vsel %vm2437, %v6085, %v5327
  %v6150 = vsel %vm2437, %v6086, %v5329
  %v6151 = vsel %vm2437, %v6087, %v5331
  %v6152 = vsel %vm2437, %v6088, %v5333
  %v6153 = vsel %vm2437, %v6089, %v5335
  %v6154 = vsel %vm2437, %v6090, %v5337
  %v6155 = vsel %vm2437, %v6091, %v5339
  %v6156 = vsel %vm2437, %v6092, %v5341
  %v6157 = vsel %vm2437, %v6093, %v5343
  %v6158 = vsel %vm2437, %v6094, %v5345
  %v6159 = vsel %vm2437, %v6095, %v5347
  %v6160 = vsel %vm2437, %v6096, %v5349
  %v6161 = vsel %vm2437, %v6097, %v5351
  %v6162 = vsel %vm2437, %v6098, %v5353
  %v6163 = vsel %vm2437, %v6099, %v5355
  %v6164 = vsel %vm2437, %v6100, %v5357
  %v6165 = vsel %vm2437, %v6101, %v5359
  %v6166 = vsel %vm2437, %v6102, %v5361
  %v6167 = vsel %vm2437, %v6103, %v5363
  %v6168 = vsel %vm2437, %v6104, %v5365
  %v6169 = vsel %vm2437, %v6105, %v5367
  %v6170 = vsel %vm2437, %v6106, %v5369
  %v6171 = vsel %vm2437, %v6107, %v5371
  %v6172 = vsel %vm2437, %v6108, %v5373
  %v6173 = vsel %vm2437, %v6109, %v5375
  %v6174 = vsel %vm2437, %v6110, %v5377
  %v6175 = vsel %vm2437, %v6111, %v5379
  %v6176 = vsel %vm2437, %v6112, %v5381
  %v6177 = vsel %vm2437, %v6113, %v5383
  %v6178 = vsel %vm2437, %v6114, %v5377
  %v6179 = vsel %vm2437, %v6115, %v5379
  %v6180 = vsel %vm2502, %v6116, %v5445
  %v6181 = vsel %vm2502, %v6117, %v5447
  %v6182 = vsel %vm2502, %v6118, %v5449
  %v6183 = vsel %vm2502, %v6119, %v5451
  %v6184 = vsel %vm2502, %v6120, %v5453
  %v6185 = vsel %vm2502, %v6121, %v5455
  %v6186 = vsel %vm2502, %v6122, %v5457
  %v6187 = vsel %vm2502, %v6123, %v5459
  %v6188 = vsel %vm2502, %v6124, %v5461
  %v6189 = vsel %vm2502, %v6125, %v5463
  %v6190 = vsel %vm2502, %v6126, %v5465
  %v6191 = vsel %vm2502, %v6127, %v5467
  %v6192 = vsel %vm2502, %v6128, %v5469
  %v6193 = vsel %vm2502, %v6129, %v5471
  %v6194 = vsel %vm2502, %v6130, %v5473
  %v6195 = vsel %vm2502, %v6131, %v5475
  %v6196 = vsel %vm2502, %v6132, %v5477
  %v6197 = vsel %vm2502, %v6133, %v5479
  %v6198 = vsel %vm2502, %v6134, %v5481
  %v6199 = vsel %vm2502, %v6135, %v5483
  %v6200 = vsel %vm2502, %v6136, %v5485
  %v6201 = vsel %vm2502, %v6137, %v5487
  %v6202 = vsel %vm2502, %v6138, %v5489
  %v6203 = vsel %vm2502, %v6139, %v5491
  %v6204 = vsel %vm2502, %v6140, %v5493
  %v6205 = vsel %vm2502, %v6141, %v5495
  %v6206 = vsel %vm2502, %v6142, %v5497
  %v6207 = vsel %vm2502, %v6143, %v5499
  %v6208 = vsel %vm2502, %v6144, %v5501
  %v6209 = vsel %vm2502, %v6145, %v5503
  %v6210 = vsel %vm2502, %v6146, %v5497
  %v6211 = vsel %vm2502, %v6147, %v5499
  %v6212 = vsel %vm2502, %v6148, %v5505
  %v6213 = vsel %vm2502, %v6149, %v5507
  %v6214 = vsel %vm2502, %v6150, %v5509
  %v6215 = vsel %vm2502, %v6151, %v5511
  %v6216 = vsel %vm2502, %v6152, %v5513
  %v6217 = vsel %vm2502, %v6153, %v5515
  %v6218 = vsel %vm2502, %v6154, %v5517
  %v6219 = vsel %vm2502, %v6155, %v5519
  %v6220 = vsel %vm2502, %v6156, %v5521
  %v6221 = vsel %vm2502, %v6157, %v5523
  %v6222 = vsel %vm2502, %v6158, %v5525
  %v6223 = vsel %vm2502, %v6159, %v5527
  %v6224 = vsel %vm2502, %v6160, %v5529
  %v6225 = vsel %vm2502, %v6161, %v5531
  %v6226 = vsel %vm2502, %v6162, %v5533
  %v6227 = vsel %vm2502, %v6163, %v5535
  %v6228 = vsel %vm2502, %v6164, %v5537
  %v6229 = vsel %vm2502, %v6165, %v5539
  %v6230 = vsel %vm2502, %v6166, %v5541
  %v6231 = vsel %vm2502, %v6167, %v5543
  %v6232 = vsel %vm2502, %v6168, %v5545
  %v6233 = vsel %vm2502, %v6169, %v5547
  %v6234 = vsel %vm2502, %v6170, %v5549
  %v6235 = vsel %vm2502, %v6171, %v5551
  %v6236 = vsel %vm2502, %v6172, %v5553
  %v6237 = vsel %vm2502, %v6173, %v5555
  %v6238 = vsel %vm2502, %v6174, %v5557
  %v6239 = vsel %vm2502, %v6175, %v5559
  %v6240 = vsel %vm2502, %v6176, %v5561
  %v6241 = vsel %vm2502, %v6177, %v5563
  %v6242 = vsel %vm2502, %v6178, %v5557
  %v6243 = vsel %vm2502, %v6179, %v5559
  %v6244 = vsel %vm2567, %v6180, %v5625
  %v6245 = vsel %vm2567, %v6181, %v5627
  %v6246 = vsel %vm2567, %v6182, %v5629
  %v6247 = vsel %vm2567, %v6183, %v5631
  %v6248 = vsel %vm2567, %v6184, %v5633
  %v6249 = vsel %vm2567, %v6185, %v5635
  %v6250 = vsel %vm2567, %v6186, %v5637
  %v6251 = vsel %vm2567, %v6187, %v5639
  %v6252 = vsel %vm2567, %v6188, %v5641
  %v6253 = vsel %vm2567, %v6189, %v5643
  %v6254 = vsel %vm2567, %v6190, %v5645
  %v6255 = vsel %vm2567, %v6191, %v5647
  %v6256 = vsel %vm2567, %v6192, %v5649
  %v6257 = vsel %vm2567, %v6193, %v5651
  %v6258 = vsel %vm2567, %v6194, %v5653
  %v6259 = vsel %vm2567, %v6195, %v5655
  %v6260 = vsel %vm2567, %v6196, %v5657
  %v6261 = vsel %vm2567, %v6197, %v5659
  %v6262 = vsel %vm2567, %v6198, %v5661
  %v6263 = vsel %vm2567, %v6199, %v5663
  %v6264 = vsel %vm2567, %v6200, %v5665
  %v6265 = vsel %vm2567, %v6201, %v5667
  %v6266 = vsel %vm2567, %v6202, %v5669
  %v6267 = vsel %vm2567, %v6203, %v5671
  %v6268 = vsel %vm2567, %v6204, %v5673
  %v6269 = vsel %vm2567, %v6205, %v5675
  %v6270 = vsel %vm2567, %v6206, %v5677
  %v6271 = vsel %vm2567, %v6207, %v5679
  %v6272 = vsel %vm2567, %v6208, %v5681
  %v6273 = vsel %vm2567, %v6209, %v5683
  %v6274 = vsel %vm2567, %v6210, %v5677
  %v6275 = vsel %vm2567, %v6211, %v5679
  %v6276 = vsel %vm2567, %v6212, %v5685
  %v6277 = vsel %vm2567, %v6213, %v5687
  %v6278 = vsel %vm2567, %v6214, %v5689
  %v6279 = vsel %vm2567, %v6215, %v5691
  %v6280 = vsel %vm2567, %v6216, %v5693
  %v6281 = vsel %vm2567, %v6217, %v5695
  %v6282 = vsel %vm2567, %v6218, %v5697
  %v6283 = vsel %vm2567, %v6219, %v5699
  %v6284 = vsel %vm2567, %v6220, %v5701
  %v6285 = vsel %vm2567, %v6221, %v5703
  %v6286 = vsel %vm2567, %v6222, %v5705
  %v6287 = vsel %vm2567, %v6223, %v5707
  %v6288 = vsel %vm2567, %v6224, %v5709
  %v6289 = vsel %vm2567, %v6225, %v5711
  %v6290 = vsel %vm2567, %v6226, %v5713
  %v6291 = vsel %vm2567, %v6227, %v5715
  %v6292 = vsel %vm2567, %v6228, %v5717
  %v6293 = vsel %vm2567, %v6229, %v5719
  %v6294 = vsel %vm2567, %v6230, %v5721
  %v6295 = vsel %vm2567, %v6231, %v5723
  %v6296 = vsel %vm2567, %v6232, %v5725
  %v6297 = vsel %vm2567, %v6233, %v5727
  %v6298 = vsel %vm2567, %v6234, %v5729
  %v6299 = vsel %vm2567, %v6235, %v5731
  %v6300 = vsel %vm2567, %v6236, %v5733
  %v6301 = vsel %vm2567, %v6237, %v5735
  %v6302 = vsel %vm2567, %v6238, %v5737
  %v6303 = vsel %vm2567, %v6239, %v5739
  %v6304 = vsel %vm2567, %v6240, %v5741
  %v6305 = vsel %vm2567, %v6241, %v5743
  %v6306 = vsel %vm2567, %v6242, %v5737
  %v6307 = vsel %vm2567, %v6243, %v5739
  %v6309 = vsel %vm2632, %v6244, 0
  %v6312 = vsel %vm2632, %v6245, 0
  %v6315 = vsel %vm2632, %v6246, 0
  %v6318 = vsel %vm2632, %v6247, 0
  %v6321 = vsel %vm2632, %v6248, 0
  %v6324 = vsel %vm2632, %v6249, 0
  %v6327 = vsel %vm2632, %v6250, 0
  %v6330 = vsel %vm2632, %v6251, 0
  %v6333 = vsel %vm2632, %v6252, 0
  %v6336 = vsel %vm2632, %v6253, 0
  %v6339 = vsel %vm2632, %v6254, 0
  %v6342 = vsel %vm2632, %v6255, 0
  %v6345 = vsel %vm2632, %v6256, 0
  %v6348 = vsel %vm2632, %v6257, 0
  %v6351 = vsel %vm2632, %v6258, 0
  %v6354 = vsel %vm2632, %v6259, 0
  %v6357 = vsel %vm2632, %v6260, 0
  %v6360 = vsel %vm2632, %v6261, 0
  %v6363 = vsel %vm2632, %v6262, 0
  %v6366 = vsel %vm2632, %v6263, 0
  %v6369 = vsel %vm2632, %v6264, 0
  %v6372 = vsel %vm2632, %v6265, 0
  %v6375 = vsel %vm2632, %v6266, 0
  %v6378 = vsel %vm2632, %v6267, 0
  %v6381 = vsel %vm2632, %v6268, 0
  %v6384 = vsel %vm2632, %v6269, 0
  %v6387 = vsel %vm2632, %v6270, 0
  %v6390 = vsel %vm2632, %v6271, 0
  %v6393 = vsel %vm2632, %v6272, 0
  %v6396 = vsel %vm2632, %v6273, 0
  %v6399 = vsel %vm2632, %v6274, 0
  %v6402 = vsel %vm2632, %v6275, 0
  %v6405 = vsel %vm2632, %v6276, 0
  %v6408 = vsel %vm2632, %v6277, 0
  %v6411 = vsel %vm2632, %v6278, 0
  %v6414 = vsel %vm2632, %v6279, 0
  %v6417 = vsel %vm2632, %v6280, 0
  %v6420 = vsel %vm2632, %v6281, 0
  %v6423 = vsel %vm2632, %v6282, 0
  %v6426 = vsel %vm2632, %v6283, 0
  %v6429 = vsel %vm2632, %v6284, 0
  %v6432 = vsel %vm2632, %v6285, 0
  %v6435 = vsel %vm2632, %v6286, 0
  %v6438 = vsel %vm2632, %v6287, 0
  %v6441 = vsel %vm2632, %v6288, 0
  %v6444 = vsel %vm2632, %v6289, 0
  %v6447 = vsel %vm2632, %v6290, 0
  %v6450 = vsel %vm2632, %v6291, 0
  %v6453 = vsel %vm2632, %v6292, 0
  %v6456 = vsel %vm2632, %v6293, 0
  %v6459 = vsel %vm2632, %v6294, 0
  %v6462 = vsel %vm2632, %v6295, 0
  %v6465 = vsel %vm2632, %v6296, 0
  %v6468 = vsel %vm2632, %v6297, 0
  %v6471 = vsel %vm2632, %v6298, 0
  %v6474 = vsel %vm2632, %v6299, 0
  %v6477 = vsel %vm2632, %v6300, 0
  %v6480 = vsel %vm2632, %v6301, 0
  %v6483 = vsel %vm2632, %v6302, 0
  %v6486 = vsel %vm2632, %v6303, 0
  %v6489 = vsel %vm2632, %v6304, 0
  %v6492 = vsel %vm2632, %v6305, 0
  %v6495 = vsel %vm2632, %v6306, 0
  %v6498 = vsel %vm2632, %v6307, 0
  %v6501 = vsel %vm2825, %v99, 0
  %6503 = vmatprep.subr.mxu0 0.0
  %6504 = vmatpush1.msra.mxu0 %v95
  %6505 = vmatprep.subr.mxu0 0.0
  %6506 = vmatpush1.msra.mxu0 %v96
  %6507 = vmatprep.subr.mxu0 0.0
  %6508 = vmatpush1.msra.mxu0 %v97
  %6509 = vmatprep.subr.mxu0 0.0
  %6510 = vmatpush1.msra.mxu0 %v98
  %6511 = vmatprep.subr.mxu0 0.0
  %6512 = vmatpush1.msra.mxu0 %v6501
  %6513 = vmatprep.subr.mxu0 0.0
  %6514 = vmatpush1.msra.mxu0 0.0
  %6515 = vmatprep.subr.mxu0 0.0
  %6516 = vmatpush1.msra.mxu0 0.0
  %6517 = vmatprep.subr.mxu0 0.0
  %6518 = vmatpush1.msra.mxu0 0.0
  %6519 = vmatprep.subr.mxu0 0.0
  %6520 = vmatpush1.msra.mxu0 0.0
  %6521 = vmatprep.subr.mxu0 0.0
  %6522 = vmatpush1.msra.mxu0 0.0
  %6523 = vmatprep.subr.mxu0 0.0
  %6524 = vmatpush1.msra.mxu0 0.0
  %6525 = vmatprep.subr.mxu0 0.0
  %6526 = vmatpush1.msra.mxu0 0.0
  %6527 = vmatprep.subr.mxu0 0.0
  %6528 = vmatpush1.msra.mxu0 0.0
  %6529 = vmatprep.subr.mxu0 0.0
  %6530 = vmatpush1.msra.mxu0 0.0
  %6531 = vmatprep.subr.mxu0 0.0
  %6532 = vmatpush1.msra.mxu0 0.0
  %6533 = vmatprep.subr.mxu0 0.0
  %6534 = vmatpush1.msra.mxu0 0.0
  %6535 = vmatprep.subr.mxu0 0.0
  %6536 = vmatpush1.msra.mxu0 0.0
  %6537 = vmatprep.subr.mxu0 0.0
  %6538 = vmatpush1.msra.mxu0 0.0
  %6539 = vmatprep.subr.mxu0 0.0
  %6540 = vmatpush1.msra.mxu0 0.0
  %6541 = vmatprep.subr.mxu0 0.0
  %6542 = vmatpush1.msra.mxu0 0.0
  %6543 = vmatprep.subr.mxu0 0.0
  %6544 = vmatpush1.msra.mxu0 0.0
  %6545 = vmatprep.subr.mxu0 0.0
  %6546 = vmatpush1.msra.mxu0 0.0
  %6547 = vmatprep.subr.mxu0 0.0
  %6548 = vmatpush1.msra.mxu0 0.0
  %6549 = vmatprep.subr.mxu0 0.0
  %6550 = vmatpush1.msra.mxu0 0.0
  %6551 = vmatprep.subr.mxu0 0.0
  %6552 = vmatpush1.msra.mxu0 0.0
  %6553 = vmatprep.subr.mxu0 0.0
  %6554 = vmatpush1.msra.mxu0 0.0
  %6555 = vmatprep.subr.mxu0 0.0
  %6556 = vmatpush1.msra.mxu0 0.0
  %6557 = vmatprep.subr.mxu0 0.0
  %6558 = vmatpush1.msra.mxu0 0.0
  %6559 = vmatprep.subr.mxu0 0.0
  %6560 = vmatpush1.msra.mxu0 0.0
  %6561 = vmatprep.subr.mxu0 0.0
  %6562 = vmatpush1.msra.mxu0 0.0
  %6563 = vmatprep.subr.mxu0 0.0
  %6564 = vmatpush1.msra.mxu0 0.0
  %6565 = vmatprep.subr.mxu0 0.0
  %6566 = vmatpush1.msra.mxu0 0.0
  %6567 = vmatprep.mubr.f32.mxu0 0.0
  %6568 = vmatmul.mubr.f32.gmra.mrb[0].mxu0 %v6309
  %v6569 = vpop.f32.mrb[0].mxu0
  %v6570 = vadd.f32 0.0, %v6569
  %v6571 = vpop.f32.mrb[0].mxu0
  %6572 = vmatprep.mubr.f32.mxu0 0.0
  %6573 = vmatmul.mubr.f32.gmra.mrb[0].mxu0 %v6312
  %v6574 = vpop.f32.mrb[0].mxu0
  %v6575 = vadd.f32 0.0, %v6574
  %v6576 = vpop.f32.mrb[0].mxu0
  %6577 = vmatprep.mubr.f32.mxu0 0.0
  %6578 = vmatmul.mubr.f32.gmra.mrb[0].mxu0 %v6315
  %v6579 = vpop.f32.mrb[0].mxu0
  %v6580 = vadd.f32 0.0, %v6579
  %v6581 = vpop.f32.mrb[0].mxu0
  %6582 = vmatprep.mubr.f32.mxu0 0.0
  %6583 = vmatmul.mubr.f32.gmra.mrb[0].mxu0 %v6318
  %v6584 = vpop.f32.mrb[0].mxu0
  %v6585 = vadd.f32 0.0, %v6584
  %v6586 = vpop.f32.mrb[0].mxu0
  %6587 = vmatprep.mubr.f32.mxu0 0.0
  %6588 = vmatmul.mubr.f32.gmra.mrb[0].mxu0 %v6321
  %v6589 = vpop.f32.mrb[0].mxu0
  %v6590 = vadd.f32 0.0, %v6589
  %v6591 = vpop.f32.mrb[0].mxu0
  %6592 = vmatprep.mubr.f32.mxu0 0.0
  %6593 = vmatmul.mubr.f32.gmra.mrb[0].mxu0 %v6324
  %v6594 = vpop.f32.mrb[0].mxu0
  %v6595 = vadd.f32 0.0, %v6594
  %v6596 = vpop.f32.mrb[0].mxu0
  %6597 = vmatprep.mubr.f32.mxu0 0.0
  %6598 = vmatmul.mubr.f32.gmra.mrb[0].mxu0 %v6327
  %v6599 = vpop.f32.mrb[0].mxu0
  %v6600 = vadd.f32 0.0, %v6599
  %v6601 = vpop.f32.mrb[0].mxu0
  %6602 = vmatprep.mubr.f32.mxu0 0.0
  %6603 = vmatmul.mubr.f32.gmra.mrb[0].mxu0 %v6330
  %v6604 = vpop.f32.mrb[0].mxu0
  %v6605 = vadd.f32 0.0, %v6604
  %v6606 = vpop.f32.mrb[0].mxu0
  %6607 = vmatprep.mubr.f32.mxu0 0.0
  %6608 = vmatmul.mubr.f32.gmra.mrb[0].mxu0 %v6333
  %v6609 = vpop.f32.mrb[0].mxu0
  %v6610 = vadd.f32 0.0, %v6609
  %v6611 = vpop.f32.mrb[0].mxu0
  %6612 = vmatprep.mubr.f32.mxu0 0.0
  %6613 = vmatmul.mubr.f32.gmra.mrb[0].mxu0 %v6336
  %v6614 = vpop.f32.mrb[0].mxu0
  %v6615 = vadd.f32 0.0, %v6614
  %v6616 = vpop.f32.mrb[0].mxu0
  %6617 = vmatprep.mubr.f32.mxu0 0.0
  %6618 = vmatmul.mubr.f32.gmra.mrb[0].mxu0 %v6339
  %v6619 = vpop.f32.mrb[0].mxu0
  %v6620 = vadd.f32 0.0, %v6619
  %v6621 = vpop.f32.mrb[0].mxu0
  %6622 = vmatprep.mubr.f32.mxu0 0.0
  %6623 = vmatmul.mubr.f32.gmra.mrb[0].mxu0 %v6342
  %v6624 = vpop.f32.mrb[0].mxu0
  %v6625 = vadd.f32 0.0, %v6624
  %v6626 = vpop.f32.mrb[0].mxu0
  %6627 = vmatprep.mubr.f32.mxu0 0.0
  %6628 = vmatmul.mubr.f32.gmra.mrb[0].mxu0 %v6345
  %v6629 = vpop.f32.mrb[0].mxu0
  %v6630 = vadd.f32 0.0, %v6629
  %v6631 = vpop.f32.mrb[0].mxu0
  %6632 = vmatprep.mubr.f32.mxu0 0.0
  %6633 = vmatmul.mubr.f32.gmra.mrb[0].mxu0 %v6348
  %v6634 = vpop.f32.mrb[0].mxu0
  %v6635 = vadd.f32 0.0, %v6634
  %v6636 = vpop.f32.mrb[0].mxu0
  %6637 = vmatprep.mubr.f32.mxu0 0.0
  %6638 = vmatmul.mubr.f32.gmra.mrb[0].mxu0 %v6351
  %v6639 = vpop.f32.mrb[0].mxu0
  %v6640 = vadd.f32 0.0, %v6639
  %v6641 = vpop.f32.mrb[0].mxu0
  %6642 = vmatprep.mubr.f32.mxu0 0.0
  %6643 = vmatmul.mubr.f32.gmra.mrb[0].mxu0 %v6354
  %v6644 = vpop.f32.mrb[0].mxu0
  %v6645 = vadd.f32 0.0, %v6644
  %v6646 = vpop.f32.mrb[0].mxu0
  %6647 = vmatprep.mubr.f32.mxu0 0.0
  %6648 = vmatmul.mubr.f32.gmra.mrb[0].mxu0 %v6357
  %v6649 = vpop.f32.mrb[0].mxu0
  %v6650 = vadd.f32 0.0, %v6649
  %v6651 = vpop.f32.mrb[0].mxu0
  %6652 = vmatprep.mubr.f32.mxu0 0.0
  %6653 = vmatmul.mubr.f32.gmra.mrb[0].mxu0 %v6360
  %v6654 = vpop.f32.mrb[0].mxu0
  %v6655 = vadd.f32 0.0, %v6654
  %v6656 = vpop.f32.mrb[0].mxu0
  %6657 = vmatprep.mubr.f32.mxu0 0.0
  %6658 = vmatmul.mubr.f32.gmra.mrb[0].mxu0 %v6363
  %v6659 = vpop.f32.mrb[0].mxu0
  %v6660 = vadd.f32 0.0, %v6659
  %v6661 = vpop.f32.mrb[0].mxu0
  %6662 = vmatprep.mubr.f32.mxu0 0.0
  %6663 = vmatmul.mubr.f32.gmra.mrb[0].mxu0 %v6366
  %v6664 = vpop.f32.mrb[0].mxu0
  %v6665 = vadd.f32 0.0, %v6664
  %v6666 = vpop.f32.mrb[0].mxu0
  %6667 = vmatprep.mubr.f32.mxu0 0.0
  %6668 = vmatmul.mubr.f32.gmra.mrb[0].mxu0 %v6369
  %v6669 = vpop.f32.mrb[0].mxu0
  %v6670 = vadd.f32 0.0, %v6669
  %v6671 = vpop.f32.mrb[0].mxu0
  %6672 = vmatprep.mubr.f32.mxu0 0.0
  %6673 = vmatmul.mubr.f32.gmra.mrb[0].mxu0 %v6372
  %v6674 = vpop.f32.mrb[0].mxu0
  %v6675 = vadd.f32 0.0, %v6674
  %v6676 = vpop.f32.mrb[0].mxu0
  %6677 = vmatprep.mubr.f32.mxu0 0.0
  %6678 = vmatmul.mubr.f32.gmra.mrb[0].mxu0 %v6375
  %v6679 = vpop.f32.mrb[0].mxu0
  %v6680 = vadd.f32 0.0, %v6679
  %v6681 = vpop.f32.mrb[0].mxu0
  %6682 = vmatprep.mubr.f32.mxu0 0.0
  %6683 = vmatmul.mubr.f32.gmra.mrb[0].mxu0 %v6378
  %v6684 = vpop.f32.mrb[0].mxu0
  %v6685 = vadd.f32 0.0, %v6684
  %v6686 = vpop.f32.mrb[0].mxu0
  %6687 = vmatprep.mubr.f32.mxu0 0.0
  %6688 = vmatmul.mubr.f32.gmra.mrb[0].mxu0 %v6381
  %v6689 = vpop.f32.mrb[0].mxu0
  %v6690 = vadd.f32 0.0, %v6689
  %v6691 = vpop.f32.mrb[0].mxu0
  %6692 = vmatprep.mubr.f32.mxu0 0.0
  %6693 = vmatmul.mubr.f32.gmra.mrb[0].mxu0 %v6384
  %v6694 = vpop.f32.mrb[0].mxu0
  %v6695 = vadd.f32 0.0, %v6694
  %v6696 = vpop.f32.mrb[0].mxu0
  %6697 = vmatprep.mubr.f32.mxu0 0.0
  %6698 = vmatmul.mubr.f32.gmra.mrb[0].mxu0 %v6387
  %v6699 = vpop.f32.mrb[0].mxu0
  %v6700 = vadd.f32 0.0, %v6699
  %v6701 = vpop.f32.mrb[0].mxu0
  %6702 = vmatprep.mubr.f32.mxu0 0.0
  %6703 = vmatmul.mubr.f32.gmra.mrb[0].mxu0 %v6390
  %v6704 = vpop.f32.mrb[0].mxu0
  %v6705 = vadd.f32 0.0, %v6704
  %v6706 = vpop.f32.mrb[0].mxu0
  %6707 = vmatprep.mubr.f32.mxu0 0.0
  %6708 = vmatmul.mubr.f32.gmra.mrb[0].mxu0 %v6393
  %v6709 = vpop.f32.mrb[0].mxu0
  %v6710 = vadd.f32 0.0, %v6709
  %v6711 = vpop.f32.mrb[0].mxu0
  %6712 = vmatprep.mubr.f32.mxu0 0.0
  %6713 = vmatmul.mubr.f32.gmra.mrb[0].mxu0 %v6396
  %v6714 = vpop.f32.mrb[0].mxu0
  %v6715 = vadd.f32 0.0, %v6714
  %v6716 = vpop.f32.mrb[0].mxu0
  %6717 = vmatprep.mubr.f32.mxu0 0.0
  %6718 = vmatmul.mubr.f32.gmra.mrb[0].mxu0 %v6399
  %v6719 = vpop.f32.mrb[0].mxu0
  %v6720 = vadd.f32 0.0, %v6719
  %v6721 = vpop.f32.mrb[0].mxu0
  %6722 = vmatprep.mubr.f32.mxu0 0.0
  %6723 = vmatmul.mubr.f32.gmra.mrb[0].mxu0 %v6402
  %v6724 = vpop.f32.mrb[0].mxu0
  %v6725 = vadd.f32 0.0, %v6724
  %v6726 = vpop.f32.mrb[0].mxu0
  %6727 = vmatprep.mubr.f32.mxu0 0.0
  %6728 = vmatmul.mubr.f32.gmra.mrb[0].mxu0 %v6405
  %v6729 = vpop.f32.mrb[0].mxu0
  %v6730 = vadd.f32 0.0, %v6729
  %v6731 = vpop.f32.mrb[0].mxu0
  %6732 = vmatprep.mubr.f32.mxu0 0.0
  %6733 = vmatmul.mubr.f32.gmra.mrb[0].mxu0 %v6408
  %v6734 = vpop.f32.mrb[0].mxu0
  %v6735 = vadd.f32 0.0, %v6734
  %v6736 = vpop.f32.mrb[0].mxu0
  %6737 = vmatprep.mubr.f32.mxu0 0.0
  %6738 = vmatmul.mubr.f32.gmra.mrb[0].mxu0 %v6411
  %v6739 = vpop.f32.mrb[0].mxu0
  %v6740 = vadd.f32 0.0, %v6739
  %v6741 = vpop.f32.mrb[0].mxu0
  %6742 = vmatprep.mubr.f32.mxu0 0.0
  %6743 = vmatmul.mubr.f32.gmra.mrb[0].mxu0 %v6414
  %v6744 = vpop.f32.mrb[0].mxu0
  %v6745 = vadd.f32 0.0, %v6744
  %v6746 = vpop.f32.mrb[0].mxu0
  %6747 = vmatprep.mubr.f32.mxu0 0.0
  %6748 = vmatmul.mubr.f32.gmra.mrb[0].mxu0 %v6417
  %v6749 = vpop.f32.mrb[0].mxu0
  %v6750 = vadd.f32 0.0, %v6749
  %v6751 = vpop.f32.mrb[0].mxu0
  %6752 = vmatprep.mubr.f32.mxu0 0.0
  %6753 = vmatmul.mubr.f32.gmra.mrb[0].mxu0 %v6420
  %v6754 = vpop.f32.mrb[0].mxu0
  %v6755 = vadd.f32 0.0, %v6754
  %v6756 = vpop.f32.mrb[0].mxu0
  %6757 = vmatprep.mubr.f32.mxu0 0.0
  %6758 = vmatmul.mubr.f32.gmra.mrb[0].mxu0 %v6423
  %v6759 = vpop.f32.mrb[0].mxu0
  %v6760 = vadd.f32 0.0, %v6759
  %v6761 = vpop.f32.mrb[0].mxu0
  %6762 = vmatprep.mubr.f32.mxu0 0.0
  %6763 = vmatmul.mubr.f32.gmra.mrb[0].mxu0 %v6426
  %v6764 = vpop.f32.mrb[0].mxu0
  %v6765 = vadd.f32 0.0, %v6764
  %v6766 = vpop.f32.mrb[0].mxu0
  %6767 = vmatprep.mubr.f32.mxu0 0.0
  %6768 = vmatmul.mubr.f32.gmra.mrb[0].mxu0 %v6429
  %v6769 = vpop.f32.mrb[0].mxu0
  %v6770 = vadd.f32 0.0, %v6769
  %v6771 = vpop.f32.mrb[0].mxu0
  %6772 = vmatprep.mubr.f32.mxu0 0.0
  %6773 = vmatmul.mubr.f32.gmra.mrb[0].mxu0 %v6432
  %v6774 = vpop.f32.mrb[0].mxu0
  %v6775 = vadd.f32 0.0, %v6774
  %v6776 = vpop.f32.mrb[0].mxu0
  %6777 = vmatprep.mubr.f32.mxu0 0.0
  %6778 = vmatmul.mubr.f32.gmra.mrb[0].mxu0 %v6435
  %v6779 = vpop.f32.mrb[0].mxu0
  %v6780 = vadd.f32 0.0, %v6779
  %v6781 = vpop.f32.mrb[0].mxu0
  %6782 = vmatprep.mubr.f32.mxu0 0.0
  %6783 = vmatmul.mubr.f32.gmra.mrb[0].mxu0 %v6438
  %v6784 = vpop.f32.mrb[0].mxu0
  %v6785 = vadd.f32 0.0, %v6784
  %v6786 = vpop.f32.mrb[0].mxu0
  %6787 = vmatprep.mubr.f32.mxu0 0.0
  %6788 = vmatmul.mubr.f32.gmra.mrb[0].mxu0 %v6441
  %v6789 = vpop.f32.mrb[0].mxu0
  %v6790 = vadd.f32 0.0, %v6789
  %v6791 = vpop.f32.mrb[0].mxu0
  %6792 = vmatprep.mubr.f32.mxu0 0.0
  %6793 = vmatmul.mubr.f32.gmra.mrb[0].mxu0 %v6444
  %v6794 = vpop.f32.mrb[0].mxu0
  %v6795 = vadd.f32 0.0, %v6794
  %v6796 = vpop.f32.mrb[0].mxu0
  %6797 = vmatprep.mubr.f32.mxu0 0.0
  %6798 = vmatmul.mubr.f32.gmra.mrb[0].mxu0 %v6447
  %v6799 = vpop.f32.mrb[0].mxu0
  %v6800 = vadd.f32 0.0, %v6799
  %v6801 = vpop.f32.mrb[0].mxu0
  %6802 = vmatprep.mubr.f32.mxu0 0.0
  %6803 = vmatmul.mubr.f32.gmra.mrb[0].mxu0 %v6450
  %v6804 = vpop.f32.mrb[0].mxu0
  %v6805 = vadd.f32 0.0, %v6804
  %v6806 = vpop.f32.mrb[0].mxu0
  %6807 = vmatprep.mubr.f32.mxu0 0.0
  %6808 = vmatmul.mubr.f32.gmra.mrb[0].mxu0 %v6453
  %v6809 = vpop.f32.mrb[0].mxu0
  %v6810 = vadd.f32 0.0, %v6809
  %v6811 = vpop.f32.mrb[0].mxu0
  %6812 = vmatprep.mubr.f32.mxu0 0.0
  %6813 = vmatmul.mubr.f32.gmra.mrb[0].mxu0 %v6456
  %v6814 = vpop.f32.mrb[0].mxu0
  %v6815 = vadd.f32 0.0, %v6814
  %v6816 = vpop.f32.mrb[0].mxu0
  %6817 = vmatprep.mubr.f32.mxu0 0.0
  %6818 = vmatmul.mubr.f32.gmra.mrb[0].mxu0 %v6459
  %v6819 = vpop.f32.mrb[0].mxu0
  %v6820 = vadd.f32 0.0, %v6819
  %v6821 = vpop.f32.mrb[0].mxu0
  %6822 = vmatprep.mubr.f32.mxu0 0.0
  %6823 = vmatmul.mubr.f32.gmra.mrb[0].mxu0 %v6462
  %v6824 = vpop.f32.mrb[0].mxu0
  %v6825 = vadd.f32 0.0, %v6824
  %v6826 = vpop.f32.mrb[0].mxu0
  %6827 = vmatprep.mubr.f32.mxu0 0.0
  %6828 = vmatmul.mubr.f32.gmra.mrb[0].mxu0 %v6465
  %v6829 = vpop.f32.mrb[0].mxu0
  %v6830 = vadd.f32 0.0, %v6829
  %v6831 = vpop.f32.mrb[0].mxu0
  %6832 = vmatprep.mubr.f32.mxu0 0.0
  %6833 = vmatmul.mubr.f32.gmra.mrb[0].mxu0 %v6468
  %v6834 = vpop.f32.mrb[0].mxu0
  %v6835 = vadd.f32 0.0, %v6834
  %v6836 = vpop.f32.mrb[0].mxu0
  %6837 = vmatprep.mubr.f32.mxu0 0.0
  %6838 = vmatmul.mubr.f32.gmra.mrb[0].mxu0 %v6471
  %v6839 = vpop.f32.mrb[0].mxu0
  %v6840 = vadd.f32 0.0, %v6839
  %v6841 = vpop.f32.mrb[0].mxu0
  %6842 = vmatprep.mubr.f32.mxu0 0.0
  %6843 = vmatmul.mubr.f32.gmra.mrb[0].mxu0 %v6474
  %v6844 = vpop.f32.mrb[0].mxu0
  %v6845 = vadd.f32 0.0, %v6844
  %v6846 = vpop.f32.mrb[0].mxu0
  %6847 = vmatprep.mubr.f32.mxu0 0.0
  %6848 = vmatmul.mubr.f32.gmra.mrb[0].mxu0 %v6477
  %v6849 = vpop.f32.mrb[0].mxu0
  %v6850 = vadd.f32 0.0, %v6849
  %v6851 = vpop.f32.mrb[0].mxu0
  %6852 = vmatprep.mubr.f32.mxu0 0.0
  %6853 = vmatmul.mubr.f32.gmra.mrb[0].mxu0 %v6480
  %v6854 = vpop.f32.mrb[0].mxu0
  %v6855 = vadd.f32 0.0, %v6854
  %v6856 = vpop.f32.mrb[0].mxu0
  %6857 = vmatprep.mubr.f32.mxu0 0.0
  %6858 = vmatmul.mubr.f32.gmra.mrb[0].mxu0 %v6483
  %v6859 = vpop.f32.mrb[0].mxu0
  %v6860 = vadd.f32 0.0, %v6859
  %v6861 = vpop.f32.mrb[0].mxu0
  %6862 = vmatprep.mubr.f32.mxu0 0.0
  %6863 = vmatmul.mubr.f32.gmra.mrb[0].mxu0 %v6486
  %v6864 = vpop.f32.mrb[0].mxu0
  %v6865 = vadd.f32 0.0, %v6864
  %v6866 = vpop.f32.mrb[0].mxu0
  %6867 = vmatprep.mubr.f32.mxu0 0.0
  %6868 = vmatmul.mubr.f32.gmra.mrb[0].mxu0 %v6489
  %v6869 = vpop.f32.mrb[0].mxu0
  %v6870 = vadd.f32 0.0, %v6869
  %v6871 = vpop.f32.mrb[0].mxu0
  %6872 = vmatprep.mubr.f32.mxu0 0.0
  %6873 = vmatmul.mubr.f32.gmra.mrb[0].mxu0 %v6492
  %v6874 = vpop.f32.mrb[0].mxu0
  %v6875 = vadd.f32 0.0, %v6874
  %v6876 = vpop.f32.mrb[0].mxu0
  %6877 = vmatprep.mubr.f32.mxu0 0.0
  %6878 = vmatmul.mubr.f32.gmra.mrb[0].mxu0 %v6495
  %v6879 = vpop.f32.mrb[0].mxu0
  %v6880 = vadd.f32 0.0, %v6879
  %v6881 = vpop.f32.mrb[0].mxu0
  %6882 = vmatprep.mubr.f32.mxu0 0.0
  %6883 = vmatmul.mubr.f32.gmra.mrb[0].mxu0 %v6498
  %v6884 = vpop.f32.mrb[0].mxu0
  %v6885 = vadd.f32 0.0, %v6884
  %v6886 = vpop.f32.mrb[0].mxu0
  %6887 = vdwg.mxu0
  %v6888 = vld [vmem:[%s5] sm:$0x1]
  %v6889 = vld [vmem:[%s6] sm:$0x1]
  %v6890 = vsel %vm2120, %v6570, 0.0
  %v6891 = vsel %vm2120, %v6575, 0.0
  %v6892 = vadd.f32 %v6890, %v6891
  %v6893 = vsel %vm2120, %v6580, 0.0
  %v6894 = vadd.f32 %v6892, %v6893
  %v6895 = vsel %vm2120, %v6585, 0.0
  %v6896 = vadd.f32 %v6894, %v6895
  %v6897 = vsel %vm2120, %v6590, 0.0
  %v6898 = vadd.f32 %v6896, %v6897
  %v6899 = vsel %vm2120, %v6595, 0.0
  %v6900 = vadd.f32 %v6898, %v6899
  %v6901 = vsel %vm2120, %v6600, 0.0
  %v6902 = vadd.f32 %v6900, %v6901
  %v6903 = vsel %vm2120, %v6605, 0.0
  %v6904 = vadd.f32 %v6902, %v6903
  %v6905 = vsel %vm2120, %v6610, 0.0
  %v6906 = vadd.f32 %v6904, %v6905
  %v6907 = vsel %vm2120, %v6615, 0.0
  %v6908 = vadd.f32 %v6906, %v6907
  %v6909 = vsel %vm2120, %v6620, 0.0
  %v6910 = vadd.f32 %v6908, %v6909
  %v6911 = vsel %vm2120, %v6625, 0.0
  %v6912 = vadd.f32 %v6910, %v6911
  %v6913 = vsel %vm2120, %v6630, 0.0
  %v6914 = vadd.f32 %v6912, %v6913
  %v6915 = vsel %vm2120, %v6635, 0.0
  %v6916 = vadd.f32 %v6914, %v6915
  %v6917 = vsel %vm2120, %v6640, 0.0
  %v6918 = vadd.f32 %v6916, %v6917
  %v6919 = vsel %vm2120, %v6645, 0.0
  %v6920 = vadd.f32 %v6918, %v6919
  %v6921 = vsel %vm2120, %v6650, 0.0
  %v6922 = vadd.f32 %v6920, %v6921
  %v6923 = vsel %vm2120, %v6655, 0.0
  %v6924 = vadd.f32 %v6922, %v6923
  %v6925 = vsel %vm2120, %v6660, 0.0
  %v6926 = vadd.f32 %v6924, %v6925
  %v6927 = vsel %vm2120, %v6665, 0.0
  %v6928 = vadd.f32 %v6926, %v6927
  %v6929 = vsel %vm2120, %v6670, 0.0
  %v6930 = vadd.f32 %v6928, %v6929
  %v6931 = vsel %vm2120, %v6675, 0.0
  %v6932 = vadd.f32 %v6930, %v6931
  %v6933 = vsel %vm2120, %v6680, 0.0
  %v6934 = vadd.f32 %v6932, %v6933
  %v6935 = vsel %vm2120, %v6685, 0.0
  %v6936 = vadd.f32 %v6934, %v6935
  %v6937 = vsel %vm2120, %v6690, 0.0
  %v6938 = vadd.f32 %v6936, %v6937
  %v6939 = vsel %vm2120, %v6695, 0.0
  %v6940 = vadd.f32 %v6938, %v6939
  %v6941 = vsel %vm2120, %v6700, 0.0
  %v6942 = vadd.f32 %v6940, %v6941
  %v6943 = vsel %vm2120, %v6705, 0.0
  %v6944 = vadd.f32 %v6942, %v6943
  %v6945 = vsel %vm2120, %v6710, 0.0
  %v6946 = vadd.f32 %v6944, %v6945
  %v6947 = vsel %vm2120, %v6715, 0.0
  %v6948 = vadd.f32 %v6946, %v6947
  %v6949 = vsel %vm2120, %v6720, 0.0
  %v6950 = vadd.f32 %v6948, %v6949
  %v6951 = vsel %vm2120, %v6725, 0.0
  %v6952 = vadd.f32 %v6950, %v6951
  %v6953 = vrot.slane %v6952, 4
  %v6954 = vadd.f32 %v6952, %v6953
  %v6955 = vrot.slane %v6954, 2
  %v6956 = vadd.f32 %v6954, %v6955
  %v6957 = vrot.slane %v6956, 1
  %v6958 = vadd.f32 %v6956, %v6957
  %v6959 = vsel %vm2120, %v6730, 0.0
  %v6960 = vsel %vm2120, %v6735, 0.0
  %v6961 = vadd.f32 %v6959, %v6960
  %v6962 = vsel %vm2120, %v6740, 0.0
  %v6963 = vadd.f32 %v6961, %v6962
  %v6964 = vsel %vm2120, %v6745, 0.0
  %v6965 = vadd.f32 %v6963, %v6964
  %v6966 = vsel %vm2120, %v6750, 0.0
  %v6967 = vadd.f32 %v6965, %v6966
  %v6968 = vsel %vm2120, %v6755, 0.0
  %v6969 = vadd.f32 %v6967, %v6968
  %v6970 = vsel %vm2120, %v6760, 0.0
  %v6971 = vadd.f32 %v6969, %v6970
  %v6972 = vsel %vm2120, %v6765, 0.0
  %v6973 = vadd.f32 %v6971, %v6972
  %v6974 = vsel %vm2120, %v6770, 0.0
  %v6975 = vadd.f32 %v6973, %v6974
  %v6976 = vsel %vm2120, %v6775, 0.0
  %v6977 = vadd.f32 %v6975, %v6976
  %v6978 = vsel %vm2120, %v6780, 0.0
  %v6979 = vadd.f32 %v6977, %v6978
  %v6980 = vsel %vm2120, %v6785, 0.0
  %v6981 = vadd.f32 %v6979, %v6980
  %v6982 = vsel %vm2120, %v6790, 0.0
  %v6983 = vadd.f32 %v6981, %v6982
  %v6984 = vsel %vm2120, %v6795, 0.0
  %v6985 = vadd.f32 %v6983, %v6984
  %v6986 = vsel %vm2120, %v6800, 0.0
  %v6987 = vadd.f32 %v6985, %v6986
  %v6988 = vsel %vm2120, %v6805, 0.0
  %v6989 = vadd.f32 %v6987, %v6988
  %v6990 = vsel %vm2120, %v6810, 0.0
  %v6991 = vadd.f32 %v6989, %v6990
  %v6992 = vsel %vm2120, %v6815, 0.0
  %v6993 = vadd.f32 %v6991, %v6992
  %v6994 = vsel %vm2120, %v6820, 0.0
  %v6995 = vadd.f32 %v6993, %v6994
  %v6996 = vsel %vm2120, %v6825, 0.0
  %v6997 = vadd.f32 %v6995, %v6996
  %v6998 = vsel %vm2120, %v6830, 0.0
  %v6999 = vadd.f32 %v6997, %v6998
  %v7000 = vsel %vm2120, %v6835, 0.0
  %v7001 = vadd.f32 %v6999, %v7000
  %v7002 = vsel %vm2120, %v6840, 0.0
  %v7003 = vadd.f32 %v7001, %v7002
  %v7004 = vsel %vm2120, %v6845, 0.0
  %v7005 = vadd.f32 %v7003, %v7004
  %v7006 = vsel %vm2120, %v6850, 0.0
  %v7007 = vadd.f32 %v7005, %v7006
  %v7008 = vsel %vm2120, %v6855, 0.0
  %v7009 = vadd.f32 %v7007, %v7008
  %v7010 = vsel %vm2120, %v6860, 0.0
  %v7011 = vadd.f32 %v7009, %v7010
  %v7012 = vsel %vm2120, %v6865, 0.0
  %v7013 = vadd.f32 %v7011, %v7012
  %v7014 = vsel %vm2120, %v6870, 0.0
  %v7015 = vadd.f32 %v7013, %v7014
  %v7016 = vsel %vm2120, %v6875, 0.0
  %v7017 = vadd.f32 %v7015, %v7016
  %v7018 = vsel %vm2120, %v6880, 0.0
  %v7019 = vadd.f32 %v7017, %v7018
  %v7020 = vsel %vm2120, %v6885, 0.0
  %v7021 = vadd.f32 %v7019, %v7020
  %v7022 = vrot.slane %v7021, 4
  %v7023 = vadd.f32 %v7021, %v7022
  %v7024 = vrot.slane %v7023, 2
  %v7025 = vadd.f32 %v7023, %v7024
  %v7026 = vrot.slane %v7025, 1
  %v7027 = vadd.f32 %v7025, %v7026
  %v7028 = vmul.f32 %v6570, %v6570
  %v7029 = vmul.f32 %v6575, %v6575
  %v7030 = vmul.f32 %v6580, %v6580
  %v7031 = vmul.f32 %v6585, %v6585
  %v7032 = vmul.f32 %v6590, %v6590
  %v7033 = vmul.f32 %v6595, %v6595
  %v7034 = vmul.f32 %v6600, %v6600
  %v7035 = vmul.f32 %v6605, %v6605
  %v7036 = vmul.f32 %v6610, %v6610
  %v7037 = vmul.f32 %v6615, %v6615
  %v7038 = vmul.f32 %v6620, %v6620
  %v7039 = vmul.f32 %v6625, %v6625
  %v7040 = vmul.f32 %v6630, %v6630
  %v7041 = vmul.f32 %v6635, %v6635
  %v7042 = vmul.f32 %v6640, %v6640
  %v7043 = vmul.f32 %v6645, %v6645
  %v7044 = vmul.f32 %v6650, %v6650
  %v7045 = vmul.f32 %v6655, %v6655
  %v7046 = vmul.f32 %v6660, %v6660
  %v7047 = vmul.f32 %v6665, %v6665
  %v7048 = vmul.f32 %v6670, %v6670
  %v7049 = vmul.f32 %v6675, %v6675
  %v7050 = vmul.f32 %v6680, %v6680
  %v7051 = vmul.f32 %v6685, %v6685
  %v7052 = vmul.f32 %v6690, %v6690
  %v7053 = vmul.f32 %v6695, %v6695
  %v7054 = vmul.f32 %v6700, %v6700
  %v7055 = vmul.f32 %v6705, %v6705
  %v7056 = vmul.f32 %v6710, %v6710
  %v7057 = vmul.f32 %v6715, %v6715
  %v7058 = vmul.f32 %v6720, %v6720
  %v7059 = vmul.f32 %v6725, %v6725
  %v7060 = vmul.f32 %v6730, %v6730
  %v7061 = vmul.f32 %v6735, %v6735
  %v7062 = vmul.f32 %v6740, %v6740
  %v7063 = vmul.f32 %v6745, %v6745
  %v7064 = vmul.f32 %v6750, %v6750
  %v7065 = vmul.f32 %v6755, %v6755
  %v7066 = vmul.f32 %v6760, %v6760
  %v7067 = vmul.f32 %v6765, %v6765
  %v7068 = vmul.f32 %v6770, %v6770
  %v7069 = vmul.f32 %v6775, %v6775
  %v7070 = vmul.f32 %v6780, %v6780
  %v7071 = vmul.f32 %v6785, %v6785
  %v7072 = vmul.f32 %v6790, %v6790
  %v7073 = vmul.f32 %v6795, %v6795
  %v7074 = vmul.f32 %v6800, %v6800
  %v7075 = vmul.f32 %v6805, %v6805
  %v7076 = vmul.f32 %v6810, %v6810
  %v7077 = vmul.f32 %v6815, %v6815
  %v7078 = vmul.f32 %v6820, %v6820
  %v7079 = vmul.f32 %v6825, %v6825
  %v7080 = vmul.f32 %v6830, %v6830
  %v7081 = vmul.f32 %v6835, %v6835
  %v7082 = vmul.f32 %v6840, %v6840
  %v7083 = vmul.f32 %v6845, %v6845
  %v7084 = vmul.f32 %v6850, %v6850
  %v7085 = vmul.f32 %v6855, %v6855
  %v7086 = vmul.f32 %v6860, %v6860
  %v7087 = vmul.f32 %v6865, %v6865
  %v7088 = vmul.f32 %v6870, %v6870
  %v7089 = vmul.f32 %v6875, %v6875
  %v7090 = vmul.f32 %v6880, %v6880
  %v7091 = vmul.f32 %v6885, %v6885
  %v7092 = vsel %vm2120, %v7028, 0.0
  %v7093 = vsel %vm2120, %v7029, 0.0
  %v7094 = vadd.f32 %v7092, %v7093
  %v7095 = vsel %vm2120, %v7030, 0.0
  %v7096 = vadd.f32 %v7094, %v7095
  %v7097 = vsel %vm2120, %v7031, 0.0
  %v7098 = vadd.f32 %v7096, %v7097
  %v7099 = vsel %vm2120, %v7032, 0.0
  %v7100 = vadd.f32 %v7098, %v7099
  %v7101 = vsel %vm2120, %v7033, 0.0
  %v7102 = vadd.f32 %v7100, %v7101
  %v7103 = vsel %vm2120, %v7034, 0.0
  %v7104 = vadd.f32 %v7102, %v7103
  %v7105 = vsel %vm2120, %v7035, 0.0
  %v7106 = vadd.f32 %v7104, %v7105
  %v7107 = vsel %vm2120, %v7036, 0.0
  %v7108 = vadd.f32 %v7106, %v7107
  %v7109 = vsel %vm2120, %v7037, 0.0
  %v7110 = vadd.f32 %v7108, %v7109
  %v7111 = vsel %vm2120, %v7038, 0.0
  %v7112 = vadd.f32 %v7110, %v7111
  %v7113 = vsel %vm2120, %v7039, 0.0
  %v7114 = vadd.f32 %v7112, %v7113
  %v7115 = vsel %vm2120, %v7040, 0.0
  %v7116 = vadd.f32 %v7114, %v7115
  %v7117 = vsel %vm2120, %v7041, 0.0
  %v7118 = vadd.f32 %v7116, %v7117
  %v7119 = vsel %vm2120, %v7042, 0.0
  %v7120 = vadd.f32 %v7118, %v7119
  %v7121 = vsel %vm2120, %v7043, 0.0
  %v7122 = vadd.f32 %v7120, %v7121
  %v7123 = vsel %vm2120, %v7044, 0.0
  %v7124 = vadd.f32 %v7122, %v7123
  %v7125 = vsel %vm2120, %v7045, 0.0
  %v7126 = vadd.f32 %v7124, %v7125
  %v7127 = vsel %vm2120, %v7046, 0.0
  %v7128 = vadd.f32 %v7126, %v7127
  %v7129 = vsel %vm2120, %v7047, 0.0
  %v7130 = vadd.f32 %v7128, %v7129
  %v7131 = vsel %vm2120, %v7048, 0.0
  %v7132 = vadd.f32 %v7130, %v7131
  %v7133 = vsel %vm2120, %v7049, 0.0
  %v7134 = vadd.f32 %v7132, %v7133
  %v7135 = vsel %vm2120, %v7050, 0.0
  %v7136 = vadd.f32 %v7134, %v7135
  %v7137 = vsel %vm2120, %v7051, 0.0
  %v7138 = vadd.f32 %v7136, %v7137
  %v7139 = vsel %vm2120, %v7052, 0.0
  %v7140 = vadd.f32 %v7138, %v7139
  %v7141 = vsel %vm2120, %v7053, 0.0
  %v7142 = vadd.f32 %v7140, %v7141
  %v7143 = vsel %vm2120, %v7054, 0.0
  %v7144 = vadd.f32 %v7142, %v7143
  %v7145 = vsel %vm2120, %v7055, 0.0
  %v7146 = vadd.f32 %v7144, %v7145
  %v7147 = vsel %vm2120, %v7056, 0.0
  %v7148 = vadd.f32 %v7146, %v7147
  %v7149 = vsel %vm2120, %v7057, 0.0
  %v7150 = vadd.f32 %v7148, %v7149
  %v7151 = vsel %vm2120, %v7058, 0.0
  %v7152 = vadd.f32 %v7150, %v7151
  %v7153 = vsel %vm2120, %v7059, 0.0
  %v7154 = vadd.f32 %v7152, %v7153
  %v7155 = vrot.slane %v7154, 4
  %v7156 = vadd.f32 %v7154, %v7155
  %v7157 = vrot.slane %v7156, 2
  %v7158 = vadd.f32 %v7156, %v7157
  %v7159 = vrot.slane %v7158, 1
  %v7160 = vadd.f32 %v7158, %v7159
  %v7161 = vsel %vm2120, %v7060, 0.0
  %v7162 = vsel %vm2120, %v7061, 0.0
  %v7163 = vadd.f32 %v7161, %v7162
  %v7164 = vsel %vm2120, %v7062, 0.0
  %v7165 = vadd.f32 %v7163, %v7164
  %v7166 = vsel %vm2120, %v7063, 0.0
  %v7167 = vadd.f32 %v7165, %v7166
  %v7168 = vsel %vm2120, %v7064, 0.0
  %v7169 = vadd.f32 %v7167, %v7168
  %v7170 = vsel %vm2120, %v7065, 0.0
  %v7171 = vadd.f32 %v7169, %v7170
  %v7172 = vsel %vm2120, %v7066, 0.0
  %v7173 = vadd.f32 %v7171, %v7172
  %v7174 = vsel %vm2120, %v7067, 0.0
  %v7175 = vadd.f32 %v7173, %v7174
  %v7176 = vsel %vm2120, %v7068, 0.0
  %v7177 = vadd.f32 %v7175, %v7176
  %v7178 = vsel %vm2120, %v7069, 0.0
  %v7179 = vadd.f32 %v7177, %v7178
  %v7180 = vsel %vm2120, %v7070, 0.0
  %v7181 = vadd.f32 %v7179, %v7180
  %v7182 = vsel %vm2120, %v7071, 0.0
  %v7183 = vadd.f32 %v7181, %v7182
  %v7184 = vsel %vm2120, %v7072, 0.0
  %v7185 = vadd.f32 %v7183, %v7184
  %v7186 = vsel %vm2120, %v7073, 0.0
  %v7187 = vadd.f32 %v7185, %v7186
  %v7188 = vsel %vm2120, %v7074, 0.0
  %v7189 = vadd.f32 %v7187, %v7188
  %v7190 = vsel %vm2120, %v7075, 0.0
  %v7191 = vadd.f32 %v7189, %v7190
  %v7192 = vsel %vm2120, %v7076, 0.0
  %v7193 = vadd.f32 %v7191, %v7192
  %v7194 = vsel %vm2120, %v7077, 0.0
  %v7195 = vadd.f32 %v7193, %v7194
  %v7196 = vsel %vm2120, %v7078, 0.0
  %v7197 = vadd.f32 %v7195, %v7196
  %v7198 = vsel %vm2120, %v7079, 0.0
  %v7199 = vadd.f32 %v7197, %v7198
  %v7200 = vsel %vm2120, %v7080, 0.0
  %v7201 = vadd.f32 %v7199, %v7200
  %v7202 = vsel %vm2120, %v7081, 0.0
  %v7203 = vadd.f32 %v7201, %v7202
  %v7204 = vsel %vm2120, %v7082, 0.0
  %v7205 = vadd.f32 %v7203, %v7204
  %v7206 = vsel %vm2120, %v7083, 0.0
  %v7207 = vadd.f32 %v7205, %v7206
  %v7208 = vsel %vm2120, %v7084, 0.0
  %v7209 = vadd.f32 %v7207, %v7208
  %v7210 = vsel %vm2120, %v7085, 0.0
  %v7211 = vadd.f32 %v7209, %v7210
  %v7212 = vsel %vm2120, %v7086, 0.0
  %v7213 = vadd.f32 %v7211, %v7212
  %v7214 = vsel %vm2120, %v7087, 0.0
  %v7215 = vadd.f32 %v7213, %v7214
  %v7216 = vsel %vm2120, %v7088, 0.0
  %v7217 = vadd.f32 %v7215, %v7216
  %v7218 = vsel %vm2120, %v7089, 0.0
  %v7219 = vadd.f32 %v7217, %v7218
  %v7220 = vsel %vm2120, %v7090, 0.0
  %v7221 = vadd.f32 %v7219, %v7220
  %v7222 = vsel %vm2120, %v7091, 0.0
  %v7223 = vadd.f32 %v7221, %v7222
  %v7224 = vrot.slane %v7223, 4
  %v7225 = vadd.f32 %v7223, %v7224
  %v7226 = vrot.slane %v7225, 2
  %v7227 = vadd.f32 %v7225, %v7226
  %v7228 = vrot.slane %v7227, 1
  %v7229 = vadd.f32 %v7227, %v7228
  %v7230 = vmul.f32 %v6958, 0.00390625
  %v7231 = vmul.f32 %v7027, 0.00390625
  %v7232 = vmul.f32 %v7160, 0.00390625
  %v7233 = vmul.f32 %v7229, 0.00390625
  %v7234 = vmul.f32 %v7230, %v7230
  %v7235 = vmul.f32 %v7231, %v7231
  %v7236 = vsub.f32 %v7232, %v7234
  %v7237 = vsub.f32 %v7233, %v7235
  %v7238 = vadd.f32 %v7236, 1e-05
  %v7239 = vadd.f32 %v7237, 1e-05
  %v7240 = vrsqrt.pop %v7238
  %v7241 = vrsqrt.pop %v7239
  %v7242 = vmul.f32 %v7240, %v6888
  %v7243 = vmul.f32 %v7241, %v6888
  %v7244 = vmul.f32 %v7230, %v7242
  %v7245 = vmul.f32 %v7231, %v7243
  %v7246 = vsub.f32 %v6889, %v7244
  %v7247 = vsub.f32 %v6889, %v7245
  %v7248 = vlaneseq
  %v7249 = vshrl.u32 %v7248, 7
  %v7250 = vsub.s32 0, %v7249
  %v7251 = vrot.slane %v7242, %v7250
  %v7252 = vlaneseq
  %v7253 = vshrl.u32 %v7252, 7
  %v7254 = vsub.s32 0, %v7253
  %v7255 = vrot.slane %v7243, %v7254
  %v7256 = vmul.f32 %v6570, %v7251
  %v7257 = vmul.f32 %v6575, %v7251
  %v7258 = vmul.f32 %v6580, %v7251
  %v7259 = vmul.f32 %v6585, %v7251
  %v7260 = vmul.f32 %v6590, %v7251
  %v7261 = vmul.f32 %v6595, %v7251
  %v7262 = vmul.f32 %v6600, %v7251
  %v7263 = vmul.f32 %v6605, %v7251
  %v7264 = vmul.f32 %v6610, %v7251
  %v7265 = vmul.f32 %v6615, %v7251
  %v7266 = vmul.f32 %v6620, %v7251
  %v7267 = vmul.f32 %v6625, %v7251
  %v7268 = vmul.f32 %v6630, %v7251
  %v7269 = vmul.f32 %v6635, %v7251
  %v7270 = vmul.f32 %v6640, %v7251
  %v7271 = vmul.f32 %v6645, %v7251
  %v7272 = vmul.f32 %v6650, %v7251
  %v7273 = vmul.f32 %v6655, %v7251
  %v7274 = vmul.f32 %v6660, %v7251
  %v7275 = vmul.f32 %v6665, %v7251
  %v7276 = vmul.f32 %v6670, %v7251
  %v7277 = vmul.f32 %v6675, %v7251
  %v7278 = vmul.f32 %v6680, %v7251
  %v7279 = vmul.f32 %v6685, %v7251
  %v7280 = vmul.f32 %v6690, %v7251
  %v7281 = vmul.f32 %v6695, %v7251
  %v7282 = vmul.f32 %v6700, %v7251
  %v7283 = vmul.f32 %v6705, %v7251
  %v7284 = vmul.f32 %v6710, %v7251
  %v7285 = vmul.f32 %v6715, %v7251
  %v7286 = vmul.f32 %v6720, %v7251
  %v7287 = vmul.f32 %v6725, %v7251
  %v7288 = vmul.f32 %v6730, %v7255
  %v7289 = vmul.f32 %v6735, %v7255
  %v7290 = vmul.f32 %v6740, %v7255
  %v7291 = vmul.f32 %v6745, %v7255
  %v7292 = vmul.f32 %v6750, %v7255
  %v7293 = vmul.f32 %v6755, %v7255
  %v7294 = vmul.f32 %v6760, %v7255
  %v7295 = vmul.f32 %v6765, %v7255
  %v7296 = vmul.f32 %v6770, %v7255
  %v7297 = vmul.f32 %v6775, %v7255
  %v7298 = vmul.f32 %v6780, %v7255
  %v7299 = vmul.f32 %v6785, %v7255
  %v7300 = vmul.f32 %v6790, %v7255
  %v7301 = vmul.f32 %v6795, %v7255
  %v7302 = vmul.f32 %v6800, %v7255
  %v7303 = vmul.f32 %v6805, %v7255
  %v7304 = vmul.f32 %v6810, %v7255
  %v7305 = vmul.f32 %v6815, %v7255
  %v7306 = vmul.f32 %v6820, %v7255
  %v7307 = vmul.f32 %v6825, %v7255
  %v7308 = vmul.f32 %v6830, %v7255
  %v7309 = vmul.f32 %v6835, %v7255
  %v7310 = vmul.f32 %v6840, %v7255
  %v7311 = vmul.f32 %v6845, %v7255
  %v7312 = vmul.f32 %v6850, %v7255
  %v7313 = vmul.f32 %v6855, %v7255
  %v7314 = vmul.f32 %v6860, %v7255
  %v7315 = vmul.f32 %v6865, %v7255
  %v7316 = vmul.f32 %v6870, %v7255
  %v7317 = vmul.f32 %v6875, %v7255
  %v7318 = vmul.f32 %v6880, %v7255
  %v7319 = vmul.f32 %v6885, %v7255
  %v7322 = vlaneseq
  %v7323 = vshrl.u32 %v7322, 7
  %v7324 = vsub.s32 0, %v7323
  %v7325 = vrot.slane %v7246, %v7324
  %v7326 = vlaneseq
  %v7327 = vshrl.u32 %v7326, 7
  %v7328 = vsub.s32 0, %v7327
  %v7329 = vrot.slane %v7247, %v7328
  %v7332 = vadd.f32 %v7256, %v7325
  %v7333 = vadd.f32 %v7257, %v7325
  %v7334 = vadd.f32 %v7258, %v7325
  %v7335 = vadd.f32 %v7259, %v7325
  %v7336 = vadd.f32 %v7260, %v7325
  %v7337 = vadd.f32 %v7261, %v7325
  %v7338 = vadd.f32 %v7262, %v7325
  %v7339 = vadd.f32 %v7263, %v7325
  %v7340 = vadd.f32 %v7264, %v7325
  %v7341 = vadd.f32 %v7265, %v7325
  %v7342 = vadd.f32 %v7266, %v7325
  %v7343 = vadd.f32 %v7267, %v7325
  %v7344 = vadd.f32 %v7268, %v7325
  %v7345 = vadd.f32 %v7269, %v7325
  %v7346 = vadd.f32 %v7270, %v7325
  %v7347 = vadd.f32 %v7271, %v7325
  %v7348 = vadd.f32 %v7272, %v7325
  %v7349 = vadd.f32 %v7273, %v7325
  %v7350 = vadd.f32 %v7274, %v7325
  %v7351 = vadd.f32 %v7275, %v7325
  %v7352 = vadd.f32 %v7276, %v7325
  %v7353 = vadd.f32 %v7277, %v7325
  %v7354 = vadd.f32 %v7278, %v7325
  %v7355 = vadd.f32 %v7279, %v7325
  %v7356 = vadd.f32 %v7280, %v7325
  %v7357 = vadd.f32 %v7281, %v7325
  %v7358 = vadd.f32 %v7282, %v7325
  %v7359 = vadd.f32 %v7283, %v7325
  %v7360 = vadd.f32 %v7284, %v7325
  %v7361 = vadd.f32 %v7285, %v7325
  %v7362 = vadd.f32 %v7286, %v7325
  %v7363 = vadd.f32 %v7287, %v7325
  %v7364 = vadd.f32 %v7288, %v7329
  %v7365 = vadd.f32 %v7289, %v7329
  %v7366 = vadd.f32 %v7290, %v7329
  %v7367 = vadd.f32 %v7291, %v7329
  %v7368 = vadd.f32 %v7292, %v7329
  %v7369 = vadd.f32 %v7293, %v7329
  %v7370 = vadd.f32 %v7294, %v7329
  %v7371 = vadd.f32 %v7295, %v7329
  %v7372 = vadd.f32 %v7296, %v7329
  %v7373 = vadd.f32 %v7297, %v7329
  %v7374 = vadd.f32 %v7298, %v7329
  %v7375 = vadd.f32 %v7299, %v7329
  %v7376 = vadd.f32 %v7300, %v7329
  %v7377 = vadd.f32 %v7301, %v7329
  %v7378 = vadd.f32 %v7302, %v7329
  %v7379 = vadd.f32 %v7303, %v7329
  %v7380 = vadd.f32 %v7304, %v7329
  %v7381 = vadd.f32 %v7305, %v7329
  %v7382 = vadd.f32 %v7306, %v7329
  %v7383 = vadd.f32 %v7307, %v7329
  %v7384 = vadd.f32 %v7308, %v7329
  %v7385 = vadd.f32 %v7309, %v7329
  %v7386 = vadd.f32 %v7310, %v7329
  %v7387 = vadd.f32 %v7311, %v7329
  %v7388 = vadd.f32 %v7312, %v7329
  %v7389 = vadd.f32 %v7313, %v7329
  %v7390 = vadd.f32 %v7314, %v7329
  %v7391 = vadd.f32 %v7315, %v7329
  %v7392 = vadd.f32 %v7316, %v7329
  %v7393 = vadd.f32 %v7317, %v7329
  %v7394 = vadd.f32 %v7318, %v7329
  %v7395 = vadd.f32 %v7319, %v7329
  %v7396 = vadd.f32 %v7332, %v26
  %v7397 = vadd.f32 %v7333, %v27
  %v7398 = vadd.f32 %v7334, %v28
  %v7399 = vadd.f32 %v7335, %v29
  %v7400 = vadd.f32 %v7336, %v30
  %v7401 = vadd.f32 %v7337, %v31
  %v7402 = vadd.f32 %v7338, %v32
  %v7403 = vadd.f32 %v7339, %v33
  %v7404 = vadd.f32 %v7340, %v34
  %v7405 = vadd.f32 %v7341, %v35
  %v7406 = vadd.f32 %v7342, %v36
  %v7407 = vadd.f32 %v7343, %v37
  %v7408 = vadd.f32 %v7344, %v38
  %v7409 = vadd.f32 %v7345, %v39
  %v7410 = vadd.f32 %v7346, %v40
  %v7411 = vadd.f32 %v7347, %v41
  %v7412 = vadd.f32 %v7348, %v42
  %v7413 = vadd.f32 %v7349, %v43
  %v7414 = vadd.f32 %v7350, %v44
  %v7415 = vadd.f32 %v7351, %v45
  %v7416 = vadd.f32 %v7352, %v46
  %v7417 = vadd.f32 %v7353, %v47
  %v7418 = vadd.f32 %v7354, %v48
  %v7419 = vadd.f32 %v7355, %v49
  %v7420 = vadd.f32 %v7356, %v50
  %v7421 = vadd.f32 %v7357, %v51
  %v7422 = vadd.f32 %v7358, %v52
  %v7423 = vadd.f32 %v7359, %v53
  %v7424 = vadd.f32 %v7360, %v54
  %v7425 = vadd.f32 %v7361, %v55
  %v7426 = vadd.f32 %v7362, %v56
  %v7427 = vadd.f32 %v7363, %v57
  %v7428 = vadd.f32 %v7364, %v58
  %v7429 = vadd.f32 %v7365, %v59
  %v7430 = vadd.f32 %v7366, %v60
  %v7431 = vadd.f32 %v7367, %v61
  %v7432 = vadd.f32 %v7368, %v62
  %v7433 = vadd.f32 %v7369, %v63
  %v7434 = vadd.f32 %v7370, %v64
  %v7435 = vadd.f32 %v7371, %v65
  %v7436 = vadd.f32 %v7372, %v66
  %v7437 = vadd.f32 %v7373, %v67
  %v7438 = vadd.f32 %v7374, %v68
  %v7439 = vadd.f32 %v7375, %v69
  %v7440 = vadd.f32 %v7376, %v70
  %v7441 = vadd.f32 %v7377, %v71
  %v7442 = vadd.f32 %v7378, %v72
  %v7443 = vadd.f32 %v7379, %v73
  %v7444 = vadd.f32 %v7380, %v74
  %v7445 = vadd.f32 %v7381, %v75
  %v7446 = vadd.f32 %v7382, %v76
  %v7447 = vadd.f32 %v7383, %v77
  %v7448 = vadd.f32 %v7384, %v78
  %v7449 = vadd.f32 %v7385, %v79
  %v7450 = vadd.f32 %v7386, %v80
  %v7451 = vadd.f32 %v7387, %v81
  %v7452 = vadd.f32 %v7388, %v82
  %v7453 = vadd.f32 %v7389, %v83
  %v7454 = vadd.f32 %v7390, %v84
  %v7455 = vadd.f32 %v7391, %v85
  %v7456 = vadd.f32 %v7392, %v86
  %v7457 = vadd.f32 %v7393, %v87
  %v7458 = vadd.f32 %v7394, %v88
  %v7459 = vadd.f32 %v7395, %v89
  %7460 = vst.msk [vmem:[%s7] sm:$0xff] %vm2120, %v7396
  %7461 = vst.msk [vmem:[%s7 + $0x8] sm:$0xff] %vm2120, %v7397
  %7462 = vst.msk [vmem:[%s7 + $0x10] sm:$0xff] %vm2120, %v7398
  %7463 = vst.msk [vmem:[%s7 + $0x18] sm:$0xff] %vm2120, %v7399
  %7464 = vst.msk [vmem:[%s7 + $0x20] sm:$0xff] %vm2120, %v7400
  %7465 = vst.msk [vmem:[%s7 + $0x28] sm:$0xff] %vm2120, %v7401
  %7466 = vst.msk [vmem:[%s7 + $0x30] sm:$0xff] %vm2120, %v7402
  %7467 = vst.msk [vmem:[%s7 + $0x38] sm:$0xff] %vm2120, %v7403
  %7468 = vst.msk [vmem:[%s7 + $0x40] sm:$0xff] %vm2120, %v7404
  %7469 = vst.msk [vmem:[%s7 + $0x48] sm:$0xff] %vm2120, %v7405
  %7470 = vst.msk [vmem:[%s7 + $0x50] sm:$0xff] %vm2120, %v7406
  %7471 = vst.msk [vmem:[%s7 + $0x58] sm:$0xff] %vm2120, %v7407
  %7472 = vst.msk [vmem:[%s7 + $0x60] sm:$0xff] %vm2120, %v7408
  %7473 = vst.msk [vmem:[%s7 + $0x68] sm:$0xff] %vm2120, %v7409
  %7474 = vst.msk [vmem:[%s7 + $0x70] sm:$0xff] %vm2120, %v7410
  %7475 = vst.msk [vmem:[%s7 + $0x78] sm:$0xff] %vm2120, %v7411
  %7476 = vst.msk [vmem:[%s7 + $0x80] sm:$0xff] %vm2120, %v7412
  %7477 = vst.msk [vmem:[%s7 + $0x88] sm:$0xff] %vm2120, %v7413
  %7478 = vst.msk [vmem:[%s7 + $0x90] sm:$0xff] %vm2120, %v7414
  %7479 = vst.msk [vmem:[%s7 + $0x98] sm:$0xff] %vm2120, %v7415
  %7480 = vst.msk [vmem:[%s7 + $0xa0] sm:$0xff] %vm2120, %v7416
  %7481 = vst.msk [vmem:[%s7 + $0xa8] sm:$0xff] %vm2120, %v7417
  %7482 = vst.msk [vmem:[%s7 + $0xb0] sm:$0xff] %vm2120, %v7418
  %7483 = vst.msk [vmem:[%s7 + $0xb8] sm:$0xff] %vm2120, %v7419
  %7484 = vst.msk [vmem:[%s7 + $0xc0] sm:$0xff] %vm2120, %v7420
  %7485 = vst.msk [vmem:[%s7 + $0xc8] sm:$0xff] %vm2120, %v7421
  %7486 = vst.msk [vmem:[%s7 + $0xd0] sm:$0xff] %vm2120, %v7422
  %7487 = vst.msk [vmem:[%s7 + $0xd8] sm:$0xff] %vm2120, %v7423
  %7488 = vst.msk [vmem:[%s7 + $0xe0] sm:$0xff] %vm2120, %v7424
  %7489 = vst.msk [vmem:[%s7 + $0xe8] sm:$0xff] %vm2120, %v7425
  %7490 = vst.msk [vmem:[%s7 + $0xf0] sm:$0xff] %vm2120, %v7426
  %7491 = vst.msk [vmem:[%s7 + $0xf8] sm:$0xff] %vm2120, %v7427
  %7492 = vst.msk [vmem:[%s7 + $0x100] sm:$0xff] %vm2120, %v7428
  %7493 = vst.msk [vmem:[%s7 + $0x108] sm:$0xff] %vm2120, %v7429
  %7494 = vst.msk [vmem:[%s7 + $0x110] sm:$0xff] %vm2120, %v7430
  %7495 = vst.msk [vmem:[%s7 + $0x118] sm:$0xff] %vm2120, %v7431
  %7496 = vst.msk [vmem:[%s7 + $0x120] sm:$0xff] %vm2120, %v7432
  %7497 = vst.msk [vmem:[%s7 + $0x128] sm:$0xff] %vm2120, %v7433
  %7498 = vst.msk [vmem:[%s7 + $0x130] sm:$0xff] %vm2120, %v7434
  %7499 = vst.msk [vmem:[%s7 + $0x138] sm:$0xff] %vm2120, %v7435
  %7500 = vst.msk [vmem:[%s7 + $0x140] sm:$0xff] %vm2120, %v7436
  %7501 = vst.msk [vmem:[%s7 + $0x148] sm:$0xff] %vm2120, %v7437
  %7502 = vst.msk [vmem:[%s7 + $0x150] sm:$0xff] %vm2120, %v7438
  %7503 = vst.msk [vmem:[%s7 + $0x158] sm:$0xff] %vm2120, %v7439
  %7504 = vst.msk [vmem:[%s7 + $0x160] sm:$0xff] %vm2120, %v7440
  %7505 = vst.msk [vmem:[%s7 + $0x168] sm:$0xff] %vm2120, %v7441
  %7506 = vst.msk [vmem:[%s7 + $0x170] sm:$0xff] %vm2120, %v7442
  %7507 = vst.msk [vmem:[%s7 + $0x178] sm:$0xff] %vm2120, %v7443
  %7508 = vst.msk [vmem:[%s7 + $0x180] sm:$0xff] %vm2120, %v7444
  %7509 = vst.msk [vmem:[%s7 + $0x188] sm:$0xff] %vm2120, %v7445
  %7510 = vst.msk [vmem:[%s7 + $0x190] sm:$0xff] %vm2120, %v7446
  %7511 = vst.msk [vmem:[%s7 + $0x198] sm:$0xff] %vm2120, %v7447
  %7512 = vst.msk [vmem:[%s7 + $0x1a0] sm:$0xff] %vm2120, %v7448
  %7513 = vst.msk [vmem:[%s7 + $0x1a8] sm:$0xff] %vm2120, %v7449
  %7514 = vst.msk [vmem:[%s7 + $0x1b0] sm:$0xff] %vm2120, %v7450
  %7515 = vst.msk [vmem:[%s7 + $0x1b8] sm:$0xff] %vm2120, %v7451
  %7516 = vst.msk [vmem:[%s7 + $0x1c0] sm:$0xff] %vm2120, %v7452
  %7517 = vst.msk [vmem:[%s7 + $0x1c8] sm:$0xff] %vm2120, %v7453
  %7518 = vst.msk [vmem:[%s7 + $0x1d0] sm:$0xff] %vm2120, %v7454
  %7519 = vst.msk [vmem:[%s7 + $0x1d8] sm:$0xff] %vm2120, %v7455
  %7520 = vst.msk [vmem:[%s7 + $0x1e0] sm:$0xff] %vm2120, %v7456
  %7521 = vst.msk [vmem:[%s7 + $0x1e8] sm:$0xff] %vm2120, %v7457
  %7522 = vst.msk [vmem:[%s7 + $0x1f0] sm:$0xff] %vm2120, %v7458
  %7523 = vst.msk [vmem:[%s7 + $0x1f8] sm:$0xff] %vm2120, %v7459
  // Predicated region
  $region30: #{tpu_custom_call.1} parent=0 // pred_check
    _
  $region31: #{tpu_custom_call.1} parent=0 // pred_check_branch
    %7525 = sbr.rel (0) target = $region33
  $region32: #{tpu_custom_call.1} parent=0 // pred_region
    _
  $region33: #{tpu_custom_call.1} parent=0 // pred_fallthru
    _
  // Predicated region
  $region34: #{tpu_custom_call.1} parent=0 // pred_check
    _
  $region35: #{tpu_custom_call.1} parent=0 // pred_check_branch
    %7527 = sbr.rel (0) target = $region37
  $region36: #{tpu_custom_call.1} parent=0 // pred_region
    _
  $region37: #{tpu_custom_call.1} parent=0 // pred_fallthru
    _

</llo_original>
